<compile_context>
chip_gen: v7x
topology: tpu7x:2x2x1
jax: 0.10.0
libtpu: 0.0.40
codegen_flags: <defaults>
</compile_context>

<pallas_src>
import functools

import jax
import jax.numpy as jnp
from jax.experimental import pallas as pl
from jax.experimental.pallas import tpu as pltpu


# ----------------------------------- kernels -----------------------------------

def _gru_evolve_packed(w0, g, gb):
    """One PyTorch GRUCell step with input == hidden == w0 (EvolveGCNO weight evolution).

    Valid ONLY because input == hidden: the r/z gate weights of the input and hidden
    paths are pre-summed, and all gate matrices are packed into one (C, 4C) operand:
        g  = [Wi_r^T + Wh_r^T | Wi_z^T + Wh_z^T | Wi_n^T | Wh_n^T]
        gb = [bi_r + bh_r     | bi_z + bh_z     | bi_n   | bh_n  ]
    so six (C,C) matmuls collapse into one (C,4C) matmul.
    """
    c = w0.shape[0]
    p = jnp.dot(w0, g, preferred_element_type=jnp.float32) + gb
    r = jax.nn.sigmoid(p[:, 0 * c:1 * c])
    z = jax.nn.sigmoid(p[:, 1 * c:2 * c])
    n = jnp.tanh(p[:, 2 * c:3 * c] + r * p[:, 3 * c:4 * c])
    return (1.0 - z) * n + z * w0


def evolve_weights_kernel(w01_ref, g1_ref, gb1_ref,
                          w02_ref, g2_ref, gb2_ref, lin1wt_ref,
                          w1_ref, w2l_ref):
    """Tiny un-gridded kernel: weight evolution for both conv layers + lin1 fold.

    w2l_ref is (hid_pad, out_pad): the fold W2 @ L1^T written into the top `hid` rows,
    zero rows below (so layer 2 can contract over the padded hidden dim directly).
    """
    w1_ref[...] = _gru_evolve_packed(w01_ref[...], g1_ref[...], gb1_ref[...])
    w2 = _gru_evolve_packed(w02_ref[...], g2_ref[...], gb2_ref[...])
    w2l = jnp.dot(w2, lin1wt_ref[...], preferred_element_type=jnp.float32)  # (hid, out_pad)
    hid = w2.shape[0]
    hid_pad = w2l_ref.shape[0]
    if hid_pad > hid:
        w2l_ref[...] = jnp.zeros_like(w2l_ref)
        w2l_ref[0:hid, :] = w2l
    else:
        w2l_ref[...] = w2l


def gcn_layer1_kernel(a_ref, x_ref, w1_ref, l0wt_ref, l0b_ref, h1_ref, acc_ref):
    """Grid (row tile i, K tile k): accumulate A[i,k] @ X[k] in f32; at the last k apply
    W1, relu, lin0 (padded to a lane-dense hidden) and store H1 as bf16."""
    k = pl.program_id(1)

    @pl.when(k == 0)
    def _():
        acc_ref[...] = jnp.zeros_like(acc_ref)

    acc_ref[...] += jnp.dot(a_ref[...], x_ref[...], preferred_element_type=jnp.float32)

    @pl.when(k == pl.num_programs(1) - 1)
    def _():
        ax = acc_ref[...]                                                     # (tm, in_ch)
        h = jnp.dot(ax, w1_ref[...], preferred_element_type=jnp.float32)     # == A@(X@W1)
        h = jnp.maximum(h, 0.0)                                               # relu
        h = jnp.dot(h, l0wt_ref[...], preferred_element_type=jnp.float32) + l0b_ref[...]
        # TODO(synk): F.dropout(h, 0.5, training=True) is stochastic; treated as identity (eval).
        h1_ref[...] = h.astype(h1_ref.dtype)


def gcn_layer2_kernel(a_ref, h1_ref, w2l_ref, l1b_ref, out_ref, acc_ref):
    """Grid (row tile i, K tile k): accumulate A[i,k] @ H1[k] in f32; at the last k apply
    the folded (W2 @ L1^T) + bias + sigmoid and store bf16, 128-lane dense."""
    k = pl.program_id(1)

    @pl.when(k == 0)
    def _():
        acc_ref[...] = jnp.zeros_like(acc_ref)

    acc_ref[...] += jnp.dot(a_ref[...], h1_ref[...], preferred_element_type=jnp.float32)

    @pl.when(k == pl.num_programs(1) - 1)
    def _():
        logits = jnp.dot(acc_ref[...], w2l_ref[...],
                         preferred_element_type=jnp.float32) + l1b_ref[...]
        out_ref[...] = jax.nn.sigmoid(logits).astype(out_ref.dtype)


# ----------------------------------- wrapper -----------------------------------

def _round_up(v, m):
    return (v + m - 1) // m * m


def _pick_tile(n_pad, want, unit=128):
    """Largest multiple of `unit` that divides n_pad and is <= want (>= unit)."""
    want = max(unit, min(want, n_pad))
    best = unit
    t = unit
    while t <= want:
        if n_pad % t == 0:
            best = t
        t += unit
    return best


def _vmem_budget(tm, tk, c_stream, c_out):
    """Scoped-VMEM hint for one gridded layer: double-buffered A tile + streamed operand
    + resident output block + f32 accumulator, with generous headroom.  Kept well under
    v7x's 64 MiB physical VMEM."""
    a = 2 * tm * tk * 2                      # A tile, bf16, double-buffered
    b = 2 * tk * c_stream * 2                # X / H1 tile, bf16, double-buffered
    o = 2 * tm * c_out * 2                   # output block, bf16
    acc = tm * max(c_stream, c_out) * 4      # f32 accumulator scratch
    est = a + b + o + acc + (1 << 20)
    return int(min(max(2 * est, 16 * 2 ** 20), 56 * 2 ** 20))


@functools.partial(jax.jit, static_argnames=("tm", "tk"))
def evolve_gnn_forward(x_pad, a_pad, packed, *, tm=256, tk=1024):
    """EvolveGNN('O') forward on pre-padded bf16 inputs.

    x_pad: (n_pad, in_ch) bf16, a_pad: (n_pad, n_pad) bf16 (zero-padded normalized adjacency),
    both produced once by pack_inputs().  Returns the padded bf16 output (n_pad, out_pad);
    the caller slices to (n, out_ch).
    """
    n_pad, in_ch = x_pad.shape
    hid = packed["lin1_wt_pad"].shape[0]
    hid_pad = packed["lin0_wt_pad"].shape[1]
    out_pad = packed["lin1_wt_pad"].shape[1]
    del hid  # only needed inside the evolve kernel (derived from ref shapes)

    # ---- tile geometry: multiples of 128, >= 2 row tiles so both v7x TCs get work ----
    tm_eff = _pick_tile(n_pad, tm)
    if tm_eff == n_pad and n_pad >= 256:
        tm_eff = _pick_tile(n_pad, n_pad // 2)
    tk_eff = _pick_tile(n_pad, tk)
    grid = (n_pad // tm_eff, n_pad // tk_eff)

    vmem = pl.BlockSpec(memory_space=pltpu.MemorySpace.VMEM)

    # ---- (1) GRU weight evolution + fold of lins[1] into W2 (node-count independent) ----
    w1, w2l = pl.pallas_call(
        evolve_weights_kernel,
        out_shape=(jax.ShapeDtypeStruct((in_ch, in_ch), jnp.float32),
                   jax.ShapeDtypeStruct((hid_pad, out_pad), jnp.float32)),
        in_specs=[vmem] * 7,
        out_specs=(vmem, vmem),
    )(packed["w0_1"], packed["g1"], packed["gb1"],
      packed["w0_2"], packed["g2"], packed["gb2"], packed["lin1_wt_pad"])

    a_spec = pl.BlockSpec((tm_eff, tk_eff), lambda i, k: (i, k))

    def const(shape):
        return pl.BlockSpec(shape, lambda i, k, _nd=len(shape): (0,) * _nd)

    # ---- (2) conv1 + lins[0]: row tiles parallel, K tiles arbitrary, f32 accumulator ----
    h1 = pl.pallas_call(
        gcn_layer1_kernel,
        out_shape=jax.ShapeDtypeStruct((n_pad, hid_pad), jnp.bfloat16),
        grid=grid,
        in_specs=[a_spec,
                  pl.BlockSpec((tk_eff, in_ch), lambda i, k: (k, 0)),
                  const((in_ch, in_ch)),
                  const((in_ch, hid_pad)),
                  const((1, hid_pad))],
        out_specs=pl.BlockSpec((tm_eff, hid_pad), lambda i, k: (i, 0)),
        scratch_shapes=[pltpu.VMEM((tm_eff, in_ch), jnp.float32)],
        compiler_params=pltpu.CompilerParams(
            dimension_semantics=("parallel", "arbitrary"),
            vmem_limit_bytes=_vmem_budget(tm_eff, tk_eff, in_ch, hid_pad)),
    )(a_pad, x_pad, w1, packed["lin0_wt_pad"], packed["lin0_b_pad"])

    # ---- (3) conv2 + folded lins[1] + sigmoid: same tiling, bf16 lane-dense output ----
    out_padded = pl.pallas_call(
        gcn_layer2_kernel,
        out_shape=jax.ShapeDtypeStruct((n_pad, out_pad), jnp.bfloat16),
        grid=grid,
        in_specs=[a_spec,
                  pl.BlockSpec((tk_eff, hid_pad), lambda i, k: (k, 0)),
                  const((hid_pad, out_pad)),
                  const((1, out_pad))],
        out_specs=pl.BlockSpec((tm_eff, out_pad), lambda i, k: (i, 0)),
        scratch_shapes=[pltpu.VMEM((tm_eff, hid_pad), jnp.float32)],
        compiler_params=pltpu.CompilerParams(
            dimension_semantics=("parallel", "arbitrary"),
            vmem_limit_bytes=_vmem_budget(tm_eff, tk_eff, hid_pad, out_pad)),
    )(a_pad, h1, w2l, packed["lin1_b_pad"])

    return out_padded


# ------------------------- parameter / input construction -------------------------

def make_params(key, in_channels, hidden_channels, out_channels):
    """PyTorch-layout parameters for EvolveGNN('O')."""
    ks = jax.random.split(key, 14)
    s = 0.1

    def gru(k0, k1, k2, k3, c):
        return (s * jax.random.normal(k0, (3, c, c), jnp.float32),   # W_i[r,z,n], (out,in)
                s * jax.random.normal(k1, (3, c, c), jnp.float32),   # W_h[r,z,n]
                s * jax.random.normal(k2, (3, c), jnp.float32),      # b_i
                s * jax.random.normal(k3, (3, c), jnp.float32))      # b_h

    wi1, wh1, bi1, bh1 = gru(ks[0], ks[1], ks[2], ks[3], in_channels)
    wi2, wh2, bi2, bh2 = gru(ks[4], ks[5], ks[6], ks[7], hidden_channels)
    return dict(
        w0_1=s * jax.random.normal(ks[8], (in_channels, in_channels), jnp.float32),
        wi1=wi1, wh1=wh1, bi1=bi1, bh1=bh1,
        w0_2=s * jax.random.normal(ks[9], (hidden_channels, hidden_channels), jnp.float32),
        wi2=wi2, wh2=wh2, bi2=bi2, bh2=bh2,
        lin0_w=s * jax.random.normal(ks[10], (hidden_channels, in_channels), jnp.float32),
        lin0_b=s * jax.random.normal(ks[11], (hidden_channels,), jnp.float32),
        lin1_w=s * jax.random.normal(ks[12], (out_channels, hidden_channels), jnp.float32),
        lin1_b=s * jax.random.normal(ks[13], (out_channels,), jnp.float32),
    )


def pack_params(p):
    """One-time repack: transposes, GRU gate packing, lane-dense (128-multiple) padding of
    the lin0 / lin1 weights and biases (all hoisted out of the per-forward path)."""
    def pack_gru(wi, wh, bi, bh):
        wi_t = jnp.transpose(wi, (0, 2, 1))
        wh_t = jnp.transpose(wh, (0, 2, 1))
        # r/z gate fusion valid only because input == hidden == w0 in EvolveGCNO.
        g = jnp.concatenate([wi_t[0] + wh_t[0], wi_t[1] + wh_t[1], wi_t[2], wh_t[2]], axis=1)
        gb = jnp.concatenate([bi[0] + bh[0], bi[1] + bh[1], bi[2], bh[2]])[None, :]
        return g, gb

    g1, gb1 = pack_gru(p["wi1"], p["wh1"], p["bi1"], p["bh1"])
    g2, gb2 = pack_gru(p["wi2"], p["wh2"], p["bi2"], p["bh2"])
    out_ch, hid = p["lin1_w"].shape
    in_ch = p["lin0_w"].shape[1]
    hid_pad = _round_up(hid, 128)
    out_pad = _round_up(out_ch, 128)
    # Zero-padded lin0 -> H1 columns [hid:hid_pad] are exactly zero (layer-2 K padding inert).
    lin0_wt_pad = jnp.zeros((in_ch, hid_pad), jnp.float32).at[:, :hid].set(p["lin0_w"].T)
    lin0_b_pad = jnp.zeros((1, hid_pad), jnp.float32).at[:, :hid].set(p["lin0_b"][None, :])
    lin1_wt_pad = jnp.zeros((hid, out_pad), jnp.float32).at[:, :out_ch].set(p["lin1_w"].T)
    lin1_b_pad = jnp.zeros((1, out_pad), jnp.float32).at[:, :out_ch].set(p["lin1_b"][None, :])
    return dict(
        w0_1=p["w0_1"], g1=g1, gb1=gb1,
        w0_2=p["w0_2"], g2=g2, gb2=gb2,
        lin0_wt_pad=lin0_wt_pad, lin0_b_pad=lin0_b_pad,
        lin1_wt_pad=lin1_wt_pad, lin1_b_pad=lin1_b_pad,
    )


def pack_inputs(x, a_hat, pad_to=256):
    """One-time bf16 cast + zero padding of the node features and normalized adjacency.
    Hoisted out of the jitted forward so repeated forwards do not re-materialize the
    (N,N) bf16 copy.  Zero padding is semantically inert (padded rows sliced away)."""
    n, in_ch = x.shape
    n_pad = max(_round_up(n, pad_to), pad_to)
    a_pad = jnp.zeros((n_pad, n_pad), jnp.bfloat16).at[:n, :n].set(a_hat.astype(jnp.bfloat16))
    x_pad = jnp.zeros((n_pad, in_ch), jnp.bfloat16).at[:n, :].set(x.astype(jnp.bfloat16))
    return a_pad, x_pad


def build_normalized_adjacency(edge_index, num_nodes, edge_weight=None):
    """Dense GCN normalization (add self-loops, D^{-1/2}(A+I)D^{-1/2}), PyG conventions."""
    src, dst = edge_index[0], edge_index[1]
    if edge_weight is None:
        edge_weight = jnp.ones(src.shape[0], jnp.float32)
    a = jnp.zeros((num_nodes, num_nodes), jnp.float32)
    a = a.at[dst, src].add(edge_weight)
    a = a + jnp.eye(num_nodes, dtype=jnp.float32)
    deg = a.sum(axis=1)
    dinv = jnp.where(deg > 0, 1.0 / jnp.sqrt(deg), 0.0)
    return dinv[:, None] * a * dinv[None, :]


def reference_forward(x, a_hat, p):
    """Pure-JAX f32 reference (PyTorch-layout params) for correctness checking."""
    def gru(w0, wi, wh, bi, bh):
        def gate(k):
            return w0 @ wi[k].T + bi[k][None, :], w0 @ wh[k].T + bh[k][None, :]
        (gir, ghr), (giz, ghz), (gin, ghn) = gate(0), gate(1), gate(2)
        r = jax.nn.sigmoid(gir + ghr)
        z = jax.nn.sigmoid(giz + ghz)
        n = jnp.tanh(gin + r * ghn)
        return (1.0 - z) * n + z * w0

    w1 = gru(p["w0_1"], p["wi1"], p["wh1"], p["bi1"], p["bh1"])
    h = jnp.maximum(a_hat @ (x @ w1), 0.0)
    h = h @ p["lin0_w"].T + p["lin0_b"]
    w2 = gru(p["w0_2"], p["wi2"], p["wh2"], p["bi2"], p["bh2"])
    h = a_hat @ (h @ w2)
    h = h @ p["lin1_w"].T + p["lin1_b"]
    return jax.nn.sigmoid(h)


if __name__ == "__main__":
    key = jax.random.PRNGKey(0)
    k_x, k_e, k_p = jax.random.split(key, 3)

    N = 256              # nodes
    IN_CH, HID_CH, OUT_CH = 16, 32, 8
    E = 1024             # directed edges (made symmetric below)

    x = jax.random.normal(k_x, (N, IN_CH), jnp.float32)
    src = jax.random.randint(k_e, (E,), 0, N)
    dst = jax.random.randint(jax.random.fold_in(k_e, 1), (E,), 0, N)
    edge_index = jnp.stack([jnp.concatenate([src, dst]),
                            jnp.concatenate([dst, src])], axis=0)

    a_hat = build_normalized_adjacency(edge_index, N)
    params = make_params(k_p, IN_CH, HID_CH, OUT_CH)
    packed = pack_params(params)                      # one-time parameter repack
    a_pad, x_pad = pack_inputs(x, a_hat)              # one-time bf16 cast + padding

    # tm=128, tk=128 on a 256-node graph -> 2x2 grid: exercises the parallel row axis
    # (both v7x TensorCores) and the "arbitrary" K-accumulation axis.
    out_padded = evolve_gnn_forward(x_pad, a_pad, packed, tm=128, tk=128)
    out_padded = jax.block_until_ready(out_padded)
    out = out_padded[:N, :OUT_CH].astype(jnp.float32)

    ref = reference_forward(x, a_hat, params)
    assert out.shape == (N, OUT_CH)
    err = float(jnp.max(jnp.abs(out - ref)))
    # bf16 MXU operands (A_hat, X, H1) + bf16 output vs an all-f32 reference.
    assert err < 3e-2, f"mismatch vs pure-JAX reference: max abs err {err}"

    print("KERNEL_OK")
</pallas_src>

<mosaic_0001>
module attributes {stable_mosaic.version = 11 : i64} {
  func.func @evolve_weights_kernel(%arg0: memref<16x16xf32, #tpu.memory_space<vmem>>, %arg1: memref<16x64xf32, #tpu.memory_space<vmem>>, %arg2: memref<1x64xf32, #tpu.memory_space<vmem>>, %arg3: memref<32x32xf32, #tpu.memory_space<vmem>>, %arg4: memref<32x128xf32, #tpu.memory_space<vmem>>, %arg5: memref<1x128xf32, #tpu.memory_space<vmem>>, %arg6: memref<32x128xf32, #tpu.memory_space<vmem>>, %arg7: memref<16x16xf32, #tpu.memory_space<vmem>>, %arg8: memref<128x128xf32, #tpu.memory_space<vmem>>) attributes {dimension_semantics = [], scalar_prefetch = 0 : i64, scratch_operands = 0 : i64, tpu.core_type = #tpu.core_type<tc>} {
    %c0 = arith.constant 0 : index
    %c0_0 = arith.constant 0 : index
    %0 = vector.load %arg0[%c0, %c0_0] : memref<16x16xf32, #tpu.memory_space<vmem>>, vector<16x16xf32>
    %c0_1 = arith.constant 0 : index
    %c0_2 = arith.constant 0 : index
    %1 = vector.load %arg1[%c0_1, %c0_2] : memref<16x64xf32, #tpu.memory_space<vmem>>, vector<16x64xf32>
    %c0_3 = arith.constant 0 : index
    %c0_4 = arith.constant 0 : index
    %2 = vector.load %arg2[%c0_3, %c0_4] : memref<1x64xf32, #tpu.memory_space<vmem>>, vector<1x64xf32>
    %cst = arith.constant dense<0.000000e+00> : vector<16x64xf32>
    %3 = tpu.matmul %0, %1, %cst {dimension_numbers = #tpu.dot_dimension_numbers<[1], [0], [0], [1], [0, 0, 1, 1], [], []>} : vector<16x16xf32>, vector<16x64xf32>, vector<16x64xf32> -> vector<16x64xf32>
    %4 = vector.broadcast %2 : vector<1x64xf32> to vector<16x64xf32>
    %5 = arith.addf %3, %4 : vector<16x64xf32>
    %6 = vector.extract_strided_slice %5 {offsets = [0, 0], sizes = [16, 16], strides = [1, 1]} : vector<16x64xf32> to vector<16x16xf32>
    %7 = arith.negf %6 : vector<16x16xf32>
    %8 = math.exp %7 : vector<16x16xf32>
    %cst_5 = arith.constant 1.000000e+00 : f32
    %9 = vector.broadcast %cst_5 : f32 to vector<16x16xf32>
    %10 = arith.addf %9, %8 : vector<16x16xf32>
    %11 = arith.divf %9, %10 : vector<16x16xf32>
    %12 = vector.extract_strided_slice %5 {offsets = [0, 16], sizes = [16, 16], strides = [1, 1]} : vector<16x64xf32> to vector<16x16xf32>
    %13 = arith.negf %12 : vector<16x16xf32>
    %14 = math.exp %13 : vector<16x16xf32>
    %cst_6 = arith.constant 1.000000e+00 : f32
    %15 = vector.broadcast %cst_6 : f32 to vector<16x16xf32>
    %16 = arith.addf %15, %14 : vector<16x16xf32>
    %17 = arith.divf %15, %16 : vector<16x16xf32>
    %18 = vector.extract_strided_slice %5 {offsets = [0, 32], sizes = [16, 16], strides = [1, 1]} : vector<16x64xf32> to vector<16x16xf32>
    %19 = vector.extract_strided_slice %5 {offsets = [0, 48], sizes = [16, 16], strides = [1, 1]} : vector<16x64xf32> to vector<16x16xf32>
    %20 = arith.mulf %11, %19 : vector<16x16xf32>
    %21 = arith.addf %18, %20 : vector<16x16xf32>
    %22 = math.tanh %21 : vector<16x16xf32>
    %cst_7 = arith.constant 1.000000e+00 : f32
    %23 = vector.broadcast %cst_7 : f32 to vector<16x16xf32>
    %24 = arith.subf %23, %17 : vector<16x16xf32>
    %25 = arith.mulf %24, %22 : vector<16x16xf32>
    %26 = arith.mulf %17, %0 : vector<16x16xf32>
    %27 = arith.addf %25, %26 : vector<16x16xf32>
    %c0_8 = arith.constant 0 : index
    %c0_9 = arith.constant 0 : index
    %28 = vector.load %arg7[%c0_8, %c0_9] : memref<16x16xf32, #tpu.memory_space<vmem>>, vector<16x16xf32>
    tpu.vector_store %arg7[%c0_8, %c0_9], %27 {strides = array<i32>} : memref<16x16xf32, #tpu.memory_space<vmem>>, vector<16x16xf32>,
    %c0_10 = arith.constant 0 : index
    %c0_11 = arith.constant 0 : index
    %29 = vector.load %arg3[%c0_10, %c0_11] : memref<32x32xf32, #tpu.memory_space<vmem>>, vector<32x32xf32>
    %c0_12 = arith.constant 0 : index
    %c0_13 = arith.constant 0 : index
    %30 = vector.load %arg4[%c0_12, %c0_13] : memref<32x128xf32, #tpu.memory_space<vmem>>, vector<32x128xf32>
    %c0_14 = arith.constant 0 : index
    %c0_15 = arith.constant 0 : index
    %31 = vector.load %arg5[%c0_14, %c0_15] : memref<1x128xf32, #tpu.memory_space<vmem>>, vector<1x128xf32>
    %cst_16 = arith.constant dense<0.000000e+00> : vector<32x128xf32>
    %32 = tpu.matmul %29, %30, %cst_16 {dimension_numbers = #tpu.dot_dimension_numbers<[1], [0], [0], [1], [0, 0, 1, 1], [], []>} : vector<32x32xf32>, vector<32x128xf32>, vector<32x128xf32> -> vector<32x128xf32>
    %33 = vector.broadcast %31 : vector<1x128xf32> to vector<32x128xf32>
    %34 = arith.addf %32, %33 : vector<32x128xf32>
    %35 = vector.extract_strided_slice %34 {offsets = [0, 0], sizes = [32, 32], strides = [1, 1]} : vector<32x128xf32> to vector<32x32xf32>
    %36 = arith.negf %35 : vector<32x32xf32>
    %37 = math.exp %36 : vector<32x32xf32>
    %cst_17 = arith.constant 1.000000e+00 : f32
    %38 = vector.broadcast %cst_17 : f32 to vector<32x32xf32>
    %39 = arith.addf %38, %37 : vector<32x32xf32>
    %40 = arith.divf %38, %39 : vector<32x32xf32>
    %41 = vector.extract_strided_slice %34 {offsets = [0, 32], sizes = [32, 32], strides = [1, 1]} : vector<32x128xf32> to vector<32x32xf32>
    %42 = arith.negf %41 : vector<32x32xf32>
    %43 = math.exp %42 : vector<32x32xf32>
    %cst_18 = arith.constant 1.000000e+00 : f32
    %44 = vector.broadcast %cst_18 : f32 to vector<32x32xf32>
    %45 = arith.addf %44, %43 : vector<32x32xf32>
    %46 = arith.divf %44, %45 : vector<32x32xf32>
    %47 = vector.extract_strided_slice %34 {offsets = [0, 64], sizes = [32, 32], strides = [1, 1]} : vector<32x128xf32> to vector<32x32xf32>
    %48 = vector.extract_strided_slice %34 {offsets = [0, 96], sizes = [32, 32], strides = [1, 1]} : vector<32x128xf32> to vector<32x32xf32>
    %49 = arith.mulf %40, %48 : vector<32x32xf32>
    %50 = arith.addf %47, %49 : vector<32x32xf32>
    %51 = math.tanh %50 : vector<32x32xf32>
    %cst_19 = arith.constant 1.000000e+00 : f32
    %52 = vector.broadcast %cst_19 : f32 to vector<32x32xf32>
    %53 = arith.subf %52, %46 : vector<32x32xf32>
    %54 = arith.mulf %53, %51 : vector<32x32xf32>
    %55 = arith.mulf %46, %29 : vector<32x32xf32>
    %56 = arith.addf %54, %55 : vector<32x32xf32>
    %c0_20 = arith.constant 0 : index
    %c0_21 = arith.constant 0 : index
    %57 = vector.load %arg6[%c0_20, %c0_21] : memref<32x128xf32, #tpu.memory_space<vmem>>, vector<32x128xf32>
    %cst_22 = arith.constant dense<0.000000e+00> : vector<32x128xf32>
    %58 = tpu.matmul %56, %57, %cst_22 {dimension_numbers = #tpu.dot_dimension_numbers<[1], [0], [0], [1], [0, 0, 1, 1], [], []>} : vector<32x32xf32>, vector<32x128xf32>, vector<32x128xf32> -> vector<32x128xf32>
    %cst_23 = arith.constant 0.000000e+00 : f32
    %59 = vector.broadcast %cst_23 : f32 to vector<128x128xf32>
    %c0_24 = arith.constant 0 : index
    %c0_25 = arith.constant 0 : index
    %60 = vector.load %arg8[%c0_24, %c0_25] : memref<128x128xf32, #tpu.memory_space<vmem>>, vector<128x128xf32>
    tpu.vector_store %arg8[%c0_24, %c0_25], %59 {strides = array<i32>} : memref<128x128xf32, #tpu.memory_space<vmem>>, vector<128x128xf32>,
    %c0_26 = arith.constant 0 : index
    %c0_27 = arith.constant 0 : index
    %61 = vector.load %arg8[%c0_26, %c0_27] : memref<128x128xf32, #tpu.memory_space<vmem>>, vector<32x128xf32>
    tpu.vector_store %arg8[%c0_26, %c0_27], %58 {strides = array<i32>} : memref<128x128xf32, #tpu.memory_space<vmem>>, vector<32x128xf32>,
    return
  }
}

module attributes {stable_mosaic.version = 11 : i64} {
  func.func @gcn_layer2_kernel(%arg0: i32, %arg1: i32, %arg2: memref<128x128xbf16, #tpu.memory_space<vmem>>, %arg3: memref<128x128xbf16, #tpu.memory_space<vmem>>, %arg4: memref<128x128xf32, #tpu.memory_space<vmem>>, %arg5: memref<1x128xf32, #tpu.memory_space<vmem>>, %arg6: memref<128x128xbf16, #tpu.memory_space<vmem>>, %arg7: memref<128x128xf32, #tpu.memory_space<vmem>>) attributes {dimension_semantics = [#tpu.dimension_semantics<parallel>, #tpu.dimension_semantics<arbitrary>], iteration_bounds = array<i64: 2, 2>, scalar_prefetch = 0 : i64, scratch_operands = 1 : i64, tpu.core_type = #tpu.core_type<tc>, window_params = [{transform_indices = @transform_0, window_bounds = array<i64: 128, 128>}, {transform_indices = @transform_1, window_bounds = array<i64: 128, 128>}, {pipeline_mode = #tpu.pipeline_mode<synchronous>, transform_indices = @transform_2, window_bounds = array<i64: 128, 128>}, {pipeline_mode = #tpu.pipeline_mode<synchronous>, transform_indices = @transform_3, window_bounds = array<i64: 1, 128>}, {transform_indices = @transform_4, window_bounds = array<i64: 128, 128>}]} {
    %c0_i32 = arith.constant 0 : i32
    %0 = arith.cmpi eq, %arg1, %c0_i32 : i32
    %1 = arith.extui %0 : i1 to i32
    %c0_i32_0 = arith.constant 0 : i32
    %2 = arith.cmpi ne, %1, %c0_i32_0 : i32
    scf.if %2 {
      %cst_9 = arith.constant 0.000000e+00 : f32
      %12 = vector.broadcast %cst_9 : f32 to vector<128x128xf32>
      %c0_10 = arith.constant 0 : index
      %c0_11 = arith.constant 0 : index
      %13 = vector.load %arg7[%c0_10, %c0_11] : memref<128x128xf32, #tpu.memory_space<vmem>>, vector<128x128xf32>
      tpu.vector_store %arg7[%c0_10, %c0_11], %12 {strides = array<i32>} : memref<128x128xf32, #tpu.memory_space<vmem>>, vector<128x128xf32>,
    } else {
    }
    %c0 = arith.constant 0 : index
    %c0_1 = arith.constant 0 : index
    %3 = vector.load %arg7[%c0, %c0_1] : memref<128x128xf32, #tpu.memory_space<vmem>>, vector<128x128xf32>
    %c0_2 = arith.constant 0 : index
    %c0_3 = arith.constant 0 : index
    %4 = vector.load %arg2[%c0_2, %c0_3] : memref<128x128xbf16, #tpu.memory_space<vmem>>, vector<128x128xbf16>
    %c0_4 = arith.constant 0 : index
    %c0_5 = arith.constant 0 : index
    %5 = vector.load %arg3[%c0_4, %c0_5] : memref<128x128xbf16, #tpu.memory_space<vmem>>, vector<128x128xbf16>
    %cst = arith.constant dense<0.000000e+00> : vector<128x128xf32>
    %6 = tpu.matmul %4, %5, %cst {dimension_numbers = #tpu.dot_dimension_numbers<[1], [0], [0], [1], [0, 0, 1, 1], [], []>} : vector<128x128xbf16>, vector<128x128xbf16>, vector<128x128xf32> -> vector<128x128xf32>
    %7 = arith.addf %3, %6 : vector<128x128xf32>
    %c0_6 = arith.constant 0 : index
    %c0_7 = arith.constant 0 : index
    %8 = vector.load %arg7[%c0_6, %c0_7] : memref<128x128xf32, #tpu.memory_space<vmem>>, vector<128x128xf32>
    tpu.vector_store %arg7[%c0_6, %c0_7], %7 {strides = array<i32>} : memref<128x128xf32, #tpu.memory_space<vmem>>, vector<128x128xf32>,
    %c1_i32 = arith.constant 1 : i32
    %9 = arith.cmpi eq, %arg1, %c1_i32 : i32
    %10 = arith.extui %9 : i1 to i32
    %c0_i32_8 = arith.constant 0 : i32
    %11 = arith.cmpi ne, %10, %c0_i32_8 : i32
    scf.if %11 {
      %c0_9 = arith.constant 0 : index
      %c0_10 = arith.constant 0 : index
      %12 = vector.load %arg7[%c0_9, %c0_10] : memref<128x128xf32, #tpu.memory_space<vmem>>, vector<128x128xf32>
      %c0_11 = arith.constant 0 : index
      %c0_12 = arith.constant 0 : index
      %13 = vector.load %arg4[%c0_11, %c0_12] : memref<128x128xf32, #tpu.memory_space<vmem>>, vector<128x128xf32>
      %cst_13 = arith.constant dense<0.000000e+00> : vector<128x128xf32>
      %14 = tpu.matmul %12, %13, %cst_13 {dimension_numbers = #tpu.dot_dimension_numbers<[1], [0], [0], [1], [0, 0, 1, 1], [], []>} : vector<128x128xf32>, vector<128x128xf32>, vector<128x128xf32> -> vector<128x128xf32>
      %c0_14 = arith.constant 0 : index
      %c0_15 = arith.constant 0 : index
      %15 = vector.load %arg5[%c0_14, %c0_15] : memref<1x128xf32, #tpu.memory_space<vmem>>, vector<1x128xf32>
      %16 = vector.broadcast %15 : vector<1x128xf32> to vector<128x128xf32>
      %17 = arith.addf %14, %16 : vector<128x128xf32>
      %18 = arith.negf %17 : vector<128x128xf32>
      %19 = math.exp %18 : vector<128x128xf32>
      %cst_16 = arith.constant 1.000000e+00 : f32
      %20 = vector.broadcast %cst_16 : f32 to vector<128x128xf32>
      %21 = arith.addf %20, %19 : vector<128x128xf32>
      %22 = arith.divf %20, %21 : vector<128x128xf32>
      %23 = arith.truncf %22 : vector<128x128xf32> to vector<128x128xbf16>
      %c0_17 = arith.constant 0 : index
      %c0_18 = arith.constant 0 : index
      %24 = vector.load %arg6[%c0_17, %c0_18] : memref<128x128xbf16, #tpu.memory_space<vmem>>, vector<128x128xbf16>
      tpu.vector_store %arg6[%c0_17, %c0_18], %23 {strides = array<i32>} : memref<128x128xbf16, #tpu.memory_space<vmem>>, vector<128x128xbf16>,
    } else {
    }
    return
  }
  func.func @transform_0(%arg0: i32, %arg1: i32) -> (i32, i32) {
    %c0_i32 = arith.constant 0 : i32
    return %arg0, %arg1 : i32, i32
  }
  func.func @transform_1(%arg0: i32, %arg1: i32) -> (i32, i32) {
    %c0_i32 = arith.constant 0 : i32
    %c0_i32_0 = arith.constant 0 : i32
    return %arg1, %c0_i32 : i32, i32
  }
  func.func @transform_2(%arg0: i32, %arg1: i32) -> (i32, i32) {
    %c0_i32 = arith.constant 0 : i32
    %c0_i32_0 = arith.constant 0 : i32
    %c0_i32_1 = arith.constant 0 : i32
    return %c0_i32, %c0_i32_0 : i32, i32
  }
  func.func @transform_3(%arg0: i32, %arg1: i32) -> (i32, i32) {
    %c0_i32 = arith.constant 0 : i32
    %c0_i32_0 = arith.constant 0 : i32
    %c0_i32_1 = arith.constant 0 : i32
    return %c0_i32, %c0_i32_0 : i32, i32
  }
  func.func @transform_4(%arg0: i32, %arg1: i32) -> (i32, i32) {
    %c0_i32 = arith.constant 0 : i32
    %c0_i32_0 = arith.constant 0 : i32
    return %arg0, %c0_i32 : i32, i32
  }
}

module attributes {stable_mosaic.version = 11 : i64} {
  func.func @gcn_layer1_kernel(%arg0: i32, %arg1: i32, %arg2: memref<128x128xbf16, #tpu.memory_space<vmem>>, %arg3: memref<128x16xbf16, #tpu.memory_space<vmem>>, %arg4: memref<16x16xf32, #tpu.memory_space<vmem>>, %arg5: memref<16x128xf32, #tpu.memory_space<vmem>>, %arg6: memref<1x128xf32, #tpu.memory_space<vmem>>, %arg7: memref<128x128xbf16, #tpu.memory_space<vmem>>, %arg8: memref<128x16xf32, #tpu.memory_space<vmem>>) attributes {dimension_semantics = [#tpu.dimension_semantics<parallel>, #tpu.dimension_semantics<arbitrary>], iteration_bounds = array<i64: 2, 2>, scalar_prefetch = 0 : i64, scratch_operands = 1 : i64, tpu.core_type = #tpu.core_type<tc>, window_params = [{transform_indices = @transform_0, window_bounds = array<i64: 128, 128>}, {transform_indices = @transform_1, window_bounds = array<i64: 128, 16>}, {pipeline_mode = #tpu.pipeline_mode<synchronous>, transform_indices = @transform_2, window_bounds = array<i64: 16, 16>}, {pipeline_mode = #tpu.pipeline_mode<synchronous>, transform_indices = @transform_3, window_bounds = array<i64: 16, 128>}, {pipeline_mode = #tpu.pipeline_mode<synchronous>, transform_indices = @transform_4, window_bounds = array<i64: 1, 128>}, {transform_indices = @transform_5, window_bounds = array<i64: 128, 128>}]} {
    %c0_i32 = arith.constant 0 : i32
    %0 = arith.cmpi eq, %arg1, %c0_i32 : i32
    %1 = arith.extui %0 : i1 to i32
    %c0_i32_0 = arith.constant 0 : i32
    %2 = arith.cmpi ne, %1, %c0_i32_0 : i32
    scf.if %2 {
      %cst_9 = arith.constant 0.000000e+00 : f32
      %12 = vector.broadcast %cst_9 : f32 to vector<128x16xf32>
      %c0_10 = arith.constant 0 : index
      %c0_11 = arith.constant 0 : index
      %13 = vector.load %arg8[%c0_10, %c0_11] : memref<128x16xf32, #tpu.memory_space<vmem>>, vector<128x16xf32>
      tpu.vector_store %arg8[%c0_10, %c0_11], %12 {strides = array<i32>} : memref<128x16xf32, #tpu.memory_space<vmem>>, vector<128x16xf32>,
    } else {
    }
    %c0 = arith.constant 0 : index
    %c0_1 = arith.constant 0 : index
    %3 = vector.load %arg8[%c0, %c0_1] : memref<128x16xf32, #tpu.memory_space<vmem>>, vector<128x16xf32>
    %c0_2 = arith.constant 0 : index
    %c0_3 = arith.constant 0 : index
    %4 = vector.load %arg2[%c0_2, %c0_3] : memref<128x128xbf16, #tpu.memory_space<vmem>>, vector<128x128xbf16>
    %c0_4 = arith.constant 0 : index
    %c0_5 = arith.constant 0 : index
    %5 = vector.load %arg3[%c0_4, %c0_5] : memref<128x16xbf16, #tpu.memory_space<vmem>>, vector<128x16xbf16>
    %cst = arith.constant dense<0.000000e+00> : vector<128x16xf32>
    %6 = tpu.matmul %4, %5, %cst {dimension_numbers = #tpu.dot_dimension_numbers<[1], [0], [0], [1], [0, 0, 1, 1], [], []>} : vector<128x128xbf16>, vector<128x16xbf16>, vector<128x16xf32> -> vector<128x16xf32>
    %7 = arith.addf %3, %6 : vector<128x16xf32>
    %c0_6 = arith.constant 0 : index
    %c0_7 = arith.constant 0 : index
    %8 = vector.load %arg8[%c0_6, %c0_7] : memref<128x16xf32, #tpu.memory_space<vmem>>, vector<128x16xf32>
    tpu.vector_store %arg8[%c0_6, %c0_7], %7 {strides = array<i32>} : memref<128x16xf32, #tpu.memory_space<vmem>>, vector<128x16xf32>,
    %c1_i32 = arith.constant 1 : i32
    %9 = arith.cmpi eq, %arg1, %c1_i32 : i32
    %10 = arith.extui %9 : i1 to i32
    %c0_i32_8 = arith.constant 0 : i32
    %11 = arith.cmpi ne, %10, %c0_i32_8 : i32
    scf.if %11 {
      %c0_9 = arith.constant 0 : index
      %c0_10 = arith.constant 0 : index
      %12 = vector.load %arg8[%c0_9, %c0_10] : memref<128x16xf32, #tpu.memory_space<vmem>>, vector<128x16xf32>
      %c0_11 = arith.constant 0 : index
      %c0_12 = arith.constant 0 : index
      %13 = vector.load %arg4[%c0_11, %c0_12] : memref<16x16xf32, #tpu.memory_space<vmem>>, vector<16x16xf32>
      %cst_13 = arith.constant dense<0.000000e+00> : vector<128x16xf32>
      %14 = tpu.matmul %12, %13, %cst_13 {dimension_numbers = #tpu.dot_dimension_numbers<[1], [0], [0], [1], [0, 0, 1, 1], [], []>} : vector<128x16xf32>, vector<16x16xf32>, vector<128x16xf32> -> vector<128x16xf32>
      %cst_14 = arith.constant 0.000000e+00 : f32
      %15 = vector.broadcast %cst_14 : f32 to vector<128x16xf32>
      %16 = arith.maximumf %14, %15 : vector<128x16xf32>
      %c0_15 = arith.constant 0 : index
      %c0_16 = arith.constant 0 : index
      %17 = vector.load %arg5[%c0_15, %c0_16] : memref<16x128xf32, #tpu.memory_space<vmem>>, vector<16x128xf32>
      %cst_17 = arith.constant dense<0.000000e+00> : vector<128x128xf32>
      %18 = tpu.matmul %16, %17, %cst_17 {dimension_numbers = #tpu.dot_dimension_numbers<[1], [0], [0], [1], [0, 0, 1, 1], [], []>} : vector<128x16xf32>, vector<16x128xf32>, vector<128x128xf32> -> vector<128x128xf32>
      %c0_18 = arith.constant 0 : index
      %c0_19 = arith.constant 0 : index
      %19 = vector.load %arg6[%c0_18, %c0_19] : memref<1x128xf32, #tpu.memory_space<vmem>>, vector<1x128xf32>
      %20 = vector.broadcast %19 : vector<1x128xf32> to vector<128x128xf32>
      %21 = arith.addf %18, %20 : vector<128x128xf32>
      %22 = arith.truncf %21 : vector<128x128xf32> to vector<128x128xbf16>
      %c0_20 = arith.constant 0 : index
      %c0_21 = arith.constant 0 : index
      %23 = vector.load %arg7[%c0_20, %c0_21] : memref<128x128xbf16, #tpu.memory_space<vmem>>, vector<128x128xbf16>
      tpu.vector_store %arg7[%c0_20, %c0_21], %22 {strides = array<i32>} : memref<128x128xbf16, #tpu.memory_space<vmem>>, vector<128x128xbf16>,
    } else {
    }
    return
  }
  func.func @transform_0(%arg0: i32, %arg1: i32) -> (i32, i32) {
    %c0_i32 = arith.constant 0 : i32
    return %arg0, %arg1 : i32, i32
  }
  func.func @transform_1(%arg0: i32, %arg1: i32) -> (i32, i32) {
    %c0_i32 = arith.constant 0 : i32
    %c0_i32_0 = arith.constant 0 : i32
    return %arg1, %c0_i32 : i32, i32
  }
  func.func @transform_2(%arg0: i32, %arg1: i32) -> (i32, i32) {
    %c0_i32 = arith.constant 0 : i32
    %c0_i32_0 = arith.constant 0 : i32
    %c0_i32_1 = arith.constant 0 : i32
    return %c0_i32, %c0_i32_0 : i32, i32
  }
  func.func @transform_3(%arg0: i32, %arg1: i32) -> (i32, i32) {
    %c0_i32 = arith.constant 0 : i32
    %c0_i32_0 = arith.constant 0 : i32
    %c0_i32_1 = arith.constant 0 : i32
    return %c0_i32, %c0_i32_0 : i32, i32
  }
  func.func @transform_4(%arg0: i32, %arg1: i32) -> (i32, i32) {
    %c0_i32 = arith.constant 0 : i32
    %c0_i32_0 = arith.constant 0 : i32
    %c0_i32_1 = arith.constant 0 : i32
    return %c0_i32, %c0_i32_0 : i32, i32
  }
  func.func @transform_5(%arg0: i32, %arg1: i32) -> (i32, i32) {
    %c0_i32 = arith.constant 0 : i32
    %c0_i32_0 = arith.constant 0 : i32
    return %arg0, %c0_i32 : i32, i32
  }
}

</mosaic_0001>

<llo_original>
// kernel: evolve_gnn_forward.3
$region0: #{evolve_gnn_forward.3}
  #allocation0 [shape = 'u32[]', space=smem, size = 0x4, offset = 0x4, fixed_abs, tag = 'smem constant byte address 0x4 - core index']
  #allocation1 [shape = 'u32[144,128]{1,0:T(1,128)}', space=vmem, size = 0x12000, scoped, tag = 'internal scratch']
  %s0 = inlined_call_operand.hbm [shape: f32[16,16], index: 0, kind: input, shape index: {}]
  %s1 = inlined_call_operand.hbm [shape: f32[16,64], index: 1, kind: input, shape index: {}]
  %s2 = inlined_call_operand.hbm [shape: f32[1,64], index: 2, kind: input, shape index: {}]
  %s3 = inlined_call_operand.hbm [shape: f32[32,32], index: 3, kind: input, shape index: {}]
  %s4 = inlined_call_operand.hbm [shape: f32[32,128], index: 4, kind: input, shape index: {}]
  %s5 = inlined_call_operand.hbm [shape: f32[1,128], index: 5, kind: input, shape index: {}]
  %s6 = inlined_call_operand.hbm [shape: f32[32,128], index: 6, kind: input, shape index: {}]
  %s7 = inlined_call_operand.vmem [shape: f32[16,16], index: 7, kind: output, shape index: {0}]
  %s8 = inlined_call_operand.vmem [shape: f32[128,128], index: 8, kind: output, shape index: {1}]
  %9 = xla_tuple %s7, %s8
  %s10 = sld [smem:[#allocation0]]
  $region74: #{evolve_gnn_forward.3} parent=0
    _
  %s12 = ssub.s32 1, %s10
  %s13 = scalar_select 0, %s12, %s10
  $region1: #{evolve_gnn_forward.3} parent=0
    #allocation2 [shape = 'u8[8192]{0}', space=vmem, size = 0x2000, scoped, tag = 'input window, operand 0, single buffered']
    #allocation3 [shape = 's32[1]{0}', space=sflag, size = 0x4, scoped, tag = 'scoped memory for evolve_gnn_forward.3']
    #allocation4 [shape = 'u8[8192]{0}', space=vmem, size = 0x2000, scoped, tag = 'input window, operand 1, single buffered']
    #allocation5 [shape = 's32[1]{0}', space=sflag, size = 0x4, scoped, tag = 'scoped memory for evolve_gnn_forward.3']
    #allocation6 [shape = 'u8[512]{0}', space=vmem, size = 0x400, scoped, tag = 'input window, operand 2, single buffered']
    #allocation7 [shape = 'u8[16384]{0}', space=vmem, size = 0x4000, scoped, tag = 'input window, operand 3, single buffered']
    #allocation8 [shape = 's32[1]{0}', space=sflag, size = 0x4, scoped, tag = 'scoped memory for evolve_gnn_forward.3']
    #allocation9 [shape = 'u8[16384]{0}', space=vmem, size = 0x4000, scoped, tag = 'input window, operand 4, single buffered']
    #allocation10 [shape = 'u8[512]{0}', space=vmem, size = 0x400, scoped, tag = 'input window, operand 5, single buffered']
    #allocation11 [shape = 's32[1]{0}', space=sflag, size = 0x4, scoped, tag = 'scoped memory for evolve_gnn_forward.3']
    #allocation12 [shape = 'u8[16384]{0}', space=vmem, size = 0x4000, scoped, tag = 'input window, operand 6, single buffered']
    %14 = vsyncpa [#allocation3], 0
    %15 = vsyncpa [#allocation5], 0
    %16 = vsyncpa [#allocation8], 0
    %17 = vsyncpa [#allocation11], 0
    // Predicated region
    $region2: #{evolve_gnn_forward.3} parent=1 // pred_check
      _
    $region3: #{evolve_gnn_forward.3} parent=1 // pred_check_branch
      %19 = sbr.rel (0) target = $region5
    $region4: #{evolve_gnn_forward.3} parent=1 // pred_region
      %s21 = ssub.s32 256, 256
      %22 = vsyncadd [#allocation3], %s21
      %s23 = sshll.u32 [#allocation2], 4
      %s24 = int_to_ptr.vmem [resolvable:$true] %s23
      %29 = dma.hbm_to_vmem [thread:$0]  %s0, 256, %s24, [#allocation3], 128, 128, 8
    $region5: #{evolve_gnn_forward.3} parent=1 // pred_fallthru
      _
    // Predicated region
    $region6: #{evolve_gnn_forward.3} parent=1 // pred_check
      _
    $region7: #{evolve_gnn_forward.3} parent=1 // pred_check_branch
      %31 = sbr.rel (0) target = $region9
    $region8: #{evolve_gnn_forward.3} parent=1 // pred_region
      %s33 = ssub.s32 256, 256
      %34 = vsyncadd [#allocation5], %s33
      %s35 = sshll.u32 [#allocation4], 4
      %s36 = int_to_ptr.vmem [resolvable:$true] %s35
      %41 = dma.hbm_to_vmem [thread:$0]  %s1, 256, %s36, [#allocation5], 128, 128, 8
    $region9: #{evolve_gnn_forward.3} parent=1 // pred_fallthru
      _
    // Predicated region
    $region10: #{evolve_gnn_forward.3} parent=1 // pred_check
      _
    $region11: #{evolve_gnn_forward.3} parent=1 // pred_check_branch
      %43 = sbr.rel (0) target = $region13
    $region12: #{evolve_gnn_forward.3} parent=1 // pred_region
      %s45 = ssub.s32 16, 16
      %46 = vsyncadd [#allocation5], %s45
      %s48 = sshll.u32 [#allocation6], 4
      %s49 = int_to_ptr.vmem [resolvable:$true] %s48
      %51 = dma.hbm_to_vmem [thread:$0]  %s2, 16, %s49, [#allocation5]
    $region13: #{evolve_gnn_forward.3} parent=1 // pred_fallthru
      _
    // Predicated region
    $region14: #{evolve_gnn_forward.3} parent=1 // pred_check
      _
    $region15: #{evolve_gnn_forward.3} parent=1 // pred_check_branch
      %53 = sbr.rel (0) target = $region17
    $region16: #{evolve_gnn_forward.3} parent=1 // pred_region
      %s55 = ssub.s32 512, 512
      %56 = vsyncadd [#allocation8], %s55
      %s57 = sshll.u32 [#allocation7], 4
      %s58 = int_to_ptr.vmem [resolvable:$true] %s57
      %63 = dma.hbm_to_vmem [thread:$0]  %s3, 512, %s58, [#allocation8], 128, 128, 8
    $region17: #{evolve_gnn_forward.3} parent=1 // pred_fallthru
      _
    // Predicated region
    $region18: #{evolve_gnn_forward.3} parent=1 // pred_check
      _
    $region19: #{evolve_gnn_forward.3} parent=1 // pred_check_branch
      %65 = sbr.rel (0) target = $region21
    $region20: #{evolve_gnn_forward.3} parent=1 // pred_region
      %s67 = ssub.s32 512, 512
      %68 = vsyncadd [#allocation8], %s67
      %s69 = sshll.u32 [#allocation9], 4
      %s70 = int_to_ptr.vmem [resolvable:$true] %s69
      %75 = dma.hbm_to_vmem [thread:$0]  %s4, 512, %s70, [#allocation8], 128, 128, 8
    $region21: #{evolve_gnn_forward.3} parent=1 // pred_fallthru
      _
    // Predicated region
    $region22: #{evolve_gnn_forward.3} parent=1 // pred_check
      _
    $region23: #{evolve_gnn_forward.3} parent=1 // pred_check_branch
      %77 = sbr.rel (0) target = $region25
    $region24: #{evolve_gnn_forward.3} parent=1 // pred_region
      %s79 = ssub.s32 16, 16
      %80 = vsyncadd [#allocation11], %s79
      %s82 = sshll.u32 [#allocation10], 4
      %s83 = int_to_ptr.vmem [resolvable:$true] %s82
      %85 = dma.hbm_to_vmem [thread:$0]  %s5, 16, %s83, [#allocation11]
    $region25: #{evolve_gnn_forward.3} parent=1 // pred_fallthru
      _
    // Predicated region
    $region26: #{evolve_gnn_forward.3} parent=1 // pred_check
      _
    $region27: #{evolve_gnn_forward.3} parent=1 // pred_check_branch
      %87 = sbr.rel (0) target = $region29
    $region28: #{evolve_gnn_forward.3} parent=1 // pred_region
      %s89 = ssub.s32 512, 512
      %90 = vsyncadd [#allocation11], %s89
      %s91 = sshll.u32 [#allocation12], 4
      %s92 = int_to_ptr.vmem [resolvable:$true] %s91
      %97 = dma.hbm_to_vmem [thread:$0]  %s6, 512, %s92, [#allocation11], 128, 128, 8
    $region29: #{evolve_gnn_forward.3} parent=1 // pred_fallthru
      _
    // Predicated region
    $region30: #{evolve_gnn_forward.3} parent=1 // pred_check
      _
    $region31: #{evolve_gnn_forward.3} parent=1 // pred_check_branch
      %99 = sbr.rel (0) target = $region33
    $region32: #{evolve_gnn_forward.3} parent=1 // pred_region
      %100 = dma.done [#allocation3], 256
    $region33: #{evolve_gnn_forward.3} parent=1 // pred_fallthru
      _
    // Predicated region
    $region34: #{evolve_gnn_forward.3} parent=1 // pred_check
      _
    $region35: #{evolve_gnn_forward.3} parent=1 // pred_check_branch
      %102 = sbr.rel (0) target = $region37
    $region36: #{evolve_gnn_forward.3} parent=1 // pred_region
      %103 = dma.done [#allocation5], 256
    $region37: #{evolve_gnn_forward.3} parent=1 // pred_fallthru
      _
    // Predicated region
    $region38: #{evolve_gnn_forward.3} parent=1 // pred_check
      _
    $region39: #{evolve_gnn_forward.3} parent=1 // pred_check_branch
      %105 = sbr.rel (0) target = $region41
    $region40: #{evolve_gnn_forward.3} parent=1 // pred_region
      %106 = dma.done [#allocation5], 16
    $region41: #{evolve_gnn_forward.3} parent=1 // pred_fallthru
      _
    // Predicated region
    $region42: #{evolve_gnn_forward.3} parent=1 // pred_check
      _
    $region43: #{evolve_gnn_forward.3} parent=1 // pred_check_branch
      %108 = sbr.rel (0) target = $region45
    $region44: #{evolve_gnn_forward.3} parent=1 // pred_region
      %109 = dma.done [#allocation8], 512
    $region45: #{evolve_gnn_forward.3} parent=1 // pred_fallthru
      _
    // Predicated region
    $region46: #{evolve_gnn_forward.3} parent=1 // pred_check
      _
    $region47: #{evolve_gnn_forward.3} parent=1 // pred_check_branch
      %111 = sbr.rel (0) target = $region49
    $region48: #{evolve_gnn_forward.3} parent=1 // pred_region
      %112 = dma.done [#allocation8], 512
    $region49: #{evolve_gnn_forward.3} parent=1 // pred_fallthru
      _
    // Predicated region
    $region50: #{evolve_gnn_forward.3} parent=1 // pred_check
      _
    $region51: #{evolve_gnn_forward.3} parent=1 // pred_check_branch
      %114 = sbr.rel (0) target = $region53
    $region52: #{evolve_gnn_forward.3} parent=1 // pred_region
      %115 = dma.done [#allocation11], 16
    $region53: #{evolve_gnn_forward.3} parent=1 // pred_fallthru
      _
    // Predicated region
    $region54: #{evolve_gnn_forward.3} parent=1 // pred_check
      _
    $region55: #{evolve_gnn_forward.3} parent=1 // pred_check_branch
      %117 = sbr.rel (0) target = $region57
    $region56: #{evolve_gnn_forward.3} parent=1 // pred_region
      %118 = dma.done [#allocation11], 512
    $region57: #{evolve_gnn_forward.3} parent=1 // pred_fallthru
      _
    %v119 = vld [vmem:[#allocation2] sm:$0xff]
    %v120 = vld [vmem:[#allocation2 + $0x8] sm:$0xff]
    %v121 = vld [vmem:[#allocation4] sm:$0xff]
    %v122 = vld [vmem:[#allocation4 + $0x8] sm:$0xff]
    %v123 = vld [vmem:[#allocation6] sm:$0x1]
    %v125 = vlaneseq
    %v126 = vshrl.u32 %v125, 7
    %v127 = vsub.s32 0, %v126
    %v128 = vrot.slane %v123, %v127
    %vm130 = vcmask 130048
    %v132 = vsel %vm130, %v119, 0
    %v135 = vsel %vm130, %v120, 0
    %137 = vmatprep.subr.mxu0 0.0
    %138 = vmatpush1.msra.mxu0 %v121
    %139 = vmatprep.subr.mxu0 0.0
    %140 = vmatpush1.msra.mxu0 %v122
    %141 = vmatprep.subr.mxu0 0.0
    %142 = vmatpush1.msra.mxu0 0.0
    %143 = vmatprep.subr.mxu0 0.0
    %144 = vmatpush1.msra.mxu0 0.0
    %145 = vmatprep.subr.mxu0 0.0
    %146 = vmatpush1.msra.mxu0 0.0
    %147 = vmatprep.subr.mxu0 0.0
    %148 = vmatpush1.msra.mxu0 0.0
    %149 = vmatprep.subr.mxu0 0.0
    %150 = vmatpush1.msra.mxu0 0.0
    %151 = vmatprep.subr.mxu0 0.0
    %152 = vmatpush1.msra.mxu0 0.0
    %153 = vmatprep.subr.mxu0 0.0
    %154 = vmatpush1.msra.mxu0 0.0
    %155 = vmatprep.subr.mxu0 0.0
    %156 = vmatpush1.msra.mxu0 0.0
    %157 = vmatprep.subr.mxu0 0.0
    %158 = vmatpush1.msra.mxu0 0.0
    %159 = vmatprep.subr.mxu0 0.0
    %160 = vmatpush1.msra.mxu0 0.0
    %161 = vmatprep.subr.mxu0 0.0
    %162 = vmatpush1.msra.mxu0 0.0
    %163 = vmatprep.subr.mxu0 0.0
    %164 = vmatpush1.msra.mxu0 0.0
    %165 = vmatprep.subr.mxu0 0.0
    %166 = vmatpush1.msra.mxu0 0.0
    %167 = vmatprep.subr.mxu0 0.0
    %168 = vmatpush1.msra.mxu0 0.0
    %169 = vmatprep.subr.mxu0 0.0
    %170 = vmatpush1.msra.mxu0 0.0
    %171 = vmatprep.subr.mxu0 0.0
    %172 = vmatpush1.msra.mxu0 0.0
    %173 = vmatprep.subr.mxu0 0.0
    %174 = vmatpush1.msra.mxu0 0.0
    %175 = vmatprep.subr.mxu0 0.0
    %176 = vmatpush1.msra.mxu0 0.0
    %177 = vmatprep.subr.mxu0 0.0
    %178 = vmatpush1.msra.mxu0 0.0
    %179 = vmatprep.subr.mxu0 0.0
    %180 = vmatpush1.msra.mxu0 0.0
    %181 = vmatprep.subr.mxu0 0.0
    %182 = vmatpush1.msra.mxu0 0.0
    %183 = vmatprep.subr.mxu0 0.0
    %184 = vmatpush1.msra.mxu0 0.0
    %185 = vmatprep.subr.mxu0 0.0
    %186 = vmatpush1.msra.mxu0 0.0
    %187 = vmatprep.subr.mxu0 0.0
    %188 = vmatpush1.msra.mxu0 0.0
    %189 = vmatprep.subr.mxu0 0.0
    %190 = vmatpush1.msra.mxu0 0.0
    %191 = vmatprep.subr.mxu0 0.0
    %192 = vmatpush1.msra.mxu0 0.0
    %193 = vmatprep.subr.mxu0 0.0
    %194 = vmatpush1.msra.mxu0 0.0
    %195 = vmatprep.subr.mxu0 0.0
    %196 = vmatpush1.msra.mxu0 0.0
    %197 = vmatprep.subr.mxu0 0.0
    %198 = vmatpush1.msra.mxu0 0.0
    %199 = vmatprep.subr.mxu0 0.0
    %200 = vmatpush1.msra.mxu0 0.0
    %201 = vmatprep.mubr.f32.mxu0 0.0
    %202 = vmatmul.mubr.f32.gmra.mrb[0].mxu0 %v132
    %v203 = vpop.f32.mrb[0].mxu0
    %v204 = vadd.f32 %v128, %v203
    %v205 = vpop.f32.mrb[0].mxu0
    %206 = vmatprep.mubr.f32.mxu0 0.0
    %207 = vmatmul.mubr.f32.gmra.mrb[0].mxu0 %v135
    %v208 = vpop.f32.mrb[0].mxu0
    %v209 = vadd.f32 %v128, %v208
    %v210 = vpop.f32.mrb[0].mxu0
    %211 = vdwg.mxu0
    %v212 = vxor.u32 %v204, 2147483648
    %v213 = vxor.u32 %v209, 2147483648
    %v214 = vmul.f32 %v212, 1.442695
    %v215 = vpow.pop %v214
    %v216 = vmul.f32 %v213, 1.442695
    %v217 = vpow.pop %v216
    %v218 = vadd.f32 %v215, 1.0
    %v219 = vadd.f32 %v217, 1.0
    %v220 = vrcp.pop %v218
    %v221 = vmul.f32 1.0, %v220
    %v222 = vrcp.pop %v219
    %v223 = vmul.f32 1.0, %v222
    %226 = vrot.lane.b32.xlu0 %v204, 80
    %v227 = vpop.permute.xlu0 %226
    %228 = vrot.lane.b32.xlu0 %v209, 80
    %v229 = vpop.permute.xlu0 %228
    %v232 = vmul.f32 %v221, %v227
    %v233 = vmul.f32 %v223, %v229
    %236 = vrot.lane.b32.xlu0 %v232, 32
    %v237 = vpop.permute.xlu0 %236
    %238 = vrot.lane.b32.xlu0 %v233, 32
    %v239 = vpop.permute.xlu0 %238
    %v242 = vadd.f32 %v204, %v237
    %v243 = vadd.f32 %v209, %v239
    %v244 = vtanh.pop %v242
    %v245 = vtanh.pop %v243
    %v246 = vsub.f32 1.0, %v221
    %v247 = vsub.f32 1.0, %v223
    %250 = vrot.lane.b32.xlu0 %v244, 112
    %v251 = vpop.permute.xlu0 %250
    %252 = vrot.lane.b32.xlu0 %v245, 112
    %v253 = vpop.permute.xlu0 %252
    %v256 = vmul.f32 %v246, %v251
    %v257 = vmul.f32 %v247, %v253
    %258 = vrot.lane.b32.xlu0 %v119, 16
    %v259 = vpop.permute.xlu0 %258
    %260 = vrot.lane.b32.xlu0 %v120, 16
    %v261 = vpop.permute.xlu0 %260
    %v264 = vmul.f32 %v221, %v259
    %v265 = vmul.f32 %v223, %v261
    %v266 = vadd.f32 %v256, %v264
    %v267 = vadd.f32 %v257, %v265
    %270 = vrot.lane.b32.xlu0 %v266, 112
    %v271 = vpop.permute.xlu0 %270
    %272 = vrot.lane.b32.xlu0 %v267, 112
    %v273 = vpop.permute.xlu0 %272
    %276 = vst.msk [vmem:[%s7] sm:$0xff] %vm130, %v271
    %277 = vst.msk [vmem:[%s7 + $0x8] sm:$0xff] %vm130, %v273
    %v278 = vld [vmem:[#allocation7] sm:$0xff]
    %v279 = vld [vmem:[#allocation7 + $0x8] sm:$0xff]
    %v280 = vld [vmem:[#allocation7 + $0x10] sm:$0xff]
    %v281 = vld [vmem:[#allocation7 + $0x18] sm:$0xff]
    %v282 = vld [vmem:[#allocation9] sm:$0xff]
    %v283 = vld [vmem:[#allocation9 + $0x8] sm:$0xff]
    %v284 = vld [vmem:[#allocation9 + $0x10] sm:$0xff]
    %v285 = vld [vmem:[#allocation9 + $0x18] sm:$0xff]
    %v286 = vld [vmem:[#allocation10] sm:$0x1]
    %v288 = vlaneseq
    %v289 = vshrl.u32 %v288, 7
    %v290 = vsub.s32 0, %v289
    %v291 = vrot.slane %v286, %v290
    %vm293 = vcmask 261120
    %v295 = vsel %vm293, %v278, 0
    %v298 = vsel %vm293, %v279, 0
    %v301 = vsel %vm293, %v280, 0
    %v304 = vsel %vm293, %v281, 0
    %306 = vmatprep.subr.mxu0 0.0
    %307 = vmatpush1.msra.mxu0 %v282
    %308 = vmatprep.subr.mxu0 0.0
    %309 = vmatpush1.msra.mxu0 %v283
    %310 = vmatprep.subr.mxu0 0.0
    %311 = vmatpush1.msra.mxu0 %v284
    %312 = vmatprep.subr.mxu0 0.0
    %313 = vmatpush1.msra.mxu0 %v285
    %314 = vmatprep.subr.mxu0 0.0
    %315 = vmatpush1.msra.mxu0 0.0
    %316 = vmatprep.subr.mxu0 0.0
    %317 = vmatpush1.msra.mxu0 0.0
    %318 = vmatprep.subr.mxu0 0.0
    %319 = vmatpush1.msra.mxu0 0.0
    %320 = vmatprep.subr.mxu0 0.0
    %321 = vmatpush1.msra.mxu0 0.0
    %322 = vmatprep.subr.mxu0 0.0
    %323 = vmatpush1.msra.mxu0 0.0
    %324 = vmatprep.subr.mxu0 0.0
    %325 = vmatpush1.msra.mxu0 0.0
    %326 = vmatprep.subr.mxu0 0.0
    %327 = vmatpush1.msra.mxu0 0.0
    %328 = vmatprep.subr.mxu0 0.0
    %329 = vmatpush1.msra.mxu0 0.0
    %330 = vmatprep.subr.mxu0 0.0
    %331 = vmatpush1.msra.mxu0 0.0
    %332 = vmatprep.subr.mxu0 0.0
    %333 = vmatpush1.msra.mxu0 0.0
    %334 = vmatprep.subr.mxu0 0.0
    %335 = vmatpush1.msra.mxu0 0.0
    %336 = vmatprep.subr.mxu0 0.0
    %337 = vmatpush1.msra.mxu0 0.0
    %338 = vmatprep.subr.mxu0 0.0
    %339 = vmatpush1.msra.mxu0 0.0
    %340 = vmatprep.subr.mxu0 0.0
    %341 = vmatpush1.msra.mxu0 0.0
    %342 = vmatprep.subr.mxu0 0.0
    %343 = vmatpush1.msra.mxu0 0.0
    %344 = vmatprep.subr.mxu0 0.0
    %345 = vmatpush1.msra.mxu0 0.0
    %346 = vmatprep.subr.mxu0 0.0
    %347 = vmatpush1.msra.mxu0 0.0
    %348 = vmatprep.subr.mxu0 0.0
    %349 = vmatpush1.msra.mxu0 0.0
    %350 = vmatprep.subr.mxu0 0.0
    %351 = vmatpush1.msra.mxu0 0.0
    %352 = vmatprep.subr.mxu0 0.0
    %353 = vmatpush1.msra.mxu0 0.0
    %354 = vmatprep.subr.mxu0 0.0
    %355 = vmatpush1.msra.mxu0 0.0
    %356 = vmatprep.subr.mxu0 0.0
    %357 = vmatpush1.msra.mxu0 0.0
    %358 = vmatprep.subr.mxu0 0.0
    %359 = vmatpush1.msra.mxu0 0.0
    %360 = vmatprep.subr.mxu0 0.0
    %361 = vmatpush1.msra.mxu0 0.0
    %362 = vmatprep.subr.mxu0 0.0
    %363 = vmatpush1.msra.mxu0 0.0
    %364 = vmatprep.subr.mxu0 0.0
    %365 = vmatpush1.msra.mxu0 0.0
    %366 = vmatprep.subr.mxu0 0.0
    %367 = vmatpush1.msra.mxu0 0.0
    %368 = vmatprep.subr.mxu0 0.0
    %369 = vmatpush1.msra.mxu0 0.0
    %370 = vmatprep.mubr.f32.mxu0 0.0
    %371 = vmatmul.mubr.f32.gmra.mrb[0].mxu0 %v295
    %v372 = vpop.f32.mrb[0].mxu0
    %v373 = vadd.f32 %v291, %v372
    %v374 = vpop.f32.mrb[0].mxu0
    %375 = vmatprep.mubr.f32.mxu0 0.0
    %376 = vmatmul.mubr.f32.gmra.mrb[0].mxu0 %v298
    %v377 = vpop.f32.mrb[0].mxu0
    %v378 = vadd.f32 %v291, %v377
    %v379 = vpop.f32.mrb[0].mxu0
    %380 = vmatprep.mubr.f32.mxu0 0.0
    %381 = vmatmul.mubr.f32.gmra.mrb[0].mxu0 %v301
    %v382 = vpop.f32.mrb[0].mxu0
    %v383 = vadd.f32 %v291, %v382
    %v384 = vpop.f32.mrb[0].mxu0
    %385 = vmatprep.mubr.f32.mxu0 0.0
    %386 = vmatmul.mubr.f32.gmra.mrb[0].mxu0 %v304
    %v387 = vpop.f32.mrb[0].mxu0
    %v388 = vadd.f32 %v291, %v387
    %v389 = vpop.f32.mrb[0].mxu0
    %390 = vdwg.mxu0
    %v391 = vxor.u32 %v373, 2147483648
    %v392 = vxor.u32 %v378, 2147483648
    %v393 = vxor.u32 %v383, 2147483648
    %v394 = vxor.u32 %v388, 2147483648
    %v395 = vmul.f32 %v391, 1.442695
    %v396 = vpow.pop %v395
    %v397 = vmul.f32 %v392, 1.442695
    %v398 = vpow.pop %v397
    %v399 = vmul.f32 %v393, 1.442695
    %v400 = vpow.pop %v399
    %v401 = vmul.f32 %v394, 1.442695
    %v402 = vpow.pop %v401
    %v403 = vadd.f32 %v396, 1.0
    %v404 = vadd.f32 %v398, 1.0
    %v405 = vadd.f32 %v400, 1.0
    %v406 = vadd.f32 %v402, 1.0
    %v407 = vrcp.pop %v403
    %v408 = vmul.f32 1.0, %v407
    %v409 = vrcp.pop %v404
    %v410 = vmul.f32 1.0, %v409
    %v411 = vrcp.pop %v405
    %v412 = vmul.f32 1.0, %v411
    %v413 = vrcp.pop %v406
    %v414 = vmul.f32 1.0, %v413
    %419 = vrot.lane.b32.xlu0 %v373, 32
    %v420 = vpop.permute.xlu0 %419
    %421 = vrot.lane.b32.xlu0 %v378, 32
    %v422 = vpop.permute.xlu0 %421
    %423 = vrot.lane.b32.xlu0 %v383, 32
    %v424 = vpop.permute.xlu0 %423
    %425 = vrot.lane.b32.xlu0 %v388, 32
    %v426 = vpop.permute.xlu0 %425
    %v431 = vmul.f32 %v408, %v420
    %v432 = vmul.f32 %v410, %v422
    %v433 = vmul.f32 %v412, %v424
    %v434 = vmul.f32 %v414, %v426
    %439 = vrot.lane.b32.xlu0 %v431, 64
    %v440 = vpop.permute.xlu0 %439
    %441 = vrot.lane.b32.xlu0 %v432, 64
    %v442 = vpop.permute.xlu0 %441
    %443 = vrot.lane.b32.xlu0 %v433, 64
    %v444 = vpop.permute.xlu0 %443
    %445 = vrot.lane.b32.xlu0 %v434, 64
    %v446 = vpop.permute.xlu0 %445
    %v451 = vadd.f32 %v373, %v440
    %v452 = vadd.f32 %v378, %v442
    %v453 = vadd.f32 %v383, %v444
    %v454 = vadd.f32 %v388, %v446
    %v455 = vtanh.pop %v451
    %v456 = vtanh.pop %v452
    %v457 = vtanh.pop %v453
    %v458 = vtanh.pop %v454
    %v459 = vsub.f32 1.0, %v408
    %v460 = vsub.f32 1.0, %v410
    %v461 = vsub.f32 1.0, %v412
    %v462 = vsub.f32 1.0, %v414
    %467 = vrot.lane.b32.xlu0 %v455, 96
    %v468 = vpop.permute.xlu0 %467
    %469 = vrot.lane.b32.xlu0 %v456, 96
    %v470 = vpop.permute.xlu0 %469
    %471 = vrot.lane.b32.xlu0 %v457, 96
    %v472 = vpop.permute.xlu0 %471
    %473 = vrot.lane.b32.xlu0 %v458, 96
    %v474 = vpop.permute.xlu0 %473
    %v479 = vmul.f32 %v459, %v468
    %v480 = vmul.f32 %v460, %v470
    %v481 = vmul.f32 %v461, %v472
    %v482 = vmul.f32 %v462, %v474
    %483 = vrot.lane.b32.xlu0 %v278, 32
    %v484 = vpop.permute.xlu0 %483
    %485 = vrot.lane.b32.xlu0 %v279, 32
    %v486 = vpop.permute.xlu0 %485
    %487 = vrot.lane.b32.xlu0 %v280, 32
    %v488 = vpop.permute.xlu0 %487
    %489 = vrot.lane.b32.xlu0 %v281, 32
    %v490 = vpop.permute.xlu0 %489
    %v495 = vmul.f32 %v408, %v484
    %v496 = vmul.f32 %v410, %v486
    %v497 = vmul.f32 %v412, %v488
    %v498 = vmul.f32 %v414, %v490
    %v499 = vadd.f32 %v479, %v495
    %v500 = vadd.f32 %v480, %v496
    %v501 = vadd.f32 %v481, %v497
    %v502 = vadd.f32 %v482, %v498
    %v503 = vld [vmem:[#allocation12] sm:$0xff]
    %v504 = vld [vmem:[#allocation12 + $0x8] sm:$0xff]
    %v505 = vld [vmem:[#allocation12 + $0x10] sm:$0xff]
    %v506 = vld [vmem:[#allocation12 + $0x18] sm:$0xff]
    %511 = vrot.lane.b32.xlu0 %v499, 96
    %v512 = vpop.permute.xlu0 %511
    %513 = vrot.lane.b32.xlu0 %v500, 96
    %v514 = vpop.permute.xlu0 %513
    %515 = vrot.lane.b32.xlu0 %v501, 96
    %v516 = vpop.permute.xlu0 %515
    %517 = vrot.lane.b32.xlu0 %v502, 96
    %v518 = vpop.permute.xlu0 %517
    %v519 = vsel %vm293, %v512, 0
    %v521 = vsel %vm293, %v514, 0
    %v523 = vsel %vm293, %v516, 0
    %v525 = vsel %vm293, %v518, 0
    %527 = vmatprep.subr.mxu0 0.0
    %528 = vmatpush1.msra.mxu0 %v503
    %529 = vmatprep.subr.mxu0 0.0
    %530 = vmatpush1.msra.mxu0 %v504
    %531 = vmatprep.subr.mxu0 0.0
    %532 = vmatpush1.msra.mxu0 %v505
    %533 = vmatprep.subr.mxu0 0.0
    %534 = vmatpush1.msra.mxu0 %v506
    %535 = vmatprep.subr.mxu0 0.0
    %536 = vmatpush1.msra.mxu0 0.0
    %537 = vmatprep.subr.mxu0 0.0
    %538 = vmatpush1.msra.mxu0 0.0
    %539 = vmatprep.subr.mxu0 0.0
    %540 = vmatpush1.msra.mxu0 0.0
    %541 = vmatprep.subr.mxu0 0.0
    %542 = vmatpush1.msra.mxu0 0.0
    %543 = vmatprep.subr.mxu0 0.0
    %544 = vmatpush1.msra.mxu0 0.0
    %545 = vmatprep.subr.mxu0 0.0
    %546 = vmatpush1.msra.mxu0 0.0
    %547 = vmatprep.subr.mxu0 0.0
    %548 = vmatpush1.msra.mxu0 0.0
    %549 = vmatprep.subr.mxu0 0.0
    %550 = vmatpush1.msra.mxu0 0.0
    %551 = vmatprep.subr.mxu0 0.0
    %552 = vmatpush1.msra.mxu0 0.0
    %553 = vmatprep.subr.mxu0 0.0
    %554 = vmatpush1.msra.mxu0 0.0
    %555 = vmatprep.subr.mxu0 0.0
    %556 = vmatpush1.msra.mxu0 0.0
    %557 = vmatprep.subr.mxu0 0.0
    %558 = vmatpush1.msra.mxu0 0.0
    %559 = vmatprep.subr.mxu0 0.0
    %560 = vmatpush1.msra.mxu0 0.0
    %561 = vmatprep.subr.mxu0 0.0
    %562 = vmatpush1.msra.mxu0 0.0
    %563 = vmatprep.subr.mxu0 0.0
    %564 = vmatpush1.msra.mxu0 0.0
    %565 = vmatprep.subr.mxu0 0.0
    %566 = vmatpush1.msra.mxu0 0.0
    %567 = vmatprep.subr.mxu0 0.0
    %568 = vmatpush1.msra.mxu0 0.0
    %569 = vmatprep.subr.mxu0 0.0
    %570 = vmatpush1.msra.mxu0 0.0
    %571 = vmatprep.subr.mxu0 0.0
    %572 = vmatpush1.msra.mxu0 0.0
    %573 = vmatprep.subr.mxu0 0.0
    %574 = vmatpush1.msra.mxu0 0.0
    %575 = vmatprep.subr.mxu0 0.0
    %576 = vmatpush1.msra.mxu0 0.0
    %577 = vmatprep.subr.mxu0 0.0
    %578 = vmatpush1.msra.mxu0 0.0
    %579 = vmatprep.subr.mxu0 0.0
    %580 = vmatpush1.msra.mxu0 0.0
    %581 = vmatprep.subr.mxu0 0.0
    %582 = vmatpush1.msra.mxu0 0.0
    %583 = vmatprep.subr.mxu0 0.0
    %584 = vmatpush1.msra.mxu0 0.0
    %585 = vmatprep.subr.mxu0 0.0
    %586 = vmatpush1.msra.mxu0 0.0
    %587 = vmatprep.subr.mxu0 0.0
    %588 = vmatpush1.msra.mxu0 0.0
    %589 = vmatprep.subr.mxu0 0.0
    %590 = vmatpush1.msra.mxu0 0.0
    %591 = vmatprep.mubr.f32.mxu0 0.0
    %592 = vmatmul.mubr.f32.gmra.mrb[0].mxu0 %v519
    %v593 = vpop.f32.mrb[0].mxu0
    %v594 = vadd.f32 0.0, %v593
    %v595 = vpop.f32.mrb[0].mxu0
    %596 = vmatprep.mubr.f32.mxu0 0.0
    %597 = vmatmul.mubr.f32.gmra.mrb[0].mxu0 %v521
    %v598 = vpop.f32.mrb[0].mxu0
    %v599 = vadd.f32 0.0, %v598
    %v600 = vpop.f32.mrb[0].mxu0
    %601 = vmatprep.mubr.f32.mxu0 0.0
    %602 = vmatmul.mubr.f32.gmra.mrb[0].mxu0 %v523
    %v603 = vpop.f32.mrb[0].mxu0
    %v604 = vadd.f32 0.0, %v603
    %v605 = vpop.f32.mrb[0].mxu0
    %606 = vmatprep.mubr.f32.mxu0 0.0
    %607 = vmatmul.mubr.f32.gmra.mrb[0].mxu0 %v525
    %v608 = vpop.f32.mrb[0].mxu0
    %v609 = vadd.f32 0.0, %v608
    %v610 = vpop.f32.mrb[0].mxu0
    %611 = vdwg.mxu0
    %612 = vst [vmem:[%s8] sm:$0xff] 0.0
    %613 = vst [vmem:[%s8 + $0x8] sm:$0xff] 0.0
    %614 = vst [vmem:[%s8 + $0x10] sm:$0xff] 0.0
    %615 = vst [vmem:[%s8 + $0x18] sm:$0xff] 0.0
    %616 = vst [vmem:[%s8 + $0x20] sm:$0xff] 0.0
    %617 = vst [vmem:[%s8 + $0x28] sm:$0xff] 0.0
    %618 = vst [vmem:[%s8 + $0x30] sm:$0xff] 0.0
    %619 = vst [vmem:[%s8 + $0x38] sm:$0xff] 0.0
    %620 = vst [vmem:[%s8 + $0x40] sm:$0xff] 0.0
    %621 = vst [vmem:[%s8 + $0x48] sm:$0xff] 0.0
    %622 = vst [vmem:[%s8 + $0x50] sm:$0xff] 0.0
    %623 = vst [vmem:[%s8 + $0x58] sm:$0xff] 0.0
    %624 = vst [vmem:[%s8 + $0x60] sm:$0xff] 0.0
    %625 = vst [vmem:[%s8 + $0x68] sm:$0xff] 0.0
    %626 = vst [vmem:[%s8 + $0x70] sm:$0xff] 0.0
    %627 = vst [vmem:[%s8 + $0x78] sm:$0xff] 0.0
    %628 = vst [vmem:[%s8] sm:$0xff] %v594
    %629 = vst [vmem:[%s8 + $0x8] sm:$0xff] %v599
    %630 = vst [vmem:[%s8 + $0x10] sm:$0xff] %v604
    %631 = vst [vmem:[%s8 + $0x18] sm:$0xff] %v609
    // Predicated region
    $region58: #{evolve_gnn_forward.3} parent=1 // pred_check
      _
    $region59: #{evolve_gnn_forward.3} parent=1 // pred_check_branch
      %633 = sbr.rel (0) target = $region61
    $region60: #{evolve_gnn_forward.3} parent=1 // pred_region
      _
    $region61: #{evolve_gnn_forward.3} parent=1 // pred_fallthru
      _
    // Predicated region
    $region62: #{evolve_gnn_forward.3} parent=1 // pred_check
      _
    $region63: #{evolve_gnn_forward.3} parent=1 // pred_check_branch
      %635 = sbr.rel (0) target = $region65
    $region64: #{evolve_gnn_forward.3} parent=1 // pred_region
      _
    $region65: #{evolve_gnn_forward.3} parent=1 // pred_fallthru
      _
    // Predicated region
    $region66: #{evolve_gnn_forward.3} parent=1 // pred_check
      _
    $region67: #{evolve_gnn_forward.3} parent=1 // pred_check_branch
      %637 = sbr.rel (0) target = $region69
    $region68: #{evolve_gnn_forward.3} parent=1 // pred_region
      _
    $region69: #{evolve_gnn_forward.3} parent=1 // pred_fallthru
      _
    // Predicated region
    $region70: #{evolve_gnn_forward.3} parent=1 // pred_check
      _
    $region71: #{evolve_gnn_forward.3} parent=1 // pred_check_branch
      %639 = sbr.rel (0) target = $region73
    $region72: #{evolve_gnn_forward.3} parent=1 // pred_region
      _
    $region73: #{evolve_gnn_forward.3} parent=1 // pred_fallthru
      _
    %640 = vsyncpa [#allocation3], 1
    %641 = vsyncpa [#allocation5], 1
    %642 = vsyncpa [#allocation8], 1
    %643 = vsyncpa [#allocation11], 1

// kernel: evolve_gnn_forward.5
$region0: #{evolve_gnn_forward.5}
  #allocation0 [shape = 'u32[]', space=smem, size = 0x4, offset = 0x4, fixed_abs, tag = 'smem constant byte address 0x4 - core index']
  #allocation1 [shape = 'u32[144,128]{1,0:T(1,128)}', space=vmem, size = 0x12000, scoped, tag = 'internal scratch']
  #allocation2 [shape = 'f32[128,128]{1,0:T(8,128)}', space=vmem, size = 0x10000, scoped, tag = 'scratch operand']
  %s0 = inlined_call_operand.vmem [shape: bf16[256,256], index: 0, kind: input, shape index: {}]
  %s1 = inlined_call_operand.vmem [shape: bf16[256,128], index: 1, kind: input, shape index: {}]
  %s2 = inlined_call_operand.vmem [shape: f32[128,128], index: 2, kind: input, shape index: {}]
  %s3 = inlined_call_operand.vmem [shape: f32[1,128], index: 3, kind: input, shape index: {}]
  %s4 = inlined_call_operand.hbm [shape: bf16[256,128], index: 4, kind: output, shape index: {}]
  %s5 = sld [smem:[#allocation0]]
  $region98: #{evolve_gnn_forward.5} parent=0
    _
  %s7 = ssub.s32 1, %s5
  %s8 = scalar_select 0, %s7, %s5
  $region1: #{evolve_gnn_forward.5} parent=0
    #allocation3 [shape = 'u8[65536]{0}', space=vmem, size = 0x10000, scoped, tag = 'input window, operand 0']
    #allocation4 [shape = 'u8[65536]{0}', space=vmem, size = 0x10000, scoped, tag = 'output window, operand 0']
    #allocation5 [shape = 's32[2]{0}', space=sflag, size = 0x8, scoped, tag = 'scoped memory for evolve_gnn_forward.5']
    %9 = vsyncpa [#allocation5], 0
    %s10 = scalar_lea.sflag [#allocation5], 1
    %11 = vsyncpa %s10, 0
    loop: start=0, step=1, limit=6
    $region2: #{evolve_gnn_forward.5} parent=1 // loop_pre_header
      _
    $region3: #{evolve_gnn_forward.5} parent=1 // loop_header
      %s13 = sphi 0, %s17
      %p14 = scmp.ge.s32.totalorder %s13, 6
      %s20 = sphi 0, %s32
      %s21 = sphi 0, %s28
      %s22 = sphi 0, %s20
      %s23 = sphi 0, %s21
      %s24 = sphi 0, %s22
      %s25 = sphi 0, %s23
      %s37 = sphi 0, %s39
      %s40 = sphi 0, %s37
      %s41 = sphi 0, %s40
      %s57 = sphi 0, %s41
      %s63 = sphi 0, %s65
      %s66 = sphi 0, %s63
      %s67 = sphi 0, %s66
      %s83 = sphi 0, %s67
      %s87 = sphi 0, %s87
      %s89 = sphi 0, %s87
      %s90 = sphi 0, %s89
      %s104 = sphi 0, %s90
      %s108 = sphi 0, %s108
      %s110 = sphi 0, %s108
      %s111 = sphi 0, %s110
      %s125 = sphi 0, %s111
      %s131 = sphi 0, %s133
      %s134 = sphi 0, %s131
      %s135 = sphi 0, %s134
      %s151 = sphi 0, %s135
    $region4: #{evolve_gnn_forward.5} parent=1 // loop_header_branch
      %16 = sbr.rel (%p14) target = $region8
    $region5: #{evolve_gnn_forward.5} parent=1 // loop_body
      %s18 = ssub.s32 %s13, 1
      %s19 = ssub.s32 %s13, 2
      %s26 = sadd.s32 1, %s21
      %p27 = scmp.ge.s32.totalorder %s26, 2
      %s28 = scalar_select %p27, 0, %s26
      %s29 = sadd.s32 1, %s20
      %s30 = scalar_select %p27, %s29, %s20
      %p31 = scmp.ge.s32.totalorder %s30, 2
      %s32 = scalar_select %p31, 0, %s30
      %s33 = ssub.s32 %s20, %s32
      %s34 = ssub.s32 %s21, %s28
      %s35 = sor.u32 %s33, %s34
      %p36 = scmp.eq.s32.totalorder %s35, 0
      %s38 = sadd.s32 %s37, 1
      %s39 = scalar_select %p36, %s37, %s38
      %p42 = pneg %p36
      %p43 = scmp.eq.s32.totalorder %s13, 3
      %p44 = por %p42, %p43
      %p45 = scmp.ne.s32.totalorder %s37, %s40
      %p46 = scmp.eq.s32.totalorder %s13, 0
      %p47 = por %p45, %p46
      %p48 = scmp.ne.s32.totalorder %s37, %s40
      %p49 = scmp.eq.s32.totalorder %s18, 3
      %p50 = por %p48, %p49
      %p51 = scmp.ne.s32.totalorder %s40, %s41
      %p52 = scmp.eq.s32.totalorder %s18, 0
      %p53 = por %p51, %p52
      %p54 = scmp.ne.s32.totalorder %s40, %s41
      %p55 = scmp.eq.s32.totalorder %s19, 3
      %p56 = por %p54, %p55
      %p58 = scmp.ne.s32.totalorder %s41, %s57
      %p59 = scmp.eq.s32.totalorder %s19, 0
      %p60 = por %p58, %p59
      %s61 = ssub.s32 %s21, %s28
      %p62 = scmp.eq.s32.totalorder %s61, 0
      %s64 = sadd.s32 %s63, 1
      %s65 = scalar_select %p62, %s63, %s64
      %p68 = pneg %p62
      %p69 = scmp.eq.s32.totalorder %s13, 3
      %p70 = por %p68, %p69
      %p71 = scmp.ne.s32.totalorder %s63, %s66
      %p72 = scmp.eq.s32.totalorder %s13, 0
      %p73 = por %p71, %p72
      %p74 = scmp.ne.s32.totalorder %s63, %s66
      %p75 = scmp.eq.s32.totalorder %s18, 3
      %p76 = por %p74, %p75
      %p77 = scmp.ne.s32.totalorder %s66, %s67
      %p78 = scmp.eq.s32.totalorder %s18, 0
      %p79 = por %p77, %p78
      %p80 = scmp.ne.s32.totalorder %s66, %s67
      %p81 = scmp.eq.s32.totalorder %s19, 3
      %p82 = por %p80, %p81
      %p84 = scmp.ne.s32.totalorder %s67, %s83
      %p85 = scmp.eq.s32.totalorder %s19, 0
      %p86 = por %p84, %p85
      %s88 = sadd.s32 %s87, 1
      %p91 = scmp.eq.s32.totalorder %s13, 3
      %p92 = scmp.ne.s32.totalorder %s87, %s89
      %p93 = scmp.eq.s32.totalorder %s13, 0
      %p94 = por %p92, %p93
      %p95 = scmp.ne.s32.totalorder %s87, %s89
      %p96 = scmp.eq.s32.totalorder %s18, 3
      %p97 = por %p95, %p96
      %p98 = scmp.ne.s32.totalorder %s89, %s90
      %p99 = scmp.eq.s32.totalorder %s18, 0
      %p100 = por %p98, %p99
      %p101 = scmp.ne.s32.totalorder %s89, %s90
      %p102 = scmp.eq.s32.totalorder %s19, 3
      %p103 = por %p101, %p102
      %p105 = scmp.ne.s32.totalorder %s90, %s104
      %p106 = scmp.eq.s32.totalorder %s19, 0
      %p107 = por %p105, %p106
      %s109 = sadd.s32 %s108, 1
      %p112 = scmp.eq.s32.totalorder %s13, 3
      %p113 = scmp.ne.s32.totalorder %s108, %s110
      %p114 = scmp.eq.s32.totalorder %s13, 0
      %p115 = por %p113, %p114
      %p116 = scmp.ne.s32.totalorder %s108, %s110
      %p117 = scmp.eq.s32.totalorder %s18, 3
      %p118 = por %p116, %p117
      %p119 = scmp.ne.s32.totalorder %s110, %s111
      %p120 = scmp.eq.s32.totalorder %s18, 0
      %p121 = por %p119, %p120
      %p122 = scmp.ne.s32.totalorder %s110, %s111
      %p123 = scmp.eq.s32.totalorder %s19, 3
      %p124 = por %p122, %p123
      %p126 = scmp.ne.s32.totalorder %s111, %s125
      %p127 = scmp.eq.s32.totalorder %s19, 0
      %p128 = por %p126, %p127
      %s129 = ssub.s32 %s20, %s32
      %p130 = scmp.eq.s32.totalorder %s129, 0
      %s132 = sadd.s32 %s131, 1
      %s133 = scalar_select %p130, %s131, %s132
      %p136 = pneg %p130
      %p137 = scmp.eq.s32.totalorder %s13, 3
      %p138 = por %p136, %p137
      %p139 = scmp.ne.s32.totalorder %s131, %s134
      %p140 = scmp.eq.s32.totalorder %s13, 0
      %p141 = por %p139, %p140
      %p142 = scmp.ne.s32.totalorder %s131, %s134
      %p143 = scmp.eq.s32.totalorder %s18, 3
      %p144 = por %p142, %p143
      %p145 = scmp.ne.s32.totalorder %s134, %s135
      %p146 = scmp.eq.s32.totalorder %s18, 0
      %p147 = por %p145, %p146
      %p148 = scmp.ne.s32.totalorder %s134, %s135
      %p149 = scmp.eq.s32.totalorder %s19, 3
      %p150 = por %p148, %p149
      %p152 = scmp.ne.s32.totalorder %s135, %s151
      %p153 = scmp.eq.s32.totalorder %s19, 0
      %p154 = por %p152, %p153
      %p155 = scmp.le.s32.totalorder 1, %s13
      %p156 = scmp.lt.s32.totalorder %s13, 5
      %p157 = pnand %p155, %p156
      %p158 = pneg %p157
      // Predicated region
      $region9: #{evolve_gnn_forward.5} parent=5 // pred_check
        _
      $region10: #{evolve_gnn_forward.5} parent=5 // pred_check_branch
        %160 = sbr.rel (%p157) target = $region12
      $region11: #{evolve_gnn_forward.5} parent=5 // pred_region
        %s161 = ssub.s32 %s13, 1
        // Predicated region
        $region13: #{evolve_gnn_forward.5} parent=11 // pred_check
          %p162 = pneg %p100
        $region14: #{evolve_gnn_forward.5} parent=11 // pred_check_branch
          %164 = sbr.rel (%p162) target = $region16
        $region15: #{evolve_gnn_forward.5} parent=11 // pred_region
          _
        $region16: #{evolve_gnn_forward.5} parent=11 // pred_fallthru
          _
        // Predicated region
        $region17: #{evolve_gnn_forward.5} parent=11 // pred_check
          %p165 = pneg %p121
        $region18: #{evolve_gnn_forward.5} parent=11 // pred_check_branch
          %167 = sbr.rel (%p165) target = $region20
        $region19: #{evolve_gnn_forward.5} parent=11 // pred_region
          _
        $region20: #{evolve_gnn_forward.5} parent=11 // pred_fallthru
          _
      $region12: #{evolve_gnn_forward.5} parent=5 // pred_fallthru
        _
      %p168 = scmp.lt.s32.totalorder %s13, 4
      // Predicated region
      $region21: #{evolve_gnn_forward.5} parent=5 // pred_check
        %p169 = pneg %p168
      $region22: #{evolve_gnn_forward.5} parent=5 // pred_check_branch
        %171 = sbr.rel (%p169) target = $region24
      $region23: #{evolve_gnn_forward.5} parent=5 // pred_region
        // Predicated region
        $region25: #{evolve_gnn_forward.5} parent=23 // pred_check
          %p172 = pneg %p47
        $region26: #{evolve_gnn_forward.5} parent=23 // pred_check_branch
          %174 = sbr.rel (%p172) target = $region28
        $region27: #{evolve_gnn_forward.5} parent=23 // pred_region
          %s175 = sand.u32 %s37, 1
          %s176 = sand.u32 %s37, 1
          %s177 = smul.addr %s176, 64
          %s178 = scalar_lea.vmem [#allocation3], %s177
          %s179 = smul.u32 16, %s20
          %s180 = smul.addr %s179, 2
          %s181 = sadd.s32 %s21, %s180
          %s182 = smul.addr %s181, 4
          %s183 = scalar_lea.vmem %s0, %s182
          // Predicated region
          $region29: #{evolve_gnn_forward.5} parent=27 // pred_check
            _
          $region30: #{evolve_gnn_forward.5} parent=27 // pred_check_branch
            %185 = sbr.rel (0) target = $region32
          $region31: #{evolve_gnn_forward.5} parent=27 // pred_region
            // Predicated region
            $region33: #{evolve_gnn_forward.5} parent=31 // pred_check
              _
            $region34: #{evolve_gnn_forward.5} parent=31 // pred_check_branch
              %187 = sbr.rel target = $region36
            $region35: #{evolve_gnn_forward.5} parent=31 // pred_region
              // Predicated region
              $region48: #{evolve_gnn_forward.5} parent=35 // pred_check
                _
              $region49: #{evolve_gnn_forward.5} parent=35 // pred_check_branch
                %232 = sbr.rel (0) target = $region51
              $region50: #{evolve_gnn_forward.5} parent=35 // pred_region
                loop: start=0, step=1, limit=1
                $region52: #{evolve_gnn_forward.5} parent=50 // loop_pre_header
                  _
                $region53: #{evolve_gnn_forward.5} parent=50 // loop_header
                  %s234 = sphi 0, %s238
                  %p235 = scmp.ge.s32.totalorder %s234, 1
                  %s239 = sphi %s183, %s183
                  %s240 = sphi %s178, %s178
                $region54: #{evolve_gnn_forward.5} parent=50 // loop_header_branch
                  %237 = sbr.rel (%p235) target = $region58
                $region55: #{evolve_gnn_forward.5} parent=50 // loop_body
                  _
                $region56: #{evolve_gnn_forward.5} parent=50 // loop_footer
                  %s238 = sadd.s32 1, %s234
                $region57: #{evolve_gnn_forward.5} parent=50 // loop_footer_branch
                  %233 = sbr.rel target = $region53
                $region58: #{evolve_gnn_forward.5} parent=50 // loop_exit
                  _
                loop: start=0, step=1, limit=1
                $region59: #{evolve_gnn_forward.5} parent=50 // loop_pre_header
                  _
                $region60: #{evolve_gnn_forward.5} parent=50 // loop_header
                  %s243 = sphi 0, %s247
                  %p244 = scmp.ge.s32.totalorder %s243, 1
                  %s248 = sphi %s183, %s183
                  %s249 = sphi %s178, %s178
                $region61: #{evolve_gnn_forward.5} parent=50 // loop_header_branch
                  %246 = sbr.rel (%p244) target = $region65
                $region62: #{evolve_gnn_forward.5} parent=50 // loop_body
                  %v250 = vld [vmem:[%s248] sm:$0xf]
                  %251 = vst [vmem:[%s249] sm:$0xf] %v250
                  %v252 = vld [vmem:[%s248 + $0x8] sm:$0xf]
                  %253 = vst [vmem:[%s249 + $0x4] sm:$0xf] %v252
                  %v254 = vld [vmem:[%s248 + $0x10] sm:$0xf]
                  %255 = vst [vmem:[%s249 + $0x8] sm:$0xf] %v254
                  %v256 = vld [vmem:[%s248 + $0x18] sm:$0xf]
                  %257 = vst [vmem:[%s249 + $0xc] sm:$0xf] %v256
                  %v258 = vld [vmem:[%s248 + $0x20] sm:$0xf]
                  %259 = vst [vmem:[%s249 + $0x10] sm:$0xf] %v258
                  %v260 = vld [vmem:[%s248 + $0x28] sm:$0xf]
                  %261 = vst [vmem:[%s249 + $0x14] sm:$0xf] %v260
                  %v262 = vld [vmem:[%s248 + $0x30] sm:$0xf]
                  %263 = vst [vmem:[%s249 + $0x18] sm:$0xf] %v262
                  %v264 = vld [vmem:[%s248 + $0x38] sm:$0xf]
                  %265 = vst [vmem:[%s249 + $0x1c] sm:$0xf] %v264
                  %v266 = vld [vmem:[%s248 + $0x40] sm:$0xf]
                  %267 = vst [vmem:[%s249 + $0x20] sm:$0xf] %v266
                  %v268 = vld [vmem:[%s248 + $0x48] sm:$0xf]
                  %269 = vst [vmem:[%s249 + $0x24] sm:$0xf] %v268
                  %v270 = vld [vmem:[%s248 + $0x50] sm:$0xf]
                  %271 = vst [vmem:[%s249 + $0x28] sm:$0xf] %v270
                  %v272 = vld [vmem:[%s248 + $0x58] sm:$0xf]
                  %273 = vst [vmem:[%s249 + $0x2c] sm:$0xf] %v272
                  %v274 = vld [vmem:[%s248 + $0x60] sm:$0xf]
                  %275 = vst [vmem:[%s249 + $0x30] sm:$0xf] %v274
                  %v276 = vld [vmem:[%s248 + $0x68] sm:$0xf]
                  %277 = vst [vmem:[%s249 + $0x34] sm:$0xf] %v276
                  %v278 = vld [vmem:[%s248 + $0x70] sm:$0xf]
                  %279 = vst [vmem:[%s249 + $0x38] sm:$0xf] %v278
                  %v280 = vld [vmem:[%s248 + $0x78] sm:$0xf]
                  %281 = vst [vmem:[%s249 + $0x3c] sm:$0xf] %v280
                $region63: #{evolve_gnn_forward.5} parent=50 // loop_footer
                  %s247 = sadd.s32 1, %s243
                $region64: #{evolve_gnn_forward.5} parent=50 // loop_footer_branch
                  %242 = sbr.rel target = $region60
                $region65: #{evolve_gnn_forward.5} parent=50 // loop_exit
                  _
              $region51: #{evolve_gnn_forward.5} parent=35 // pred_fallthru
                _
            $region36: #{evolve_gnn_forward.5} parent=31 // pred_fallthru
              _
            // Predicated region
            $region37: #{evolve_gnn_forward.5} parent=31 // pred_check
              _
            $region38: #{evolve_gnn_forward.5} parent=31 // pred_check_branch
              %189 = sbr.rel (0) target = $region40
            $region39: #{evolve_gnn_forward.5} parent=31 // pred_region
              loop: start=0, step=1, limit=1
              $region41: #{evolve_gnn_forward.5} parent=39 // loop_pre_header
                _
              $region42: #{evolve_gnn_forward.5} parent=39 // loop_header
                %s192 = sphi 0, %s196
                %p193 = scmp.ge.s32.totalorder %s192, 1
                %s197 = sphi %s183, %s183
                %s198 = sphi %s178, %s178
              $region43: #{evolve_gnn_forward.5} parent=39 // loop_header_branch
                %195 = sbr.rel (%p193) target = $region47
              $region44: #{evolve_gnn_forward.5} parent=39 // loop_body
                %v199 = vld [vmem:[%s197] sm:$0xf]
                %200 = vst [vmem:[%s198] sm:$0xf] %v199
                %v201 = vld [vmem:[%s197 + $0x8] sm:$0xf]
                %202 = vst [vmem:[%s198 + $0x4] sm:$0xf] %v201
                %v203 = vld [vmem:[%s197 + $0x10] sm:$0xf]
                %204 = vst [vmem:[%s198 + $0x8] sm:$0xf] %v203
                %v205 = vld [vmem:[%s197 + $0x18] sm:$0xf]
                %206 = vst [vmem:[%s198 + $0xc] sm:$0xf] %v205
                %v207 = vld [vmem:[%s197 + $0x20] sm:$0xf]
                %208 = vst [vmem:[%s198 + $0x10] sm:$0xf] %v207
                %v209 = vld [vmem:[%s197 + $0x28] sm:$0xf]
                %210 = vst [vmem:[%s198 + $0x14] sm:$0xf] %v209
                %v211 = vld [vmem:[%s197 + $0x30] sm:$0xf]
                %212 = vst [vmem:[%s198 + $0x18] sm:$0xf] %v211
                %v213 = vld [vmem:[%s197 + $0x38] sm:$0xf]
                %214 = vst [vmem:[%s198 + $0x1c] sm:$0xf] %v213
                %v215 = vld [vmem:[%s197 + $0x40] sm:$0xf]
                %216 = vst [vmem:[%s198 + $0x20] sm:$0xf] %v215
                %v217 = vld [vmem:[%s197 + $0x48] sm:$0xf]
                %218 = vst [vmem:[%s198 + $0x24] sm:$0xf] %v217
                %v219 = vld [vmem:[%s197 + $0x50] sm:$0xf]
                %220 = vst [vmem:[%s198 + $0x28] sm:$0xf] %v219
                %v221 = vld [vmem:[%s197 + $0x58] sm:$0xf]
                %222 = vst [vmem:[%s198 + $0x2c] sm:$0xf] %v221
                %v223 = vld [vmem:[%s197 + $0x60] sm:$0xf]
                %224 = vst [vmem:[%s198 + $0x30] sm:$0xf] %v223
                %v225 = vld [vmem:[%s197 + $0x68] sm:$0xf]
                %226 = vst [vmem:[%s198 + $0x34] sm:$0xf] %v225
                %v227 = vld [vmem:[%s197 + $0x70] sm:$0xf]
                %228 = vst [vmem:[%s198 + $0x38] sm:$0xf] %v227
                %v229 = vld [vmem:[%s197 + $0x78] sm:$0xf]
                %230 = vst [vmem:[%s198 + $0x3c] sm:$0xf] %v229
              $region45: #{evolve_gnn_forward.5} parent=39 // loop_footer
                %s196 = sadd.s32 1, %s192
              $region46: #{evolve_gnn_forward.5} parent=39 // loop_footer_branch
                %191 = sbr.rel target = $region42
              $region47: #{evolve_gnn_forward.5} parent=39 // loop_exit
                _
            $region40: #{evolve_gnn_forward.5} parent=31 // pred_fallthru
              _
          $region32: #{evolve_gnn_forward.5} parent=27 // pred_fallthru
            _
          %282 = vnop
        $region28: #{evolve_gnn_forward.5} parent=23 // pred_fallthru
          _
        // Predicated region
        $region66: #{evolve_gnn_forward.5} parent=23 // pred_check
          %p283 = pneg %p73
        $region67: #{evolve_gnn_forward.5} parent=23 // pred_check_branch
          %285 = sbr.rel (%p283) target = $region69
        $region68: #{evolve_gnn_forward.5} parent=23 // pred_region
          %s286 = smul.u32 16, %s21
          %p287 = scmp.lt.s32.totalorder %s286, 31
          %s288 = scalar_select %p287, %s286, 31
          %s289 = smul.addr %s288, 4
          %s290 = scalar_lea.vmem %s1, %s289
          %s291 = smul.u32 16, %s21
        $region69: #{evolve_gnn_forward.5} parent=23 // pred_fallthru
          _
      $region24: #{evolve_gnn_forward.5} parent=5 // pred_fallthru
        _
      %p292 = scmp.le.s32.totalorder 1, %s13
      %p293 = scmp.lt.s32.totalorder %s13, 5
      %p294 = pnand %p292, %p293
      %p295 = pneg %p294
      // Predicated region
      $region70: #{evolve_gnn_forward.5} parent=5 // pred_check
        _
      $region71: #{evolve_gnn_forward.5} parent=5 // pred_check_branch
        %297 = sbr.rel (%p294) target = $region73
      $region72: #{evolve_gnn_forward.5} parent=5 // pred_region
        %s298 = ssub.s32 %s13, 1
        %s299 = sand.u32 %s40, 1
        %s300 = sand.u32 %s40, 1
        %s301 = smul.addr %s300, 64
        %s302 = scalar_lea.vmem [#allocation3], %s301
        // Predicated region
        $region74: #{evolve_gnn_forward.5} parent=72 // pred_check
          %p303 = pneg %p53
        $region75: #{evolve_gnn_forward.5} parent=72 // pred_check_branch
          %305 = sbr.rel (%p303) target = $region77
        $region76: #{evolve_gnn_forward.5} parent=72 // pred_region
          _
        $region77: #{evolve_gnn_forward.5} parent=72 // pred_fallthru
          _
        %s306 = sand.u32 %s40, 1
        %s307 = sand.u32 %s40, 1
        %s308 = smul.addr %s307, 64
        %s309 = scalar_lea.vmem [#allocation3], %s308
        %p310 = pneg %p53
        %p311 = pneg %p50
        %s312 = smul.u32 16, %s23
        %p313 = scmp.lt.s32.totalorder %s312, 31
        %s314 = scalar_select %p313, %s312, 31
        %s315 = smul.addr %s314, 4
        %s316 = scalar_lea.vmem %s1, %s315
        %p317 = pneg %p79
        %p318 = pneg %p76
        %p319 = pneg %p100
        %p320 = pneg %p97
        %p321 = pneg %p121
        %p322 = pneg %p118
        %p323 = pneg %p147
        %p324 = pneg %p144
        %s325 = sand.u32 %s134, 1
        %s326 = scalar_lea.sflag [#allocation5], %s325
        %s327 = sand.u32 %s134, 1
        %s328 = smul.addr %s327, 64
        %s329 = scalar_lea.vmem [#allocation4], %s328
        %s330 = smul.u32 16, %s22
        %s331 = smul.u32 16, %s23
        %p332 = scmp.lt.s32.totalorder %s331, 31
        %s333 = scalar_select %p332, %s331, 31
        %s334 = smul.addr %s333, 4
        %s335 = scalar_lea.vmem %s1, %s334
        %s336 = smul.u32 16, %s23
        %s337 = smul.u32 16, %s22
        %p339 = scmp.eq.s32.totalorder %s23, 0
        // Predicated region
        $region78: #{evolve_gnn_forward.5} parent=72 // pred_check
          %p340 = pneg %p339
        $region79: #{evolve_gnn_forward.5} parent=72 // pred_check_branch
          %342 = sbr.rel (%p340) target = $region81
        $region80: #{evolve_gnn_forward.5} parent=72 // pred_region
          %343 = vst [vmem:[#allocation2] sm:$0xff] 0.0
          %344 = vst [vmem:[#allocation2 + $0x8] sm:$0xff] 0.0
          %345 = vst [vmem:[#allocation2 + $0x10] sm:$0xff] 0.0
          %346 = vst [vmem:[#allocation2 + $0x18] sm:$0xff] 0.0
          %347 = vst [vmem:[#allocation2 + $0x20] sm:$0xff] 0.0
          %348 = vst [vmem:[#allocation2 + $0x28] sm:$0xff] 0.0
          %349 = vst [vmem:[#allocation2 + $0x30] sm:$0xff] 0.0
          %350 = vst [vmem:[#allocation2 + $0x38] sm:$0xff] 0.0
          %351 = vst [vmem:[#allocation2 + $0x40] sm:$0xff] 0.0
          %352 = vst [vmem:[#allocation2 + $0x48] sm:$0xff] 0.0
          %353 = vst [vmem:[#allocation2 + $0x50] sm:$0xff] 0.0
          %354 = vst [vmem:[#allocation2 + $0x58] sm:$0xff] 0.0
          %355 = vst [vmem:[#allocation2 + $0x60] sm:$0xff] 0.0
          %356 = vst [vmem:[#allocation2 + $0x68] sm:$0xff] 0.0
          %357 = vst [vmem:[#allocation2 + $0x70] sm:$0xff] 0.0
          %358 = vst [vmem:[#allocation2 + $0x78] sm:$0xff] 0.0
        $region81: #{evolve_gnn_forward.5} parent=72 // pred_fallthru
          _
        %v359 = vld [vmem:[#allocation2] sm:$0xff]
        %v360 = vld [vmem:[#allocation2 + $0x8] sm:$0xff]
        %v361 = vld [vmem:[#allocation2 + $0x10] sm:$0xff]
        %v362 = vld [vmem:[#allocation2 + $0x18] sm:$0xff]
        %v363 = vld [vmem:[#allocation2 + $0x20] sm:$0xff]
        %v364 = vld [vmem:[#allocation2 + $0x28] sm:$0xff]
        %v365 = vld [vmem:[#allocation2 + $0x30] sm:$0xff]
        %v366 = vld [vmem:[#allocation2 + $0x38] sm:$0xff]
        %v367 = vld [vmem:[#allocation2 + $0x40] sm:$0xff]
        %v368 = vld [vmem:[#allocation2 + $0x48] sm:$0xff]
        %v369 = vld [vmem:[#allocation2 + $0x50] sm:$0xff]
        %v370 = vld [vmem:[#allocation2 + $0x58] sm:$0xff]
        %v371 = vld [vmem:[#allocation2 + $0x60] sm:$0xff]
        %v372 = vld [vmem:[#allocation2 + $0x68] sm:$0xff]
        %v373 = vld [vmem:[#allocation2 + $0x70] sm:$0xff]
        %v374 = vld [vmem:[#allocation2 + $0x78] sm:$0xff]
        %v375 = vld [vmem:[%s302] sm:$0xf]
        %v376 = vld [vmem:[%s302 + $0x4] sm:$0xf]
        %v377 = vld [vmem:[%s302 + $0x8] sm:$0xf]
        %v378 = vld [vmem:[%s302 + $0xc] sm:$0xf]
        %v379 = vld [vmem:[%s302 + $0x10] sm:$0xf]
        %v380 = vld [vmem:[%s302 + $0x14] sm:$0xf]
        %v381 = vld [vmem:[%s302 + $0x18] sm:$0xf]
        %v382 = vld [vmem:[%s302 + $0x1c] sm:$0xf]
        %v383 = vld [vmem:[%s302 + $0x20] sm:$0xf]
        %v384 = vld [vmem:[%s302 + $0x24] sm:$0xf]
        %v385 = vld [vmem:[%s302 + $0x28] sm:$0xf]
        %v386 = vld [vmem:[%s302 + $0x2c] sm:$0xf]
        %v387 = vld [vmem:[%s302 + $0x30] sm:$0xf]
        %v388 = vld [vmem:[%s302 + $0x34] sm:$0xf]
        %v389 = vld [vmem:[%s302 + $0x38] sm:$0xf]
        %v390 = vld [vmem:[%s302 + $0x3c] sm:$0xf]
        %v391 = vld [vmem:[%s335] sm:$0xf]
        %v392 = vld [vmem:[%s335 + $0x4] sm:$0xf]
        %v393 = vld [vmem:[%s335 + $0x8] sm:$0xf]
        %v394 = vld [vmem:[%s335 + $0xc] sm:$0xf]
        %v395 = vld [vmem:[%s335 + $0x10] sm:$0xf]
        %v396 = vld [vmem:[%s335 + $0x14] sm:$0xf]
        %v397 = vld [vmem:[%s335 + $0x18] sm:$0xf]
        %v398 = vld [vmem:[%s335 + $0x1c] sm:$0xf]
        %v399 = vld [vmem:[%s335 + $0x20] sm:$0xf]
        %v400 = vld [vmem:[%s335 + $0x24] sm:$0xf]
        %v401 = vld [vmem:[%s335 + $0x28] sm:$0xf]
        %v402 = vld [vmem:[%s335 + $0x2c] sm:$0xf]
        %v403 = vld [vmem:[%s335 + $0x30] sm:$0xf]
        %v404 = vld [vmem:[%s335 + $0x34] sm:$0xf]
        %v405 = vld [vmem:[%s335 + $0x38] sm:$0xf]
        %v406 = vld [vmem:[%s335 + $0x3c] sm:$0xf]
        %v423 = vunpack.c.l.b16 %v375
        %v424 = vunpack.c.l.b16 %v376
        %v425 = vunpack.c.l.b16 %v377
        %v426 = vunpack.c.l.b16 %v378
        %v427 = vunpack.c.l.b16 %v379
        %v428 = vunpack.c.l.b16 %v380
        %v429 = vunpack.c.l.b16 %v381
        %v430 = vunpack.c.l.b16 %v382
        %v431 = vunpack.c.l.b16 %v383
        %v432 = vunpack.c.l.b16 %v384
        %v433 = vunpack.c.l.b16 %v385
        %v434 = vunpack.c.l.b16 %v386
        %v435 = vunpack.c.l.b16 %v387
        %v436 = vunpack.c.l.b16 %v388
        %v437 = vunpack.c.l.b16 %v389
        %v438 = vunpack.c.l.b16 %v390
        %v439 = vpack.c.b16 %v424, %v423
        %v440 = vpack.c.b16 %v426, %v425
        %v441 = vpack.c.b16 %v428, %v427
        %v442 = vpack.c.b16 %v430, %v429
        %v443 = vpack.c.b16 %v432, %v431
        %v444 = vpack.c.b16 %v434, %v433
        %v445 = vpack.c.b16 %v436, %v435
        %v446 = vpack.c.b16 %v438, %v437
        %v471 = vunpack.c.l.b16 %v391
        %v472 = vunpack.c.l.b16 %v392
        %v473 = vunpack.c.l.b16 %v393
        %v474 = vunpack.c.l.b16 %v394
        %v475 = vunpack.c.l.b16 %v395
        %v476 = vunpack.c.l.b16 %v396
        %v477 = vunpack.c.l.b16 %v397
        %v478 = vunpack.c.l.b16 %v398
        %v479 = vunpack.c.l.b16 %v399
        %v480 = vunpack.c.l.b16 %v400
        %v481 = vunpack.c.l.b16 %v401
        %v482 = vunpack.c.l.b16 %v402
        %v483 = vunpack.c.l.b16 %v403
        %v484 = vunpack.c.l.b16 %v404
        %v485 = vunpack.c.l.b16 %v405
        %v486 = vunpack.c.l.b16 %v406
        %v487 = vpack.c.b16 %v472, %v471
        %v488 = vpack.c.b16 %v474, %v473
        %v489 = vpack.c.b16 %v476, %v475
        %v490 = vpack.c.b16 %v478, %v477
        %v491 = vpack.c.b16 %v480, %v479
        %v492 = vpack.c.b16 %v482, %v481
        %v493 = vpack.c.b16 %v484, %v483
        %v494 = vpack.c.b16 %v486, %v485
        %503 = vmatprep.subr.bf16.mxu0 0
        %504 = vmatpush1.bf16.msra.mxu0 %v487
        %505 = vmatprep.subr.bf16.mxu0 0
        %506 = vmatpush1.bf16.msra.mxu0 %v488
        %507 = vmatprep.subr.bf16.mxu0 0
        %508 = vmatpush1.bf16.msra.mxu0 %v489
        %509 = vmatprep.subr.bf16.mxu0 0
        %510 = vmatpush1.bf16.msra.mxu0 %v490
        %511 = vmatprep.subr.bf16.mxu0 0
        %512 = vmatpush1.bf16.msra.mxu0 %v491
        %513 = vmatprep.subr.bf16.mxu0 0
        %514 = vmatpush1.bf16.msra.mxu0 %v492
        %515 = vmatprep.subr.bf16.mxu0 0
        %516 = vmatpush1.bf16.msra.mxu0 %v493
        %517 = vmatprep.subr.bf16.mxu0 0
        %518 = vmatpush1.bf16.msra.mxu0 %v494
        %519 = vmatprep.subr.bf16.mxu0 0
        %520 = vmatpush1.bf16.msra.mxu0 0
        %521 = vmatprep.subr.bf16.mxu0 0
        %522 = vmatpush1.bf16.msra.mxu0 0
        %523 = vmatprep.subr.bf16.mxu0 0
        %524 = vmatpush1.bf16.msra.mxu0 0
        %525 = vmatprep.subr.bf16.mxu0 0
        %526 = vmatpush1.bf16.msra.mxu0 0
        %527 = vmatprep.subr.bf16.mxu0 0
        %528 = vmatpush1.bf16.msra.mxu0 0
        %529 = vmatprep.subr.bf16.mxu0 0
        %530 = vmatpush1.bf16.msra.mxu0 0
        %531 = vmatprep.subr.bf16.mxu0 0
        %532 = vmatpush1.bf16.msra.mxu0 0
        %533 = vmatprep.subr.bf16.mxu0 0
        %534 = vmatpush1.bf16.msra.mxu0 0
        %535 = vmatprep.mubr.bf16.mxu0 0
        %536 = vmatmul.mubr.bf16.gmra.mrb[0].mxu0 %v439
        %v537 = vpop.f32.mrb[0].mxu0
        %v538 = vadd.f32 0.0, %v537
        %v539 = vpop.f32.mrb[0].mxu0
        %v540 = vpop.f32.mrb[0].mxu0
        %v541 = vadd.f32 0.0, %v540
        %v542 = vpop.f32.mrb[0].mxu0
        %543 = vmatprep.mubr.bf16.mxu0 0
        %544 = vmatmul.mubr.bf16.gmra.mrb[0].mxu0 %v440
        %v545 = vpop.f32.mrb[0].mxu0
        %v546 = vadd.f32 0.0, %v545
        %v547 = vpop.f32.mrb[0].mxu0
        %v548 = vpop.f32.mrb[0].mxu0
        %v549 = vadd.f32 0.0, %v548
        %v550 = vpop.f32.mrb[0].mxu0
        %551 = vmatprep.mubr.bf16.mxu0 0
        %552 = vmatmul.mubr.bf16.gmra.mrb[0].mxu0 %v441
        %v553 = vpop.f32.mrb[0].mxu0
        %v554 = vadd.f32 0.0, %v553
        %v555 = vpop.f32.mrb[0].mxu0
        %v556 = vpop.f32.mrb[0].mxu0
        %v557 = vadd.f32 0.0, %v556
        %v558 = vpop.f32.mrb[0].mxu0
        %559 = vmatprep.mubr.bf16.mxu0 0
        %560 = vmatmul.mubr.bf16.gmra.mrb[0].mxu0 %v442
        %v561 = vpop.f32.mrb[0].mxu0
        %v562 = vadd.f32 0.0, %v561
        %v563 = vpop.f32.mrb[0].mxu0
        %v564 = vpop.f32.mrb[0].mxu0
        %v565 = vadd.f32 0.0, %v564
        %v566 = vpop.f32.mrb[0].mxu0
        %567 = vmatprep.mubr.bf16.mxu0 0
        %568 = vmatmul.mubr.bf16.gmra.mrb[0].mxu0 %v443
        %v569 = vpop.f32.mrb[0].mxu0
        %v570 = vadd.f32 0.0, %v569
        %v571 = vpop.f32.mrb[0].mxu0
        %v572 = vpop.f32.mrb[0].mxu0
        %v573 = vadd.f32 0.0, %v572
        %v574 = vpop.f32.mrb[0].mxu0
        %575 = vmatprep.mubr.bf16.mxu0 0
        %576 = vmatmul.mubr.bf16.gmra.mrb[0].mxu0 %v444
        %v577 = vpop.f32.mrb[0].mxu0
        %v578 = vadd.f32 0.0, %v577
        %v579 = vpop.f32.mrb[0].mxu0
        %v580 = vpop.f32.mrb[0].mxu0
        %v581 = vadd.f32 0.0, %v580
        %v582 = vpop.f32.mrb[0].mxu0
        %583 = vmatprep.mubr.bf16.mxu0 0
        %584 = vmatmul.mubr.bf16.gmra.mrb[0].mxu0 %v445
        %v585 = vpop.f32.mrb[0].mxu0
        %v586 = vadd.f32 0.0, %v585
        %v587 = vpop.f32.mrb[0].mxu0
        %v588 = vpop.f32.mrb[0].mxu0
        %v589 = vadd.f32 0.0, %v588
        %v590 = vpop.f32.mrb[0].mxu0
        %591 = vmatprep.mubr.bf16.mxu0 0
        %592 = vmatmul.mubr.bf16.gmra.mrb[0].mxu0 %v446
        %v593 = vpop.f32.mrb[0].mxu0
        %v594 = vadd.f32 0.0, %v593
        %v595 = vpop.f32.mrb[0].mxu0
        %v596 = vpop.f32.mrb[0].mxu0
        %v597 = vadd.f32 0.0, %v596
        %v598 = vpop.f32.mrb[0].mxu0
        %599 = vdwg.mxu0
        %v600 = vadd.f32 %v359, %v538
        %v601 = vadd.f32 %v360, %v541
        %v602 = vadd.f32 %v361, %v546
        %v603 = vadd.f32 %v362, %v549
        %v604 = vadd.f32 %v363, %v554
        %v605 = vadd.f32 %v364, %v557
        %v606 = vadd.f32 %v365, %v562
        %v607 = vadd.f32 %v366, %v565
        %v608 = vadd.f32 %v367, %v570
        %v609 = vadd.f32 %v368, %v573
        %v610 = vadd.f32 %v369, %v578
        %v611 = vadd.f32 %v370, %v581
        %v612 = vadd.f32 %v371, %v586
        %v613 = vadd.f32 %v372, %v589
        %v614 = vadd.f32 %v373, %v594
        %v615 = vadd.f32 %v374, %v597
        %616 = vst [vmem:[#allocation2] sm:$0xff] %v600
        %617 = vst [vmem:[#allocation2 + $0x8] sm:$0xff] %v601
        %618 = vst [vmem:[#allocation2 + $0x10] sm:$0xff] %v602
        %619 = vst [vmem:[#allocation2 + $0x18] sm:$0xff] %v603
        %620 = vst [vmem:[#allocation2 + $0x20] sm:$0xff] %v604
        %621 = vst [vmem:[#allocation2 + $0x28] sm:$0xff] %v605
        %622 = vst [vmem:[#allocation2 + $0x30] sm:$0xff] %v606
        %623 = vst [vmem:[#allocation2 + $0x38] sm:$0xff] %v607
        %624 = vst [vmem:[#allocation2 + $0x40] sm:$0xff] %v608
        %625 = vst [vmem:[#allocation2 + $0x48] sm:$0xff] %v609
        %626 = vst [vmem:[#allocation2 + $0x50] sm:$0xff] %v610
        %627 = vst [vmem:[#allocation2 + $0x58] sm:$0xff] %v611
        %628 = vst [vmem:[#allocation2 + $0x60] sm:$0xff] %v612
        %629 = vst [vmem:[#allocation2 + $0x68] sm:$0xff] %v613
        %630 = vst [vmem:[#allocation2 + $0x70] sm:$0xff] %v614
        %631 = vst [vmem:[#allocation2 + $0x78] sm:$0xff] %v615
        %p632 = scmp.eq.s32.totalorder %s23, 1
        // Predicated region
        $region82: #{evolve_gnn_forward.5} parent=72 // pred_check
          %p633 = pneg %p632
        $region83: #{evolve_gnn_forward.5} parent=72 // pred_check_branch
          %635 = sbr.rel (%p633) target = $region85
        $region84: #{evolve_gnn_forward.5} parent=72 // pred_region
          %v636 = vld [vmem:[#allocation2] sm:$0xff]
          %v637 = vld [vmem:[#allocation2 + $0x8] sm:$0xff]
          %v638 = vld [vmem:[#allocation2 + $0x10] sm:$0xff]
          %v639 = vld [vmem:[#allocation2 + $0x18] sm:$0xff]
          %v640 = vld [vmem:[#allocation2 + $0x20] sm:$0xff]
          %v641 = vld [vmem:[#allocation2 + $0x28] sm:$0xff]
          %v642 = vld [vmem:[#allocation2 + $0x30] sm:$0xff]
          %v643 = vld [vmem:[#allocation2 + $0x38] sm:$0xff]
          %v644 = vld [vmem:[#allocation2 + $0x40] sm:$0xff]
          %v645 = vld [vmem:[#allocation2 + $0x48] sm:$0xff]
          %v646 = vld [vmem:[#allocation2 + $0x50] sm:$0xff]
          %v647 = vld [vmem:[#allocation2 + $0x58] sm:$0xff]
          %v648 = vld [vmem:[#allocation2 + $0x60] sm:$0xff]
          %v649 = vld [vmem:[#allocation2 + $0x68] sm:$0xff]
          %v650 = vld [vmem:[#allocation2 + $0x70] sm:$0xff]
          %v651 = vld [vmem:[#allocation2 + $0x78] sm:$0xff]
          %v652 = vld [vmem:[%s2] sm:$0xff]
          %v653 = vld [vmem:[%s2 + $0x8] sm:$0xff]
          %v654 = vld [vmem:[%s2 + $0x10] sm:$0xff]
          %v655 = vld [vmem:[%s2 + $0x18] sm:$0xff]
          %v656 = vld [vmem:[%s2 + $0x20] sm:$0xff]
          %v657 = vld [vmem:[%s2 + $0x28] sm:$0xff]
          %v658 = vld [vmem:[%s2 + $0x30] sm:$0xff]
          %v659 = vld [vmem:[%s2 + $0x38] sm:$0xff]
          %v660 = vld [vmem:[%s2 + $0x40] sm:$0xff]
          %v661 = vld [vmem:[%s2 + $0x48] sm:$0xff]
          %v662 = vld [vmem:[%s2 + $0x50] sm:$0xff]
          %v663 = vld [vmem:[%s2 + $0x58] sm:$0xff]
          %v664 = vld [vmem:[%s2 + $0x60] sm:$0xff]
          %v665 = vld [vmem:[%s2 + $0x68] sm:$0xff]
          %v666 = vld [vmem:[%s2 + $0x70] sm:$0xff]
          %v667 = vld [vmem:[%s2 + $0x78] sm:$0xff]
          %v668 = vld [vmem:[%s3] sm:$0x1]
          %v670 = vlaneseq
          %v671 = vshrl.u32 %v670, 7
          %v672 = vsub.s32 0, %v671
          %v673 = vrot.slane %v668, %v672
          %675 = vmatprep.subr.mxu0 0.0
          %676 = vmatpush1.msra.mxu0 %v652
          %677 = vmatprep.subr.mxu0 0.0
          %678 = vmatpush1.msra.mxu0 %v653
          %679 = vmatprep.subr.mxu0 0.0
          %680 = vmatpush1.msra.mxu0 %v654
          %681 = vmatprep.subr.mxu0 0.0
          %682 = vmatpush1.msra.mxu0 %v655
          %683 = vmatprep.subr.mxu0 0.0
          %684 = vmatpush1.msra.mxu0 %v656
          %685 = vmatprep.subr.mxu0 0.0
          %686 = vmatpush1.msra.mxu0 %v657
          %687 = vmatprep.subr.mxu0 0.0
          %688 = vmatpush1.msra.mxu0 %v658
          %689 = vmatprep.subr.mxu0 0.0
          %690 = vmatpush1.msra.mxu0 %v659
          %691 = vmatprep.subr.mxu0 0.0
          %692 = vmatpush1.msra.mxu0 %v660
          %693 = vmatprep.subr.mxu0 0.0
          %694 = vmatpush1.msra.mxu0 %v661
          %695 = vmatprep.subr.mxu0 0.0
          %696 = vmatpush1.msra.mxu0 %v662
          %697 = vmatprep.subr.mxu0 0.0
          %698 = vmatpush1.msra.mxu0 %v663
          %699 = vmatprep.subr.mxu0 0.0
          %700 = vmatpush1.msra.mxu0 %v664
          %701 = vmatprep.subr.mxu0 0.0
          %702 = vmatpush1.msra.mxu0 %v665
          %703 = vmatprep.subr.mxu0 0.0
          %704 = vmatpush1.msra.mxu0 %v666
          %705 = vmatprep.subr.mxu0 0.0
          %706 = vmatpush1.msra.mxu0 %v667
          %707 = vmatprep.subr.mxu0 0.0
          %708 = vmatpush1.msra.mxu0 0.0
          %709 = vmatprep.subr.mxu0 0.0
          %710 = vmatpush1.msra.mxu0 0.0
          %711 = vmatprep.subr.mxu0 0.0
          %712 = vmatpush1.msra.mxu0 0.0
          %713 = vmatprep.subr.mxu0 0.0
          %714 = vmatpush1.msra.mxu0 0.0
          %715 = vmatprep.subr.mxu0 0.0
          %716 = vmatpush1.msra.mxu0 0.0
          %717 = vmatprep.subr.mxu0 0.0
          %718 = vmatpush1.msra.mxu0 0.0
          %719 = vmatprep.subr.mxu0 0.0
          %720 = vmatpush1.msra.mxu0 0.0
          %721 = vmatprep.subr.mxu0 0.0
          %722 = vmatpush1.msra.mxu0 0.0
          %723 = vmatprep.subr.mxu0 0.0
          %724 = vmatpush1.msra.mxu0 0.0
          %725 = vmatprep.subr.mxu0 0.0
          %726 = vmatpush1.msra.mxu0 0.0
          %727 = vmatprep.subr.mxu0 0.0
          %728 = vmatpush1.msra.mxu0 0.0
          %729 = vmatprep.subr.mxu0 0.0
          %730 = vmatpush1.msra.mxu0 0.0
          %731 = vmatprep.subr.mxu0 0.0
          %732 = vmatpush1.msra.mxu0 0.0
          %733 = vmatprep.subr.mxu0 0.0
          %734 = vmatpush1.msra.mxu0 0.0
          %735 = vmatprep.subr.mxu0 0.0
          %736 = vmatpush1.msra.mxu0 0.0
          %737 = vmatprep.subr.mxu0 0.0
          %738 = vmatpush1.msra.mxu0 0.0
          %739 = vmatprep.mubr.f32.mxu0 0.0
          %740 = vmatmul.mubr.f32.gmra.mrb[0].mxu0 %v636
          %v741 = vpop.f32.mrb[0].mxu0
          %v742 = vadd.f32 %v673, %v741
          %v743 = vpop.f32.mrb[0].mxu0
          %744 = vmatprep.mubr.f32.mxu0 0.0
          %745 = vmatmul.mubr.f32.gmra.mrb[0].mxu0 %v637
          %v746 = vpop.f32.mrb[0].mxu0
          %v747 = vadd.f32 %v673, %v746
          %v748 = vpop.f32.mrb[0].mxu0
          %749 = vmatprep.mubr.f32.mxu0 0.0
          %750 = vmatmul.mubr.f32.gmra.mrb[0].mxu0 %v638
          %v751 = vpop.f32.mrb[0].mxu0
          %v752 = vadd.f32 %v673, %v751
          %v753 = vpop.f32.mrb[0].mxu0
          %754 = vmatprep.mubr.f32.mxu0 0.0
          %755 = vmatmul.mubr.f32.gmra.mrb[0].mxu0 %v639
          %v756 = vpop.f32.mrb[0].mxu0
          %v757 = vadd.f32 %v673, %v756
          %v758 = vpop.f32.mrb[0].mxu0
          %759 = vmatprep.mubr.f32.mxu0 0.0
          %760 = vmatmul.mubr.f32.gmra.mrb[0].mxu0 %v640
          %v761 = vpop.f32.mrb[0].mxu0
          %v762 = vadd.f32 %v673, %v761
          %v763 = vpop.f32.mrb[0].mxu0
          %764 = vmatprep.mubr.f32.mxu0 0.0
          %765 = vmatmul.mubr.f32.gmra.mrb[0].mxu0 %v641
          %v766 = vpop.f32.mrb[0].mxu0
          %v767 = vadd.f32 %v673, %v766
          %v768 = vpop.f32.mrb[0].mxu0
          %769 = vmatprep.mubr.f32.mxu0 0.0
          %770 = vmatmul.mubr.f32.gmra.mrb[0].mxu0 %v642
          %v771 = vpop.f32.mrb[0].mxu0
          %v772 = vadd.f32 %v673, %v771
          %v773 = vpop.f32.mrb[0].mxu0
          %774 = vmatprep.mubr.f32.mxu0 0.0
          %775 = vmatmul.mubr.f32.gmra.mrb[0].mxu0 %v643
          %v776 = vpop.f32.mrb[0].mxu0
          %v777 = vadd.f32 %v673, %v776
          %v778 = vpop.f32.mrb[0].mxu0
          %779 = vmatprep.mubr.f32.mxu0 0.0
          %780 = vmatmul.mubr.f32.gmra.mrb[0].mxu0 %v644
          %v781 = vpop.f32.mrb[0].mxu0
          %v782 = vadd.f32 %v673, %v781
          %v783 = vpop.f32.mrb[0].mxu0
          %784 = vmatprep.mubr.f32.mxu0 0.0
          %785 = vmatmul.mubr.f32.gmra.mrb[0].mxu0 %v645
          %v786 = vpop.f32.mrb[0].mxu0
          %v787 = vadd.f32 %v673, %v786
          %v788 = vpop.f32.mrb[0].mxu0
          %789 = vmatprep.mubr.f32.mxu0 0.0
          %790 = vmatmul.mubr.f32.gmra.mrb[0].mxu0 %v646
          %v791 = vpop.f32.mrb[0].mxu0
          %v792 = vadd.f32 %v673, %v791
          %v793 = vpop.f32.mrb[0].mxu0
          %794 = vmatprep.mubr.f32.mxu0 0.0
          %795 = vmatmul.mubr.f32.gmra.mrb[0].mxu0 %v647
          %v796 = vpop.f32.mrb[0].mxu0
          %v797 = vadd.f32 %v673, %v796
          %v798 = vpop.f32.mrb[0].mxu0
          %799 = vmatprep.mubr.f32.mxu0 0.0
          %800 = vmatmul.mubr.f32.gmra.mrb[0].mxu0 %v648
          %v801 = vpop.f32.mrb[0].mxu0
          %v802 = vadd.f32 %v673, %v801
          %v803 = vpop.f32.mrb[0].mxu0
          %804 = vmatprep.mubr.f32.mxu0 0.0
          %805 = vmatmul.mubr.f32.gmra.mrb[0].mxu0 %v649
          %v806 = vpop.f32.mrb[0].mxu0
          %v807 = vadd.f32 %v673, %v806
          %v808 = vpop.f32.mrb[0].mxu0
          %809 = vmatprep.mubr.f32.mxu0 0.0
          %810 = vmatmul.mubr.f32.gmra.mrb[0].mxu0 %v650
          %v811 = vpop.f32.mrb[0].mxu0
          %v812 = vadd.f32 %v673, %v811
          %v813 = vpop.f32.mrb[0].mxu0
          %814 = vmatprep.mubr.f32.mxu0 0.0
          %815 = vmatmul.mubr.f32.gmra.mrb[0].mxu0 %v651
          %v816 = vpop.f32.mrb[0].mxu0
          %v817 = vadd.f32 %v673, %v816
          %v818 = vpop.f32.mrb[0].mxu0
          %819 = vdwg.mxu0
          %v820 = vxor.u32 %v742, 2147483648
          %v821 = vxor.u32 %v747, 2147483648
          %v822 = vxor.u32 %v752, 2147483648
          %v823 = vxor.u32 %v757, 2147483648
          %v824 = vxor.u32 %v762, 2147483648
          %v825 = vxor.u32 %v767, 2147483648
          %v826 = vxor.u32 %v772, 2147483648
          %v827 = vxor.u32 %v777, 2147483648
          %v828 = vxor.u32 %v782, 2147483648
          %v829 = vxor.u32 %v787, 2147483648
          %v830 = vxor.u32 %v792, 2147483648
          %v831 = vxor.u32 %v797, 2147483648
          %v832 = vxor.u32 %v802, 2147483648
          %v833 = vxor.u32 %v807, 2147483648
          %v834 = vxor.u32 %v812, 2147483648
          %v835 = vxor.u32 %v817, 2147483648
          %v836 = vmul.f32 %v820, 1.442695
          %v837 = vpow.pop %v836
          %v838 = vmul.f32 %v821, 1.442695
          %v839 = vpow.pop %v838
          %v840 = vmul.f32 %v822, 1.442695
          %v841 = vpow.pop %v840
          %v842 = vmul.f32 %v823, 1.442695
          %v843 = vpow.pop %v842
          %v844 = vmul.f32 %v824, 1.442695
          %v845 = vpow.pop %v844
          %v846 = vmul.f32 %v825, 1.442695
          %v847 = vpow.pop %v846
          %v848 = vmul.f32 %v826, 1.442695
          %v849 = vpow.pop %v848
          %v850 = vmul.f32 %v827, 1.442695
          %v851 = vpow.pop %v850
          %v852 = vmul.f32 %v828, 1.442695
          %v853 = vpow.pop %v852
          %v854 = vmul.f32 %v829, 1.442695
          %v855 = vpow.pop %v854
          %v856 = vmul.f32 %v830, 1.442695
          %v857 = vpow.pop %v856
          %v858 = vmul.f32 %v831, 1.442695
          %v859 = vpow.pop %v858
          %v860 = vmul.f32 %v832, 1.442695
          %v861 = vpow.pop %v860
          %v862 = vmul.f32 %v833, 1.442695
          %v863 = vpow.pop %v862
          %v864 = vmul.f32 %v834, 1.442695
          %v865 = vpow.pop %v864
          %v866 = vmul.f32 %v835, 1.442695
          %v867 = vpow.pop %v866
          %v868 = vadd.f32 %v837, 1.0
          %v869 = vadd.f32 %v839, 1.0
          %v870 = vadd.f32 %v841, 1.0
          %v871 = vadd.f32 %v843, 1.0
          %v872 = vadd.f32 %v845, 1.0
          %v873 = vadd.f32 %v847, 1.0
          %v874 = vadd.f32 %v849, 1.0
          %v875 = vadd.f32 %v851, 1.0
          %v876 = vadd.f32 %v853, 1.0
          %v877 = vadd.f32 %v855, 1.0
          %v878 = vadd.f32 %v857, 1.0
          %v879 = vadd.f32 %v859, 1.0
          %v880 = vadd.f32 %v861, 1.0
          %v881 = vadd.f32 %v863, 1.0
          %v882 = vadd.f32 %v865, 1.0
          %v883 = vadd.f32 %v867, 1.0
          %v884 = vrcp.pop %v868
          %v885 = vmul.f32 1.0, %v884
          %v886 = vrcp.pop %v869
          %v887 = vmul.f32 1.0, %v886
          %v888 = vrcp.pop %v870
          %v889 = vmul.f32 1.0, %v888
          %v890 = vrcp.pop %v871
          %v891 = vmul.f32 1.0, %v890
          %v892 = vrcp.pop %v872
          %v893 = vmul.f32 1.0, %v892
          %v894 = vrcp.pop %v873
          %v895 = vmul.f32 1.0, %v894
          %v896 = vrcp.pop %v874
          %v897 = vmul.f32 1.0, %v896
          %v898 = vrcp.pop %v875
          %v899 = vmul.f32 1.0, %v898
          %v900 = vrcp.pop %v876
          %v901 = vmul.f32 1.0, %v900
          %v902 = vrcp.pop %v877
          %v903 = vmul.f32 1.0, %v902
          %v904 = vrcp.pop %v878
          %v905 = vmul.f32 1.0, %v904
          %v906 = vrcp.pop %v879
          %v907 = vmul.f32 1.0, %v906
          %v908 = vrcp.pop %v880
          %v909 = vmul.f32 1.0, %v908
          %v910 = vrcp.pop %v881
          %v911 = vmul.f32 1.0, %v910
          %v912 = vrcp.pop %v882
          %v913 = vmul.f32 1.0, %v912
          %v914 = vrcp.pop %v883
          %v915 = vmul.f32 1.0, %v914
          %v916 = vpack.c.bf16 %v887, %v885
          %v917 = vpack.c.bf16 %v891, %v889
          %v918 = vpack.c.bf16 %v895, %v893
          %v919 = vpack.c.bf16 %v899, %v897
          %v920 = vpack.c.bf16 %v903, %v901
          %v921 = vpack.c.bf16 %v907, %v905
          %v922 = vpack.c.bf16 %v911, %v909
          %v923 = vpack.c.bf16 %v915, %v913
          %v932 = vunpack.c.l.b16 %v916
          %v933 = vunpack.c.h.b16 %v916
          %v934 = vunpack.c.l.b16 %v917
          %v935 = vunpack.c.h.b16 %v917
          %v936 = vunpack.c.l.b16 %v918
          %v937 = vunpack.c.h.b16 %v918
          %v938 = vunpack.c.l.b16 %v919
          %v939 = vunpack.c.h.b16 %v919
          %v940 = vunpack.c.l.b16 %v920
          %v941 = vunpack.c.h.b16 %v920
          %v942 = vunpack.c.l.b16 %v921
          %v943 = vunpack.c.h.b16 %v921
          %v944 = vunpack.c.l.b16 %v922
          %v945 = vunpack.c.h.b16 %v922
          %v946 = vunpack.c.l.b16 %v923
          %v947 = vunpack.c.h.b16 %v923
          %v948 = vpack.c.b16 %v932, %v932
          %v949 = vpack.c.b16 %v933, %v933
          %v950 = vpack.c.b16 %v934, %v934
          %v951 = vpack.c.b16 %v935, %v935
          %v952 = vpack.c.b16 %v936, %v936
          %v953 = vpack.c.b16 %v937, %v937
          %v954 = vpack.c.b16 %v938, %v938
          %v955 = vpack.c.b16 %v939, %v939
          %v956 = vpack.c.b16 %v940, %v940
          %v957 = vpack.c.b16 %v941, %v941
          %v958 = vpack.c.b16 %v942, %v942
          %v959 = vpack.c.b16 %v943, %v943
          %v960 = vpack.c.b16 %v944, %v944
          %v961 = vpack.c.b16 %v945, %v945
          %v962 = vpack.c.b16 %v946, %v946
          %v963 = vpack.c.b16 %v947, %v947
          %980 = vst [vmem:[%s329] sm:$0xf] %v948
          %981 = vst [vmem:[%s329 + $0x4] sm:$0xf] %v949
          %982 = vst [vmem:[%s329 + $0x8] sm:$0xf] %v950
          %983 = vst [vmem:[%s329 + $0xc] sm:$0xf] %v951
          %984 = vst [vmem:[%s329 + $0x10] sm:$0xf] %v952
          %985 = vst [vmem:[%s329 + $0x14] sm:$0xf] %v953
          %986 = vst [vmem:[%s329 + $0x18] sm:$0xf] %v954
          %987 = vst [vmem:[%s329 + $0x1c] sm:$0xf] %v955
          %988 = vst [vmem:[%s329 + $0x20] sm:$0xf] %v956
          %989 = vst [vmem:[%s329 + $0x24] sm:$0xf] %v957
          %990 = vst [vmem:[%s329 + $0x28] sm:$0xf] %v958
          %991 = vst [vmem:[%s329 + $0x2c] sm:$0xf] %v959
          %992 = vst [vmem:[%s329 + $0x30] sm:$0xf] %v960
          %993 = vst [vmem:[%s329 + $0x34] sm:$0xf] %v961
          %994 = vst [vmem:[%s329 + $0x38] sm:$0xf] %v962
          %995 = vst [vmem:[%s329 + $0x3c] sm:$0xf] %v963
        $region85: #{evolve_gnn_forward.5} parent=72 // pred_fallthru
          _
        %s996 = sand.u32 %s134, 1
        %s997 = scalar_lea.sflag [#allocation5], %s996
        %s998 = sand.u32 %s134, 1
        %s999 = smul.addr %s998, 64
        %s1000 = scalar_lea.vmem [#allocation4], %s999
        // Predicated region
        $region86: #{evolve_gnn_forward.5} parent=72 // pred_check
          %p1001 = pneg %p144
        $region87: #{evolve_gnn_forward.5} parent=72 // pred_check_branch
          %1003 = sbr.rel (%p1001) target = $region89
        $region88: #{evolve_gnn_forward.5} parent=72 // pred_region
          %s1004 = smul.u32 16, %s22
          %s1006 = ssub.s32 1024, 1024
          %1007 = vsyncadd %s997, %s1006
          %s1008 = smul.addr %s1004, 64
          %s1009 = scalar_lea.hbm %s4, %s1008
          %s1010 = sshll.u32 %s1000, 4
          %s1011 = int_to_ptr.vmem [resolvable:$true] %s1010
          %1016 = dma.vmem_to_hbm [thread:$0]  %s1011, 1024, %s1009, %s997, 64, 64, 4
        $region89: #{evolve_gnn_forward.5} parent=72 // pred_fallthru
          _
      $region73: #{evolve_gnn_forward.5} parent=5 // pred_fallthru
        _
      %p1017 = scmp.le.s32.totalorder 2, %s13
      // Predicated region
      $region90: #{evolve_gnn_forward.5} parent=5 // pred_check
        %p1018 = pneg %p1017
      $region91: #{evolve_gnn_forward.5} parent=5 // pred_check_branch
        %1020 = sbr.rel (%p1018) target = $region93
      $region92: #{evolve_gnn_forward.5} parent=5 // pred_region
        %s1021 = ssub.s32 %s13, 2
        // Predicated region
        $region94: #{evolve_gnn_forward.5} parent=92 // pred_check
          %p1022 = pneg %p150
        $region95: #{evolve_gnn_forward.5} parent=92 // pred_check_branch
          %1024 = sbr.rel (%p1022) target = $region97
        $region96: #{evolve_gnn_forward.5} parent=92 // pred_region
          %s1025 = sand.u32 %s135, 1
          %s1026 = scalar_lea.sflag [#allocation5], %s1025
          %s1027 = sand.u32 %s135, 1
          %s1028 = smul.addr %s1027, 64
          %s1029 = scalar_lea.vmem [#allocation4], %s1028
          %1030 = dma.done %s1026, 1024
        $region97: #{evolve_gnn_forward.5} parent=92 // pred_fallthru
          _
      $region93: #{evolve_gnn_forward.5} parent=5 // pred_fallthru
        _
    $region6: #{evolve_gnn_forward.5} parent=1 // loop_footer
      %s17 = sadd.s32 1, %s13
    $region7: #{evolve_gnn_forward.5} parent=1 // loop_footer_branch
      %12 = sbr.rel target = $region3
    $region8: #{evolve_gnn_forward.5} parent=1 // loop_exit
      _
    %1031 = vsyncpa [#allocation5], 1
    %s1032 = scalar_lea.sflag [#allocation5], 1
    %1033 = vsyncpa %s1032, 1

// kernel: evolve_gnn_forward.4
$region0: #{evolve_gnn_forward.4}
  #allocation0 [shape = 'u32[]', space=smem, size = 0x4, offset = 0x4, fixed_abs, tag = 'smem constant byte address 0x4 - core index']
  #allocation1 [shape = 'u32[144,128]{1,0:T(1,128)}', space=vmem, size = 0x12000, scoped, tag = 'internal scratch']
  #allocation2 [shape = 'f32[128,16]{1,0:T(8,128)}', space=vmem, size = 0x10000, scoped, tag = 'scratch operand']
  %s0 = inlined_call_operand.vmem [shape: bf16[256,256], index: 0, kind: input, shape index: {}]
  %s1 = inlined_call_operand.vmem [shape: bf16[256,16], index: 1, kind: input, shape index: {}]
  %s2 = inlined_call_operand.vmem [shape: f32[16,16], index: 2, kind: input, shape index: {}]
  %s3 = inlined_call_operand.vmem [shape: f32[16,128], index: 3, kind: input, shape index: {}]
  %s4 = inlined_call_operand.vmem [shape: f32[1,128], index: 4, kind: input, shape index: {}]
  %s5 = inlined_call_operand.vmem [shape: bf16[256,128], index: 5, kind: output, shape index: {}]
  %s6 = sld [smem:[#allocation0]]
  $region102: #{evolve_gnn_forward.4} parent=0
    _
  %s8 = ssub.s32 1, %s6
  %s9 = scalar_select 0, %s8, %s6
  $region1: #{evolve_gnn_forward.4} parent=0
    #allocation3 [shape = 'u8[65536]{0}', space=vmem, size = 0x10000, scoped, tag = 'input window, operand 0']
    loop: start=0, step=1, limit=6
    $region2: #{evolve_gnn_forward.4} parent=1 // loop_pre_header
      _
    $region3: #{evolve_gnn_forward.4} parent=1 // loop_header
      %s11 = sphi 0, %s15
      %p12 = scmp.ge.s32.totalorder %s11, 6
      %s18 = sphi 0, %s30
      %s19 = sphi 0, %s26
      %s20 = sphi 0, %s18
      %s21 = sphi 0, %s19
      %s22 = sphi 0, %s20
      %s23 = sphi 0, %s21
      %s35 = sphi 0, %s37
      %s38 = sphi 0, %s35
      %s39 = sphi 0, %s38
      %s55 = sphi 0, %s39
      %s61 = sphi 0, %s63
      %s64 = sphi 0, %s61
      %s65 = sphi 0, %s64
      %s81 = sphi 0, %s65
      %s85 = sphi 0, %s85
      %s87 = sphi 0, %s85
      %s88 = sphi 0, %s87
      %s102 = sphi 0, %s88
      %s106 = sphi 0, %s106
      %s108 = sphi 0, %s106
      %s109 = sphi 0, %s108
      %s123 = sphi 0, %s109
      %s127 = sphi 0, %s127
      %s129 = sphi 0, %s127
      %s130 = sphi 0, %s129
      %s144 = sphi 0, %s130
      %s150 = sphi 0, %s152
      %s153 = sphi 0, %s150
      %s154 = sphi 0, %s153
      %s170 = sphi 0, %s154
    $region4: #{evolve_gnn_forward.4} parent=1 // loop_header_branch
      %14 = sbr.rel (%p12) target = $region8
    $region5: #{evolve_gnn_forward.4} parent=1 // loop_body
      %s16 = ssub.s32 %s11, 1
      %s17 = ssub.s32 %s11, 2
      %s24 = sadd.s32 1, %s19
      %p25 = scmp.ge.s32.totalorder %s24, 2
      %s26 = scalar_select %p25, 0, %s24
      %s27 = sadd.s32 1, %s18
      %s28 = scalar_select %p25, %s27, %s18
      %p29 = scmp.ge.s32.totalorder %s28, 2
      %s30 = scalar_select %p29, 0, %s28
      %s31 = ssub.s32 %s18, %s30
      %s32 = ssub.s32 %s19, %s26
      %s33 = sor.u32 %s31, %s32
      %p34 = scmp.eq.s32.totalorder %s33, 0
      %s36 = sadd.s32 %s35, 1
      %s37 = scalar_select %p34, %s35, %s36
      %p40 = pneg %p34
      %p41 = scmp.eq.s32.totalorder %s11, 3
      %p42 = por %p40, %p41
      %p43 = scmp.ne.s32.totalorder %s35, %s38
      %p44 = scmp.eq.s32.totalorder %s11, 0
      %p45 = por %p43, %p44
      %p46 = scmp.ne.s32.totalorder %s35, %s38
      %p47 = scmp.eq.s32.totalorder %s16, 3
      %p48 = por %p46, %p47
      %p49 = scmp.ne.s32.totalorder %s38, %s39
      %p50 = scmp.eq.s32.totalorder %s16, 0
      %p51 = por %p49, %p50
      %p52 = scmp.ne.s32.totalorder %s38, %s39
      %p53 = scmp.eq.s32.totalorder %s17, 3
      %p54 = por %p52, %p53
      %p56 = scmp.ne.s32.totalorder %s39, %s55
      %p57 = scmp.eq.s32.totalorder %s17, 0
      %p58 = por %p56, %p57
      %s59 = ssub.s32 %s19, %s26
      %p60 = scmp.eq.s32.totalorder %s59, 0
      %s62 = sadd.s32 %s61, 1
      %s63 = scalar_select %p60, %s61, %s62
      %p66 = pneg %p60
      %p67 = scmp.eq.s32.totalorder %s11, 3
      %p68 = por %p66, %p67
      %p69 = scmp.ne.s32.totalorder %s61, %s64
      %p70 = scmp.eq.s32.totalorder %s11, 0
      %p71 = por %p69, %p70
      %p72 = scmp.ne.s32.totalorder %s61, %s64
      %p73 = scmp.eq.s32.totalorder %s16, 3
      %p74 = por %p72, %p73
      %p75 = scmp.ne.s32.totalorder %s64, %s65
      %p76 = scmp.eq.s32.totalorder %s16, 0
      %p77 = por %p75, %p76
      %p78 = scmp.ne.s32.totalorder %s64, %s65
      %p79 = scmp.eq.s32.totalorder %s17, 3
      %p80 = por %p78, %p79
      %p82 = scmp.ne.s32.totalorder %s65, %s81
      %p83 = scmp.eq.s32.totalorder %s17, 0
      %p84 = por %p82, %p83
      %s86 = sadd.s32 %s85, 1
      %p89 = scmp.eq.s32.totalorder %s11, 3
      %p90 = scmp.ne.s32.totalorder %s85, %s87
      %p91 = scmp.eq.s32.totalorder %s11, 0
      %p92 = por %p90, %p91
      %p93 = scmp.ne.s32.totalorder %s85, %s87
      %p94 = scmp.eq.s32.totalorder %s16, 3
      %p95 = por %p93, %p94
      %p96 = scmp.ne.s32.totalorder %s87, %s88
      %p97 = scmp.eq.s32.totalorder %s16, 0
      %p98 = por %p96, %p97
      %p99 = scmp.ne.s32.totalorder %s87, %s88
      %p100 = scmp.eq.s32.totalorder %s17, 3
      %p101 = por %p99, %p100
      %p103 = scmp.ne.s32.totalorder %s88, %s102
      %p104 = scmp.eq.s32.totalorder %s17, 0
      %p105 = por %p103, %p104
      %s107 = sadd.s32 %s106, 1
      %p110 = scmp.eq.s32.totalorder %s11, 3
      %p111 = scmp.ne.s32.totalorder %s106, %s108
      %p112 = scmp.eq.s32.totalorder %s11, 0
      %p113 = por %p111, %p112
      %p114 = scmp.ne.s32.totalorder %s106, %s108
      %p115 = scmp.eq.s32.totalorder %s16, 3
      %p116 = por %p114, %p115
      %p117 = scmp.ne.s32.totalorder %s108, %s109
      %p118 = scmp.eq.s32.totalorder %s16, 0
      %p119 = por %p117, %p118
      %p120 = scmp.ne.s32.totalorder %s108, %s109
      %p121 = scmp.eq.s32.totalorder %s17, 3
      %p122 = por %p120, %p121
      %p124 = scmp.ne.s32.totalorder %s109, %s123
      %p125 = scmp.eq.s32.totalorder %s17, 0
      %p126 = por %p124, %p125
      %s128 = sadd.s32 %s127, 1
      %p131 = scmp.eq.s32.totalorder %s11, 3
      %p132 = scmp.ne.s32.totalorder %s127, %s129
      %p133 = scmp.eq.s32.totalorder %s11, 0
      %p134 = por %p132, %p133
      %p135 = scmp.ne.s32.totalorder %s127, %s129
      %p136 = scmp.eq.s32.totalorder %s16, 3
      %p137 = por %p135, %p136
      %p138 = scmp.ne.s32.totalorder %s129, %s130
      %p139 = scmp.eq.s32.totalorder %s16, 0
      %p140 = por %p138, %p139
      %p141 = scmp.ne.s32.totalorder %s129, %s130
      %p142 = scmp.eq.s32.totalorder %s17, 3
      %p143 = por %p141, %p142
      %p145 = scmp.ne.s32.totalorder %s130, %s144
      %p146 = scmp.eq.s32.totalorder %s17, 0
      %p147 = por %p145, %p146
      %s148 = ssub.s32 %s18, %s30
      %p149 = scmp.eq.s32.totalorder %s148, 0
      %s151 = sadd.s32 %s150, 1
      %s152 = scalar_select %p149, %s150, %s151
      %p155 = pneg %p149
      %p156 = scmp.eq.s32.totalorder %s11, 3
      %p157 = por %p155, %p156
      %p158 = scmp.ne.s32.totalorder %s150, %s153
      %p159 = scmp.eq.s32.totalorder %s11, 0
      %p160 = por %p158, %p159
      %p161 = scmp.ne.s32.totalorder %s150, %s153
      %p162 = scmp.eq.s32.totalorder %s16, 3
      %p163 = por %p161, %p162
      %p164 = scmp.ne.s32.totalorder %s153, %s154
      %p165 = scmp.eq.s32.totalorder %s16, 0
      %p166 = por %p164, %p165
      %p167 = scmp.ne.s32.totalorder %s153, %s154
      %p168 = scmp.eq.s32.totalorder %s17, 3
      %p169 = por %p167, %p168
      %p171 = scmp.ne.s32.totalorder %s154, %s170
      %p172 = scmp.eq.s32.totalorder %s17, 0
      %p173 = por %p171, %p172
      %p174 = scmp.le.s32.totalorder 1, %s11
      %p175 = scmp.lt.s32.totalorder %s11, 5
      %p176 = pnand %p174, %p175
      %p177 = pneg %p176
      // Predicated region
      $region9: #{evolve_gnn_forward.4} parent=5 // pred_check
        _
      $region10: #{evolve_gnn_forward.4} parent=5 // pred_check_branch
        %179 = sbr.rel (%p176) target = $region12
      $region11: #{evolve_gnn_forward.4} parent=5 // pred_region
        %s180 = ssub.s32 %s11, 1
        // Predicated region
        $region13: #{evolve_gnn_forward.4} parent=11 // pred_check
          %p181 = pneg %p98
        $region14: #{evolve_gnn_forward.4} parent=11 // pred_check_branch
          %183 = sbr.rel (%p181) target = $region16
        $region15: #{evolve_gnn_forward.4} parent=11 // pred_region
          _
        $region16: #{evolve_gnn_forward.4} parent=11 // pred_fallthru
          _
        // Predicated region
        $region17: #{evolve_gnn_forward.4} parent=11 // pred_check
          %p184 = pneg %p119
        $region18: #{evolve_gnn_forward.4} parent=11 // pred_check_branch
          %186 = sbr.rel (%p184) target = $region20
        $region19: #{evolve_gnn_forward.4} parent=11 // pred_region
          _
        $region20: #{evolve_gnn_forward.4} parent=11 // pred_fallthru
          _
        // Predicated region
        $region21: #{evolve_gnn_forward.4} parent=11 // pred_check
          %p187 = pneg %p140
        $region22: #{evolve_gnn_forward.4} parent=11 // pred_check_branch
          %189 = sbr.rel (%p187) target = $region24
        $region23: #{evolve_gnn_forward.4} parent=11 // pred_region
          _
        $region24: #{evolve_gnn_forward.4} parent=11 // pred_fallthru
          _
      $region12: #{evolve_gnn_forward.4} parent=5 // pred_fallthru
        _
      %p190 = scmp.lt.s32.totalorder %s11, 4
      // Predicated region
      $region25: #{evolve_gnn_forward.4} parent=5 // pred_check
        %p191 = pneg %p190
      $region26: #{evolve_gnn_forward.4} parent=5 // pred_check_branch
        %193 = sbr.rel (%p191) target = $region28
      $region27: #{evolve_gnn_forward.4} parent=5 // pred_region
        // Predicated region
        $region29: #{evolve_gnn_forward.4} parent=27 // pred_check
          %p194 = pneg %p45
        $region30: #{evolve_gnn_forward.4} parent=27 // pred_check_branch
          %196 = sbr.rel (%p194) target = $region32
        $region31: #{evolve_gnn_forward.4} parent=27 // pred_region
          %s197 = sand.u32 %s35, 1
          %s198 = sand.u32 %s35, 1
          %s199 = smul.addr %s198, 64
          %s200 = scalar_lea.vmem [#allocation3], %s199
          %s201 = smul.u32 16, %s18
          %s202 = smul.addr %s201, 2
          %s203 = sadd.s32 %s19, %s202
          %s204 = smul.addr %s203, 4
          %s205 = scalar_lea.vmem %s0, %s204
          // Predicated region
          $region33: #{evolve_gnn_forward.4} parent=31 // pred_check
            _
          $region34: #{evolve_gnn_forward.4} parent=31 // pred_check_branch
            %207 = sbr.rel (0) target = $region36
          $region35: #{evolve_gnn_forward.4} parent=31 // pred_region
            // Predicated region
            $region37: #{evolve_gnn_forward.4} parent=35 // pred_check
              _
            $region38: #{evolve_gnn_forward.4} parent=35 // pred_check_branch
              %209 = sbr.rel target = $region40
            $region39: #{evolve_gnn_forward.4} parent=35 // pred_region
              // Predicated region
              $region52: #{evolve_gnn_forward.4} parent=39 // pred_check
                _
              $region53: #{evolve_gnn_forward.4} parent=39 // pred_check_branch
                %254 = sbr.rel (0) target = $region55
              $region54: #{evolve_gnn_forward.4} parent=39 // pred_region
                loop: start=0, step=1, limit=1
                $region56: #{evolve_gnn_forward.4} parent=54 // loop_pre_header
                  _
                $region57: #{evolve_gnn_forward.4} parent=54 // loop_header
                  %s256 = sphi 0, %s260
                  %p257 = scmp.ge.s32.totalorder %s256, 1
                  %s261 = sphi %s205, %s205
                  %s262 = sphi %s200, %s200
                $region58: #{evolve_gnn_forward.4} parent=54 // loop_header_branch
                  %259 = sbr.rel (%p257) target = $region62
                $region59: #{evolve_gnn_forward.4} parent=54 // loop_body
                  _
                $region60: #{evolve_gnn_forward.4} parent=54 // loop_footer
                  %s260 = sadd.s32 1, %s256
                $region61: #{evolve_gnn_forward.4} parent=54 // loop_footer_branch
                  %255 = sbr.rel target = $region57
                $region62: #{evolve_gnn_forward.4} parent=54 // loop_exit
                  _
                loop: start=0, step=1, limit=1
                $region63: #{evolve_gnn_forward.4} parent=54 // loop_pre_header
                  _
                $region64: #{evolve_gnn_forward.4} parent=54 // loop_header
                  %s265 = sphi 0, %s269
                  %p266 = scmp.ge.s32.totalorder %s265, 1
                  %s270 = sphi %s205, %s205
                  %s271 = sphi %s200, %s200
                $region65: #{evolve_gnn_forward.4} parent=54 // loop_header_branch
                  %268 = sbr.rel (%p266) target = $region69
                $region66: #{evolve_gnn_forward.4} parent=54 // loop_body
                  %v272 = vld [vmem:[%s270] sm:$0xf]
                  %273 = vst [vmem:[%s271] sm:$0xf] %v272
                  %v274 = vld [vmem:[%s270 + $0x8] sm:$0xf]
                  %275 = vst [vmem:[%s271 + $0x4] sm:$0xf] %v274
                  %v276 = vld [vmem:[%s270 + $0x10] sm:$0xf]
                  %277 = vst [vmem:[%s271 + $0x8] sm:$0xf] %v276
                  %v278 = vld [vmem:[%s270 + $0x18] sm:$0xf]
                  %279 = vst [vmem:[%s271 + $0xc] sm:$0xf] %v278
                  %v280 = vld [vmem:[%s270 + $0x20] sm:$0xf]
                  %281 = vst [vmem:[%s271 + $0x10] sm:$0xf] %v280
                  %v282 = vld [vmem:[%s270 + $0x28] sm:$0xf]
                  %283 = vst [vmem:[%s271 + $0x14] sm:$0xf] %v282
                  %v284 = vld [vmem:[%s270 + $0x30] sm:$0xf]
                  %285 = vst [vmem:[%s271 + $0x18] sm:$0xf] %v284
                  %v286 = vld [vmem:[%s270 + $0x38] sm:$0xf]
                  %287 = vst [vmem:[%s271 + $0x1c] sm:$0xf] %v286
                  %v288 = vld [vmem:[%s270 + $0x40] sm:$0xf]
                  %289 = vst [vmem:[%s271 + $0x20] sm:$0xf] %v288
                  %v290 = vld [vmem:[%s270 + $0x48] sm:$0xf]
                  %291 = vst [vmem:[%s271 + $0x24] sm:$0xf] %v290
                  %v292 = vld [vmem:[%s270 + $0x50] sm:$0xf]
                  %293 = vst [vmem:[%s271 + $0x28] sm:$0xf] %v292
                  %v294 = vld [vmem:[%s270 + $0x58] sm:$0xf]
                  %295 = vst [vmem:[%s271 + $0x2c] sm:$0xf] %v294
                  %v296 = vld [vmem:[%s270 + $0x60] sm:$0xf]
                  %297 = vst [vmem:[%s271 + $0x30] sm:$0xf] %v296
                  %v298 = vld [vmem:[%s270 + $0x68] sm:$0xf]
                  %299 = vst [vmem:[%s271 + $0x34] sm:$0xf] %v298
                  %v300 = vld [vmem:[%s270 + $0x70] sm:$0xf]
                  %301 = vst [vmem:[%s271 + $0x38] sm:$0xf] %v300
                  %v302 = vld [vmem:[%s270 + $0x78] sm:$0xf]
                  %303 = vst [vmem:[%s271 + $0x3c] sm:$0xf] %v302
                $region67: #{evolve_gnn_forward.4} parent=54 // loop_footer
                  %s269 = sadd.s32 1, %s265
                $region68: #{evolve_gnn_forward.4} parent=54 // loop_footer_branch
                  %264 = sbr.rel target = $region64
                $region69: #{evolve_gnn_forward.4} parent=54 // loop_exit
                  _
              $region55: #{evolve_gnn_forward.4} parent=39 // pred_fallthru
                _
            $region40: #{evolve_gnn_forward.4} parent=35 // pred_fallthru
              _
            // Predicated region
            $region41: #{evolve_gnn_forward.4} parent=35 // pred_check
              _
            $region42: #{evolve_gnn_forward.4} parent=35 // pred_check_branch
              %211 = sbr.rel (0) target = $region44
            $region43: #{evolve_gnn_forward.4} parent=35 // pred_region
              loop: start=0, step=1, limit=1
              $region45: #{evolve_gnn_forward.4} parent=43 // loop_pre_header
                _
              $region46: #{evolve_gnn_forward.4} parent=43 // loop_header
                %s214 = sphi 0, %s218
                %p215 = scmp.ge.s32.totalorder %s214, 1
                %s219 = sphi %s205, %s205
                %s220 = sphi %s200, %s200
              $region47: #{evolve_gnn_forward.4} parent=43 // loop_header_branch
                %217 = sbr.rel (%p215) target = $region51
              $region48: #{evolve_gnn_forward.4} parent=43 // loop_body
                %v221 = vld [vmem:[%s219] sm:$0xf]
                %222 = vst [vmem:[%s220] sm:$0xf] %v221
                %v223 = vld [vmem:[%s219 + $0x8] sm:$0xf]
                %224 = vst [vmem:[%s220 + $0x4] sm:$0xf] %v223
                %v225 = vld [vmem:[%s219 + $0x10] sm:$0xf]
                %226 = vst [vmem:[%s220 + $0x8] sm:$0xf] %v225
                %v227 = vld [vmem:[%s219 + $0x18] sm:$0xf]
                %228 = vst [vmem:[%s220 + $0xc] sm:$0xf] %v227
                %v229 = vld [vmem:[%s219 + $0x20] sm:$0xf]
                %230 = vst [vmem:[%s220 + $0x10] sm:$0xf] %v229
                %v231 = vld [vmem:[%s219 + $0x28] sm:$0xf]
                %232 = vst [vmem:[%s220 + $0x14] sm:$0xf] %v231
                %v233 = vld [vmem:[%s219 + $0x30] sm:$0xf]
                %234 = vst [vmem:[%s220 + $0x18] sm:$0xf] %v233
                %v235 = vld [vmem:[%s219 + $0x38] sm:$0xf]
                %236 = vst [vmem:[%s220 + $0x1c] sm:$0xf] %v235
                %v237 = vld [vmem:[%s219 + $0x40] sm:$0xf]
                %238 = vst [vmem:[%s220 + $0x20] sm:$0xf] %v237
                %v239 = vld [vmem:[%s219 + $0x48] sm:$0xf]
                %240 = vst [vmem:[%s220 + $0x24] sm:$0xf] %v239
                %v241 = vld [vmem:[%s219 + $0x50] sm:$0xf]
                %242 = vst [vmem:[%s220 + $0x28] sm:$0xf] %v241
                %v243 = vld [vmem:[%s219 + $0x58] sm:$0xf]
                %244 = vst [vmem:[%s220 + $0x2c] sm:$0xf] %v243
                %v245 = vld [vmem:[%s219 + $0x60] sm:$0xf]
                %246 = vst [vmem:[%s220 + $0x30] sm:$0xf] %v245
                %v247 = vld [vmem:[%s219 + $0x68] sm:$0xf]
                %248 = vst [vmem:[%s220 + $0x34] sm:$0xf] %v247
                %v249 = vld [vmem:[%s219 + $0x70] sm:$0xf]
                %250 = vst [vmem:[%s220 + $0x38] sm:$0xf] %v249
                %v251 = vld [vmem:[%s219 + $0x78] sm:$0xf]
                %252 = vst [vmem:[%s220 + $0x3c] sm:$0xf] %v251
              $region49: #{evolve_gnn_forward.4} parent=43 // loop_footer
                %s218 = sadd.s32 1, %s214
              $region50: #{evolve_gnn_forward.4} parent=43 // loop_footer_branch
                %213 = sbr.rel target = $region46
              $region51: #{evolve_gnn_forward.4} parent=43 // loop_exit
                _
            $region44: #{evolve_gnn_forward.4} parent=35 // pred_fallthru
              _
          $region36: #{evolve_gnn_forward.4} parent=31 // pred_fallthru
            _
          %304 = vnop
        $region32: #{evolve_gnn_forward.4} parent=27 // pred_fallthru
          _
        // Predicated region
        $region70: #{evolve_gnn_forward.4} parent=27 // pred_check
          %p305 = pneg %p71
        $region71: #{evolve_gnn_forward.4} parent=27 // pred_check_branch
          %307 = sbr.rel (%p305) target = $region73
        $region72: #{evolve_gnn_forward.4} parent=27 // pred_region
          %s308 = smul.u32 16, %s19
          %p309 = scmp.lt.s32.totalorder %s308, 31
          %s310 = scalar_select %p309, %s308, 31
          %s311 = smul.addr %s310, 4
          %s312 = scalar_lea.vmem %s1, %s311
          %s313 = smul.u32 16, %s19
        $region73: #{evolve_gnn_forward.4} parent=27 // pred_fallthru
          _
      $region28: #{evolve_gnn_forward.4} parent=5 // pred_fallthru
        _
      %p314 = scmp.le.s32.totalorder 1, %s11
      %p315 = scmp.lt.s32.totalorder %s11, 5
      %p316 = pnand %p314, %p315
      %p317 = pneg %p316
      // Predicated region
      $region74: #{evolve_gnn_forward.4} parent=5 // pred_check
        _
      $region75: #{evolve_gnn_forward.4} parent=5 // pred_check_branch
        %319 = sbr.rel (%p316) target = $region77
      $region76: #{evolve_gnn_forward.4} parent=5 // pred_region
        %s320 = ssub.s32 %s11, 1
        %s321 = sand.u32 %s38, 1
        %s322 = sand.u32 %s38, 1
        %s323 = smul.addr %s322, 64
        %s324 = scalar_lea.vmem [#allocation3], %s323
        // Predicated region
        $region78: #{evolve_gnn_forward.4} parent=76 // pred_check
          %p325 = pneg %p51
        $region79: #{evolve_gnn_forward.4} parent=76 // pred_check_branch
          %327 = sbr.rel (%p325) target = $region81
        $region80: #{evolve_gnn_forward.4} parent=76 // pred_region
          _
        $region81: #{evolve_gnn_forward.4} parent=76 // pred_fallthru
          _
        %s328 = sand.u32 %s38, 1
        %s329 = sand.u32 %s38, 1
        %s330 = smul.addr %s329, 64
        %s331 = scalar_lea.vmem [#allocation3], %s330
        %p332 = pneg %p51
        %p333 = pneg %p48
        %s334 = smul.u32 16, %s21
        %p335 = scmp.lt.s32.totalorder %s334, 31
        %s336 = scalar_select %p335, %s334, 31
        %s337 = smul.addr %s336, 4
        %s338 = scalar_lea.vmem %s1, %s337
        %p339 = pneg %p77
        %p340 = pneg %p74
        %p341 = pneg %p98
        %p342 = pneg %p95
        %p343 = pneg %p119
        %p344 = pneg %p116
        %p345 = pneg %p140
        %p346 = pneg %p137
        %p347 = pneg %p166
        %p348 = pneg %p163
        %s349 = smul.u32 16, %s20
        %p350 = scmp.lt.s32.totalorder %s349, 31
        %s351 = scalar_select %p350, %s349, 31
        %s352 = smul.addr %s351, 4
        %s353 = scalar_lea.vmem %s5, %s352
        %s354 = smul.u32 16, %s20
        %s355 = smul.u32 16, %s21
        %p356 = scmp.lt.s32.totalorder %s355, 31
        %s357 = scalar_select %p356, %s355, 31
        %s358 = smul.addr %s357, 4
        %s359 = scalar_lea.vmem %s1, %s358
        %s360 = smul.u32 16, %s21
        %s361 = smul.u32 16, %s20
        %p362 = scmp.lt.s32.totalorder %s361, 31
        %s363 = scalar_select %p362, %s361, 31
        %s364 = smul.addr %s363, 4
        %s365 = scalar_lea.vmem %s5, %s364
        %s366 = smul.u32 16, %s20
        %p368 = scmp.eq.s32.totalorder %s21, 0
        // Predicated region
        $region82: #{evolve_gnn_forward.4} parent=76 // pred_check
          %p369 = pneg %p368
        $region83: #{evolve_gnn_forward.4} parent=76 // pred_check_branch
          %371 = sbr.rel (%p369) target = $region85
        $region84: #{evolve_gnn_forward.4} parent=76 // pred_region
          %vm372 = vcmask 130048
          %373 = vst.msk [vmem:[#allocation2] sm:$0xff] %vm372, 0.0
          %374 = vst.msk [vmem:[#allocation2 + $0x8] sm:$0xff] %vm372, 0.0
          %375 = vst.msk [vmem:[#allocation2 + $0x10] sm:$0xff] %vm372, 0.0
          %376 = vst.msk [vmem:[#allocation2 + $0x18] sm:$0xff] %vm372, 0.0
          %377 = vst.msk [vmem:[#allocation2 + $0x20] sm:$0xff] %vm372, 0.0
          %378 = vst.msk [vmem:[#allocation2 + $0x28] sm:$0xff] %vm372, 0.0
          %379 = vst.msk [vmem:[#allocation2 + $0x30] sm:$0xff] %vm372, 0.0
          %380 = vst.msk [vmem:[#allocation2 + $0x38] sm:$0xff] %vm372, 0.0
          %381 = vst.msk [vmem:[#allocation2 + $0x40] sm:$0xff] %vm372, 0.0
          %382 = vst.msk [vmem:[#allocation2 + $0x48] sm:$0xff] %vm372, 0.0
          %383 = vst.msk [vmem:[#allocation2 + $0x50] sm:$0xff] %vm372, 0.0
          %384 = vst.msk [vmem:[#allocation2 + $0x58] sm:$0xff] %vm372, 0.0
          %385 = vst.msk [vmem:[#allocation2 + $0x60] sm:$0xff] %vm372, 0.0
          %386 = vst.msk [vmem:[#allocation2 + $0x68] sm:$0xff] %vm372, 0.0
          %387 = vst.msk [vmem:[#allocation2 + $0x70] sm:$0xff] %vm372, 0.0
          %388 = vst.msk [vmem:[#allocation2 + $0x78] sm:$0xff] %vm372, 0.0
        $region85: #{evolve_gnn_forward.4} parent=76 // pred_fallthru
          _
        %v389 = vld [vmem:[#allocation2] sm:$0xff]
        %v390 = vld [vmem:[#allocation2 + $0x8] sm:$0xff]
        %v391 = vld [vmem:[#allocation2 + $0x10] sm:$0xff]
        %v392 = vld [vmem:[#allocation2 + $0x18] sm:$0xff]
        %v393 = vld [vmem:[#allocation2 + $0x20] sm:$0xff]
        %v394 = vld [vmem:[#allocation2 + $0x28] sm:$0xff]
        %v395 = vld [vmem:[#allocation2 + $0x30] sm:$0xff]
        %v396 = vld [vmem:[#allocation2 + $0x38] sm:$0xff]
        %v397 = vld [vmem:[#allocation2 + $0x40] sm:$0xff]
        %v398 = vld [vmem:[#allocation2 + $0x48] sm:$0xff]
        %v399 = vld [vmem:[#allocation2 + $0x50] sm:$0xff]
        %v400 = vld [vmem:[#allocation2 + $0x58] sm:$0xff]
        %v401 = vld [vmem:[#allocation2 + $0x60] sm:$0xff]
        %v402 = vld [vmem:[#allocation2 + $0x68] sm:$0xff]
        %v403 = vld [vmem:[#allocation2 + $0x70] sm:$0xff]
        %v404 = vld [vmem:[#allocation2 + $0x78] sm:$0xff]
        %v405 = vld [vmem:[%s324] sm:$0xf]
        %v406 = vld [vmem:[%s324 + $0x4] sm:$0xf]
        %v407 = vld [vmem:[%s324 + $0x8] sm:$0xf]
        %v408 = vld [vmem:[%s324 + $0xc] sm:$0xf]
        %v409 = vld [vmem:[%s324 + $0x10] sm:$0xf]
        %v410 = vld [vmem:[%s324 + $0x14] sm:$0xf]
        %v411 = vld [vmem:[%s324 + $0x18] sm:$0xf]
        %v412 = vld [vmem:[%s324 + $0x1c] sm:$0xf]
        %v413 = vld [vmem:[%s324 + $0x20] sm:$0xf]
        %v414 = vld [vmem:[%s324 + $0x24] sm:$0xf]
        %v415 = vld [vmem:[%s324 + $0x28] sm:$0xf]
        %v416 = vld [vmem:[%s324 + $0x2c] sm:$0xf]
        %v417 = vld [vmem:[%s324 + $0x30] sm:$0xf]
        %v418 = vld [vmem:[%s324 + $0x34] sm:$0xf]
        %v419 = vld [vmem:[%s324 + $0x38] sm:$0xf]
        %v420 = vld [vmem:[%s324 + $0x3c] sm:$0xf]
        %v421 = vld [vmem:[%s359] sm:$0xf]
        %v422 = vld [vmem:[%s359 + $0x4] sm:$0xf]
        %v423 = vld [vmem:[%s359 + $0x8] sm:$0xf]
        %v424 = vld [vmem:[%s359 + $0xc] sm:$0xf]
        %v425 = vld [vmem:[%s359 + $0x10] sm:$0xf]
        %v426 = vld [vmem:[%s359 + $0x14] sm:$0xf]
        %v427 = vld [vmem:[%s359 + $0x18] sm:$0xf]
        %v428 = vld [vmem:[%s359 + $0x1c] sm:$0xf]
        %v429 = vld [vmem:[%s359 + $0x20] sm:$0xf]
        %v430 = vld [vmem:[%s359 + $0x24] sm:$0xf]
        %v431 = vld [vmem:[%s359 + $0x28] sm:$0xf]
        %v432 = vld [vmem:[%s359 + $0x2c] sm:$0xf]
        %v433 = vld [vmem:[%s359 + $0x30] sm:$0xf]
        %v434 = vld [vmem:[%s359 + $0x34] sm:$0xf]
        %v435 = vld [vmem:[%s359 + $0x38] sm:$0xf]
        %v436 = vld [vmem:[%s359 + $0x3c] sm:$0xf]
        %v453 = vunpack.c.l.b16 %v405
        %v454 = vunpack.c.l.b16 %v406
        %v455 = vunpack.c.l.b16 %v407
        %v456 = vunpack.c.l.b16 %v408
        %v457 = vunpack.c.l.b16 %v409
        %v458 = vunpack.c.l.b16 %v410
        %v459 = vunpack.c.l.b16 %v411
        %v460 = vunpack.c.l.b16 %v412
        %v461 = vunpack.c.l.b16 %v413
        %v462 = vunpack.c.l.b16 %v414
        %v463 = vunpack.c.l.b16 %v415
        %v464 = vunpack.c.l.b16 %v416
        %v465 = vunpack.c.l.b16 %v417
        %v466 = vunpack.c.l.b16 %v418
        %v467 = vunpack.c.l.b16 %v419
        %v468 = vunpack.c.l.b16 %v420
        %v469 = vpack.c.b16 %v454, %v453
        %v470 = vpack.c.b16 %v456, %v455
        %v471 = vpack.c.b16 %v458, %v457
        %v472 = vpack.c.b16 %v460, %v459
        %v473 = vpack.c.b16 %v462, %v461
        %v474 = vpack.c.b16 %v464, %v463
        %v475 = vpack.c.b16 %v466, %v465
        %v476 = vpack.c.b16 %v468, %v467
        %v501 = vunpack.c.l.b16 %v421
        %v502 = vunpack.c.l.b16 %v422
        %v503 = vunpack.c.l.b16 %v423
        %v504 = vunpack.c.l.b16 %v424
        %v505 = vunpack.c.l.b16 %v425
        %v506 = vunpack.c.l.b16 %v426
        %v507 = vunpack.c.l.b16 %v427
        %v508 = vunpack.c.l.b16 %v428
        %v509 = vunpack.c.l.b16 %v429
        %v510 = vunpack.c.l.b16 %v430
        %v511 = vunpack.c.l.b16 %v431
        %v512 = vunpack.c.l.b16 %v432
        %v513 = vunpack.c.l.b16 %v433
        %v514 = vunpack.c.l.b16 %v434
        %v515 = vunpack.c.l.b16 %v435
        %v516 = vunpack.c.l.b16 %v436
        %v517 = vpack.c.b16 %v502, %v501
        %v518 = vpack.c.b16 %v504, %v503
        %v519 = vpack.c.b16 %v506, %v505
        %v520 = vpack.c.b16 %v508, %v507
        %v521 = vpack.c.b16 %v510, %v509
        %v522 = vpack.c.b16 %v512, %v511
        %v523 = vpack.c.b16 %v514, %v513
        %v524 = vpack.c.b16 %v516, %v515
        %533 = vmatprep.subr.bf16.mxu0 0
        %534 = vmatpush1.bf16.msra.mxu0 %v517
        %535 = vmatprep.subr.bf16.mxu0 0
        %536 = vmatpush1.bf16.msra.mxu0 %v518
        %537 = vmatprep.subr.bf16.mxu0 0
        %538 = vmatpush1.bf16.msra.mxu0 %v519
        %539 = vmatprep.subr.bf16.mxu0 0
        %540 = vmatpush1.bf16.msra.mxu0 %v520
        %541 = vmatprep.subr.bf16.mxu0 0
        %542 = vmatpush1.bf16.msra.mxu0 %v521
        %543 = vmatprep.subr.bf16.mxu0 0
        %544 = vmatpush1.bf16.msra.mxu0 %v522
        %545 = vmatprep.subr.bf16.mxu0 0
        %546 = vmatpush1.bf16.msra.mxu0 %v523
        %547 = vmatprep.subr.bf16.mxu0 0
        %548 = vmatpush1.bf16.msra.mxu0 %v524
        %549 = vmatprep.subr.bf16.mxu0 0
        %550 = vmatpush1.bf16.msra.mxu0 0
        %551 = vmatprep.subr.bf16.mxu0 0
        %552 = vmatpush1.bf16.msra.mxu0 0
        %553 = vmatprep.subr.bf16.mxu0 0
        %554 = vmatpush1.bf16.msra.mxu0 0
        %555 = vmatprep.subr.bf16.mxu0 0
        %556 = vmatpush1.bf16.msra.mxu0 0
        %557 = vmatprep.subr.bf16.mxu0 0
        %558 = vmatpush1.bf16.msra.mxu0 0
        %559 = vmatprep.subr.bf16.mxu0 0
        %560 = vmatpush1.bf16.msra.mxu0 0
        %561 = vmatprep.subr.bf16.mxu0 0
        %562 = vmatpush1.bf16.msra.mxu0 0
        %563 = vmatprep.subr.bf16.mxu0 0
        %564 = vmatpush1.bf16.msra.mxu0 0
        %565 = vmatprep.mubr.bf16.mxu0 0
        %566 = vmatmul.mubr.bf16.gmra.mrb[0].mxu0 %v469
        %v567 = vpop.f32.mrb[0].mxu0
        %v568 = vadd.f32 0.0, %v567
        %v569 = vpop.f32.mrb[0].mxu0
        %v570 = vpop.f32.mrb[0].mxu0
        %v571 = vadd.f32 0.0, %v570
        %v572 = vpop.f32.mrb[0].mxu0
        %573 = vmatprep.mubr.bf16.mxu0 0
        %574 = vmatmul.mubr.bf16.gmra.mrb[0].mxu0 %v470
        %v575 = vpop.f32.mrb[0].mxu0
        %v576 = vadd.f32 0.0, %v575
        %v577 = vpop.f32.mrb[0].mxu0
        %v578 = vpop.f32.mrb[0].mxu0
        %v579 = vadd.f32 0.0, %v578
        %v580 = vpop.f32.mrb[0].mxu0
        %581 = vmatprep.mubr.bf16.mxu0 0
        %582 = vmatmul.mubr.bf16.gmra.mrb[0].mxu0 %v471
        %v583 = vpop.f32.mrb[0].mxu0
        %v584 = vadd.f32 0.0, %v583
        %v585 = vpop.f32.mrb[0].mxu0
        %v586 = vpop.f32.mrb[0].mxu0
        %v587 = vadd.f32 0.0, %v586
        %v588 = vpop.f32.mrb[0].mxu0
        %589 = vmatprep.mubr.bf16.mxu0 0
        %590 = vmatmul.mubr.bf16.gmra.mrb[0].mxu0 %v472
        %v591 = vpop.f32.mrb[0].mxu0
        %v592 = vadd.f32 0.0, %v591
        %v593 = vpop.f32.mrb[0].mxu0
        %v594 = vpop.f32.mrb[0].mxu0
        %v595 = vadd.f32 0.0, %v594
        %v596 = vpop.f32.mrb[0].mxu0
        %597 = vmatprep.mubr.bf16.mxu0 0
        %598 = vmatmul.mubr.bf16.gmra.mrb[0].mxu0 %v473
        %v599 = vpop.f32.mrb[0].mxu0
        %v600 = vadd.f32 0.0, %v599
        %v601 = vpop.f32.mrb[0].mxu0
        %v602 = vpop.f32.mrb[0].mxu0
        %v603 = vadd.f32 0.0, %v602
        %v604 = vpop.f32.mrb[0].mxu0
        %605 = vmatprep.mubr.bf16.mxu0 0
        %606 = vmatmul.mubr.bf16.gmra.mrb[0].mxu0 %v474
        %v607 = vpop.f32.mrb[0].mxu0
        %v608 = vadd.f32 0.0, %v607
        %v609 = vpop.f32.mrb[0].mxu0
        %v610 = vpop.f32.mrb[0].mxu0
        %v611 = vadd.f32 0.0, %v610
        %v612 = vpop.f32.mrb[0].mxu0
        %613 = vmatprep.mubr.bf16.mxu0 0
        %614 = vmatmul.mubr.bf16.gmra.mrb[0].mxu0 %v475
        %v615 = vpop.f32.mrb[0].mxu0
        %v616 = vadd.f32 0.0, %v615
        %v617 = vpop.f32.mrb[0].mxu0
        %v618 = vpop.f32.mrb[0].mxu0
        %v619 = vadd.f32 0.0, %v618
        %v620 = vpop.f32.mrb[0].mxu0
        %621 = vmatprep.mubr.bf16.mxu0 0
        %622 = vmatmul.mubr.bf16.gmra.mrb[0].mxu0 %v476
        %v623 = vpop.f32.mrb[0].mxu0
        %v624 = vadd.f32 0.0, %v623
        %v625 = vpop.f32.mrb[0].mxu0
        %v626 = vpop.f32.mrb[0].mxu0
        %v627 = vadd.f32 0.0, %v626
        %v628 = vpop.f32.mrb[0].mxu0
        %629 = vdwg.mxu0
        %v630 = vadd.f32 %v389, %v568
        %v631 = vadd.f32 %v390, %v571
        %v632 = vadd.f32 %v391, %v576
        %v633 = vadd.f32 %v392, %v579
        %v634 = vadd.f32 %v393, %v584
        %v635 = vadd.f32 %v394, %v587
        %v636 = vadd.f32 %v395, %v592
        %v637 = vadd.f32 %v396, %v595
        %v638 = vadd.f32 %v397, %v600
        %v639 = vadd.f32 %v398, %v603
        %v640 = vadd.f32 %v399, %v608
        %v641 = vadd.f32 %v400, %v611
        %v642 = vadd.f32 %v401, %v616
        %v643 = vadd.f32 %v402, %v619
        %v644 = vadd.f32 %v403, %v624
        %v645 = vadd.f32 %v404, %v627
        %vm646 = vcmask 130048
        %647 = vst.msk [vmem:[#allocation2] sm:$0xff] %vm646, %v630
        %648 = vst.msk [vmem:[#allocation2 + $0x8] sm:$0xff] %vm646, %v631
        %649 = vst.msk [vmem:[#allocation2 + $0x10] sm:$0xff] %vm646, %v632
        %650 = vst.msk [vmem:[#allocation2 + $0x18] sm:$0xff] %vm646, %v633
        %651 = vst.msk [vmem:[#allocation2 + $0x20] sm:$0xff] %vm646, %v634
        %652 = vst.msk [vmem:[#allocation2 + $0x28] sm:$0xff] %vm646, %v635
        %653 = vst.msk [vmem:[#allocation2 + $0x30] sm:$0xff] %vm646, %v636
        %654 = vst.msk [vmem:[#allocation2 + $0x38] sm:$0xff] %vm646, %v637
        %655 = vst.msk [vmem:[#allocation2 + $0x40] sm:$0xff] %vm646, %v638
        %656 = vst.msk [vmem:[#allocation2 + $0x48] sm:$0xff] %vm646, %v639
        %657 = vst.msk [vmem:[#allocation2 + $0x50] sm:$0xff] %vm646, %v640
        %658 = vst.msk [vmem:[#allocation2 + $0x58] sm:$0xff] %vm646, %v641
        %659 = vst.msk [vmem:[#allocation2 + $0x60] sm:$0xff] %vm646, %v642
        %660 = vst.msk [vmem:[#allocation2 + $0x68] sm:$0xff] %vm646, %v643
        %661 = vst.msk [vmem:[#allocation2 + $0x70] sm:$0xff] %vm646, %v644
        %662 = vst.msk [vmem:[#allocation2 + $0x78] sm:$0xff] %vm646, %v645
        %p663 = scmp.eq.s32.totalorder %s21, 1
        // Predicated region
        $region86: #{evolve_gnn_forward.4} parent=76 // pred_check
          %p664 = pneg %p663
        $region87: #{evolve_gnn_forward.4} parent=76 // pred_check_branch
          %666 = sbr.rel (%p664) target = $region89
        $region88: #{evolve_gnn_forward.4} parent=76 // pred_region
          %v667 = vld [vmem:[#allocation2] sm:$0xff]
          %v668 = vld [vmem:[#allocation2 + $0x8] sm:$0xff]
          %v669 = vld [vmem:[#allocation2 + $0x10] sm:$0xff]
          %v670 = vld [vmem:[#allocation2 + $0x18] sm:$0xff]
          %v671 = vld [vmem:[#allocation2 + $0x20] sm:$0xff]
          %v672 = vld [vmem:[#allocation2 + $0x28] sm:$0xff]
          %v673 = vld [vmem:[#allocation2 + $0x30] sm:$0xff]
          %v674 = vld [vmem:[#allocation2 + $0x38] sm:$0xff]
          %v675 = vld [vmem:[#allocation2 + $0x40] sm:$0xff]
          %v676 = vld [vmem:[#allocation2 + $0x48] sm:$0xff]
          %v677 = vld [vmem:[#allocation2 + $0x50] sm:$0xff]
          %v678 = vld [vmem:[#allocation2 + $0x58] sm:$0xff]
          %v679 = vld [vmem:[#allocation2 + $0x60] sm:$0xff]
          %v680 = vld [vmem:[#allocation2 + $0x68] sm:$0xff]
          %v681 = vld [vmem:[#allocation2 + $0x70] sm:$0xff]
          %v682 = vld [vmem:[#allocation2 + $0x78] sm:$0xff]
          %v683 = vld [vmem:[%s2] sm:$0xff]
          %v684 = vld [vmem:[%s2 + $0x8] sm:$0xff]
          %v686 = vsel %vm646, %v667, 0
          %v689 = vsel %vm646, %v668, 0
          %v692 = vsel %vm646, %v669, 0
          %v695 = vsel %vm646, %v670, 0
          %v698 = vsel %vm646, %v671, 0
          %v701 = vsel %vm646, %v672, 0
          %v704 = vsel %vm646, %v673, 0
          %v707 = vsel %vm646, %v674, 0
          %v710 = vsel %vm646, %v675, 0
          %v713 = vsel %vm646, %v676, 0
          %v716 = vsel %vm646, %v677, 0
          %v719 = vsel %vm646, %v678, 0
          %v722 = vsel %vm646, %v679, 0
          %v725 = vsel %vm646, %v680, 0
          %v728 = vsel %vm646, %v681, 0
          %v731 = vsel %vm646, %v682, 0
          %733 = vmatprep.subr.mxu0 0.0
          %734 = vmatpush1.msra.mxu0 %v683
          %735 = vmatprep.subr.mxu0 0.0
          %736 = vmatpush1.msra.mxu0 %v684
          %737 = vmatprep.subr.mxu0 0.0
          %738 = vmatpush1.msra.mxu0 0.0
          %739 = vmatprep.subr.mxu0 0.0
          %740 = vmatpush1.msra.mxu0 0.0
          %741 = vmatprep.subr.mxu0 0.0
          %742 = vmatpush1.msra.mxu0 0.0
          %743 = vmatprep.subr.mxu0 0.0
          %744 = vmatpush1.msra.mxu0 0.0
          %745 = vmatprep.subr.mxu0 0.0
          %746 = vmatpush1.msra.mxu0 0.0
          %747 = vmatprep.subr.mxu0 0.0
          %748 = vmatpush1.msra.mxu0 0.0
          %749 = vmatprep.subr.mxu0 0.0
          %750 = vmatpush1.msra.mxu0 0.0
          %751 = vmatprep.subr.mxu0 0.0
          %752 = vmatpush1.msra.mxu0 0.0
          %753 = vmatprep.subr.mxu0 0.0
          %754 = vmatpush1.msra.mxu0 0.0
          %755 = vmatprep.subr.mxu0 0.0
          %756 = vmatpush1.msra.mxu0 0.0
          %757 = vmatprep.subr.mxu0 0.0
          %758 = vmatpush1.msra.mxu0 0.0
          %759 = vmatprep.subr.mxu0 0.0
          %760 = vmatpush1.msra.mxu0 0.0
          %761 = vmatprep.subr.mxu0 0.0
          %762 = vmatpush1.msra.mxu0 0.0
          %763 = vmatprep.subr.mxu0 0.0
          %764 = vmatpush1.msra.mxu0 0.0
          %765 = vmatprep.subr.mxu0 0.0
          %766 = vmatpush1.msra.mxu0 0.0
          %767 = vmatprep.subr.mxu0 0.0
          %768 = vmatpush1.msra.mxu0 0.0
          %769 = vmatprep.subr.mxu0 0.0
          %770 = vmatpush1.msra.mxu0 0.0
          %771 = vmatprep.subr.mxu0 0.0
          %772 = vmatpush1.msra.mxu0 0.0
          %773 = vmatprep.subr.mxu0 0.0
          %774 = vmatpush1.msra.mxu0 0.0
          %775 = vmatprep.subr.mxu0 0.0
          %776 = vmatpush1.msra.mxu0 0.0
          %777 = vmatprep.subr.mxu0 0.0
          %778 = vmatpush1.msra.mxu0 0.0
          %779 = vmatprep.subr.mxu0 0.0
          %780 = vmatpush1.msra.mxu0 0.0
          %781 = vmatprep.subr.mxu0 0.0
          %782 = vmatpush1.msra.mxu0 0.0
          %783 = vmatprep.subr.mxu0 0.0
          %784 = vmatpush1.msra.mxu0 0.0
          %785 = vmatprep.subr.mxu0 0.0
          %786 = vmatpush1.msra.mxu0 0.0
          %787 = vmatprep.subr.mxu0 0.0
          %788 = vmatpush1.msra.mxu0 0.0
          %789 = vmatprep.subr.mxu0 0.0
          %790 = vmatpush1.msra.mxu0 0.0
          %791 = vmatprep.subr.mxu0 0.0
          %792 = vmatpush1.msra.mxu0 0.0
          %793 = vmatprep.subr.mxu0 0.0
          %794 = vmatpush1.msra.mxu0 0.0
          %795 = vmatprep.subr.mxu0 0.0
          %796 = vmatpush1.msra.mxu0 0.0
          %797 = vmatprep.mubr.f32.mxu0 0.0
          %798 = vmatmul.mubr.f32.gmra.mrb[0].mxu0 %v686
          %v799 = vpop.f32.mrb[0].mxu0
          %v800 = vadd.f32 0.0, %v799
          %v801 = vpop.f32.mrb[0].mxu0
          %802 = vmatprep.mubr.f32.mxu0 0.0
          %803 = vmatmul.mubr.f32.gmra.mrb[0].mxu0 %v689
          %v804 = vpop.f32.mrb[0].mxu0
          %v805 = vadd.f32 0.0, %v804
          %v806 = vpop.f32.mrb[0].mxu0
          %807 = vmatprep.mubr.f32.mxu0 0.0
          %808 = vmatmul.mubr.f32.gmra.mrb[0].mxu0 %v692
          %v809 = vpop.f32.mrb[0].mxu0
          %v810 = vadd.f32 0.0, %v809
          %v811 = vpop.f32.mrb[0].mxu0
          %812 = vmatprep.mubr.f32.mxu0 0.0
          %813 = vmatmul.mubr.f32.gmra.mrb[0].mxu0 %v695
          %v814 = vpop.f32.mrb[0].mxu0
          %v815 = vadd.f32 0.0, %v814
          %v816 = vpop.f32.mrb[0].mxu0
          %817 = vmatprep.mubr.f32.mxu0 0.0
          %818 = vmatmul.mubr.f32.gmra.mrb[0].mxu0 %v698
          %v819 = vpop.f32.mrb[0].mxu0
          %v820 = vadd.f32 0.0, %v819
          %v821 = vpop.f32.mrb[0].mxu0
          %822 = vmatprep.mubr.f32.mxu0 0.0
          %823 = vmatmul.mubr.f32.gmra.mrb[0].mxu0 %v701
          %v824 = vpop.f32.mrb[0].mxu0
          %v825 = vadd.f32 0.0, %v824
          %v826 = vpop.f32.mrb[0].mxu0
          %827 = vmatprep.mubr.f32.mxu0 0.0
          %828 = vmatmul.mubr.f32.gmra.mrb[0].mxu0 %v704
          %v829 = vpop.f32.mrb[0].mxu0
          %v830 = vadd.f32 0.0, %v829
          %v831 = vpop.f32.mrb[0].mxu0
          %832 = vmatprep.mubr.f32.mxu0 0.0
          %833 = vmatmul.mubr.f32.gmra.mrb[0].mxu0 %v707
          %v834 = vpop.f32.mrb[0].mxu0
          %v835 = vadd.f32 0.0, %v834
          %v836 = vpop.f32.mrb[0].mxu0
          %837 = vmatprep.mubr.f32.mxu0 0.0
          %838 = vmatmul.mubr.f32.gmra.mrb[0].mxu0 %v710
          %v839 = vpop.f32.mrb[0].mxu0
          %v840 = vadd.f32 0.0, %v839
          %v841 = vpop.f32.mrb[0].mxu0
          %842 = vmatprep.mubr.f32.mxu0 0.0
          %843 = vmatmul.mubr.f32.gmra.mrb[0].mxu0 %v713
          %v844 = vpop.f32.mrb[0].mxu0
          %v845 = vadd.f32 0.0, %v844
          %v846 = vpop.f32.mrb[0].mxu0
          %847 = vmatprep.mubr.f32.mxu0 0.0
          %848 = vmatmul.mubr.f32.gmra.mrb[0].mxu0 %v716
          %v849 = vpop.f32.mrb[0].mxu0
          %v850 = vadd.f32 0.0, %v849
          %v851 = vpop.f32.mrb[0].mxu0
          %852 = vmatprep.mubr.f32.mxu0 0.0
          %853 = vmatmul.mubr.f32.gmra.mrb[0].mxu0 %v719
          %v854 = vpop.f32.mrb[0].mxu0
          %v855 = vadd.f32 0.0, %v854
          %v856 = vpop.f32.mrb[0].mxu0
          %857 = vmatprep.mubr.f32.mxu0 0.0
          %858 = vmatmul.mubr.f32.gmra.mrb[0].mxu0 %v722
          %v859 = vpop.f32.mrb[0].mxu0
          %v860 = vadd.f32 0.0, %v859
          %v861 = vpop.f32.mrb[0].mxu0
          %862 = vmatprep.mubr.f32.mxu0 0.0
          %863 = vmatmul.mubr.f32.gmra.mrb[0].mxu0 %v725
          %v864 = vpop.f32.mrb[0].mxu0
          %v865 = vadd.f32 0.0, %v864
          %v866 = vpop.f32.mrb[0].mxu0
          %867 = vmatprep.mubr.f32.mxu0 0.0
          %868 = vmatmul.mubr.f32.gmra.mrb[0].mxu0 %v728
          %v869 = vpop.f32.mrb[0].mxu0
          %v870 = vadd.f32 0.0, %v869
          %v871 = vpop.f32.mrb[0].mxu0
          %872 = vmatprep.mubr.f32.mxu0 0.0
          %873 = vmatmul.mubr.f32.gmra.mrb[0].mxu0 %v731
          %v874 = vpop.f32.mrb[0].mxu0
          %v875 = vadd.f32 0.0, %v874
          %v876 = vpop.f32.mrb[0].mxu0
          %877 = vdwg.mxu0
          %v878 = vmax.f32 %v800, 0.0
          %v879 = vmax.f32 %v805, 0.0
          %v880 = vmax.f32 %v810, 0.0
          %v881 = vmax.f32 %v815, 0.0
          %v882 = vmax.f32 %v820, 0.0
          %v883 = vmax.f32 %v825, 0.0
          %v884 = vmax.f32 %v830, 0.0
          %v885 = vmax.f32 %v835, 0.0
          %v886 = vmax.f32 %v840, 0.0
          %v887 = vmax.f32 %v845, 0.0
          %v888 = vmax.f32 %v850, 0.0
          %v889 = vmax.f32 %v855, 0.0
          %v890 = vmax.f32 %v860, 0.0
          %v891 = vmax.f32 %v865, 0.0
          %v892 = vmax.f32 %v870, 0.0
          %v893 = vmax.f32 %v875, 0.0
          %v894 = vld [vmem:[%s3] sm:$0xff]
          %v895 = vld [vmem:[%s3 + $0x8] sm:$0xff]
          %v896 = vld [vmem:[%s4] sm:$0x1]
          %v898 = vlaneseq
          %v899 = vshrl.u32 %v898, 7
          %v900 = vsub.s32 0, %v899
          %v901 = vrot.slane %v896, %v900
          %v904 = vsel %vm646, %v878, 0
          %v907 = vsel %vm646, %v879, 0
          %v910 = vsel %vm646, %v880, 0
          %v913 = vsel %vm646, %v881, 0
          %v916 = vsel %vm646, %v882, 0
          %v919 = vsel %vm646, %v883, 0
          %v922 = vsel %vm646, %v884, 0
          %v925 = vsel %vm646, %v885, 0
          %v928 = vsel %vm646, %v886, 0
          %v931 = vsel %vm646, %v887, 0
          %v934 = vsel %vm646, %v888, 0
          %v937 = vsel %vm646, %v889, 0
          %v940 = vsel %vm646, %v890, 0
          %v943 = vsel %vm646, %v891, 0
          %v946 = vsel %vm646, %v892, 0
          %v949 = vsel %vm646, %v893, 0
          %951 = vmatprep.subr.mxu0 0.0
          %952 = vmatpush1.msra.mxu0 %v894
          %953 = vmatprep.subr.mxu0 0.0
          %954 = vmatpush1.msra.mxu0 %v895
          %955 = vmatprep.subr.mxu0 0.0
          %956 = vmatpush1.msra.mxu0 0.0
          %957 = vmatprep.subr.mxu0 0.0
          %958 = vmatpush1.msra.mxu0 0.0
          %959 = vmatprep.subr.mxu0 0.0
          %960 = vmatpush1.msra.mxu0 0.0
          %961 = vmatprep.subr.mxu0 0.0
          %962 = vmatpush1.msra.mxu0 0.0
          %963 = vmatprep.subr.mxu0 0.0
          %964 = vmatpush1.msra.mxu0 0.0
          %965 = vmatprep.subr.mxu0 0.0
          %966 = vmatpush1.msra.mxu0 0.0
          %967 = vmatprep.subr.mxu0 0.0
          %968 = vmatpush1.msra.mxu0 0.0
          %969 = vmatprep.subr.mxu0 0.0
          %970 = vmatpush1.msra.mxu0 0.0
          %971 = vmatprep.subr.mxu0 0.0
          %972 = vmatpush1.msra.mxu0 0.0
          %973 = vmatprep.subr.mxu0 0.0
          %974 = vmatpush1.msra.mxu0 0.0
          %975 = vmatprep.subr.mxu0 0.0
          %976 = vmatpush1.msra.mxu0 0.0
          %977 = vmatprep.subr.mxu0 0.0
          %978 = vmatpush1.msra.mxu0 0.0
          %979 = vmatprep.subr.mxu0 0.0
          %980 = vmatpush1.msra.mxu0 0.0
          %981 = vmatprep.subr.mxu0 0.0
          %982 = vmatpush1.msra.mxu0 0.0
          %983 = vmatprep.subr.mxu0 0.0
          %984 = vmatpush1.msra.mxu0 0.0
          %985 = vmatprep.subr.mxu0 0.0
          %986 = vmatpush1.msra.mxu0 0.0
          %987 = vmatprep.subr.mxu0 0.0
          %988 = vmatpush1.msra.mxu0 0.0
          %989 = vmatprep.subr.mxu0 0.0
          %990 = vmatpush1.msra.mxu0 0.0
          %991 = vmatprep.subr.mxu0 0.0
          %992 = vmatpush1.msra.mxu0 0.0
          %993 = vmatprep.subr.mxu0 0.0
          %994 = vmatpush1.msra.mxu0 0.0
          %995 = vmatprep.subr.mxu0 0.0
          %996 = vmatpush1.msra.mxu0 0.0
          %997 = vmatprep.subr.mxu0 0.0
          %998 = vmatpush1.msra.mxu0 0.0
          %999 = vmatprep.subr.mxu0 0.0
          %1000 = vmatpush1.msra.mxu0 0.0
          %1001 = vmatprep.subr.mxu0 0.0
          %1002 = vmatpush1.msra.mxu0 0.0
          %1003 = vmatprep.subr.mxu0 0.0
          %1004 = vmatpush1.msra.mxu0 0.0
          %1005 = vmatprep.subr.mxu0 0.0
          %1006 = vmatpush1.msra.mxu0 0.0
          %1007 = vmatprep.subr.mxu0 0.0
          %1008 = vmatpush1.msra.mxu0 0.0
          %1009 = vmatprep.subr.mxu0 0.0
          %1010 = vmatpush1.msra.mxu0 0.0
          %1011 = vmatprep.subr.mxu0 0.0
          %1012 = vmatpush1.msra.mxu0 0.0
          %1013 = vmatprep.subr.mxu0 0.0
          %1014 = vmatpush1.msra.mxu0 0.0
          %1015 = vmatprep.mubr.f32.mxu0 0.0
          %1016 = vmatmul.mubr.f32.gmra.mrb[0].mxu0 %v904
          %v1017 = vpop.f32.mrb[0].mxu0
          %v1018 = vadd.f32 %v901, %v1017
          %v1019 = vpop.f32.mrb[0].mxu0
          %1020 = vmatprep.mubr.f32.mxu0 0.0
          %1021 = vmatmul.mubr.f32.gmra.mrb[0].mxu0 %v907
          %v1022 = vpop.f32.mrb[0].mxu0
          %v1023 = vadd.f32 %v901, %v1022
          %v1024 = vpop.f32.mrb[0].mxu0
          %1025 = vmatprep.mubr.f32.mxu0 0.0
          %1026 = vmatmul.mubr.f32.gmra.mrb[0].mxu0 %v910
          %v1027 = vpop.f32.mrb[0].mxu0
          %v1028 = vadd.f32 %v901, %v1027
          %v1029 = vpop.f32.mrb[0].mxu0
          %1030 = vmatprep.mubr.f32.mxu0 0.0
          %1031 = vmatmul.mubr.f32.gmra.mrb[0].mxu0 %v913
          %v1032 = vpop.f32.mrb[0].mxu0
          %v1033 = vadd.f32 %v901, %v1032
          %v1034 = vpop.f32.mrb[0].mxu0
          %1035 = vmatprep.mubr.f32.mxu0 0.0
          %1036 = vmatmul.mubr.f32.gmra.mrb[0].mxu0 %v916
          %v1037 = vpop.f32.mrb[0].mxu0
          %v1038 = vadd.f32 %v901, %v1037
          %v1039 = vpop.f32.mrb[0].mxu0
          %1040 = vmatprep.mubr.f32.mxu0 0.0
          %1041 = vmatmul.mubr.f32.gmra.mrb[0].mxu0 %v919
          %v1042 = vpop.f32.mrb[0].mxu0
          %v1043 = vadd.f32 %v901, %v1042
          %v1044 = vpop.f32.mrb[0].mxu0
          %1045 = vmatprep.mubr.f32.mxu0 0.0
          %1046 = vmatmul.mubr.f32.gmra.mrb[0].mxu0 %v922
          %v1047 = vpop.f32.mrb[0].mxu0
          %v1048 = vadd.f32 %v901, %v1047
          %v1049 = vpop.f32.mrb[0].mxu0
          %1050 = vmatprep.mubr.f32.mxu0 0.0
          %1051 = vmatmul.mubr.f32.gmra.mrb[0].mxu0 %v925
          %v1052 = vpop.f32.mrb[0].mxu0
          %v1053 = vadd.f32 %v901, %v1052
          %v1054 = vpop.f32.mrb[0].mxu0
          %1055 = vmatprep.mubr.f32.mxu0 0.0
          %1056 = vmatmul.mubr.f32.gmra.mrb[0].mxu0 %v928
          %v1057 = vpop.f32.mrb[0].mxu0
          %v1058 = vadd.f32 %v901, %v1057
          %v1059 = vpop.f32.mrb[0].mxu0
          %1060 = vmatprep.mubr.f32.mxu0 0.0
          %1061 = vmatmul.mubr.f32.gmra.mrb[0].mxu0 %v931
          %v1062 = vpop.f32.mrb[0].mxu0
          %v1063 = vadd.f32 %v901, %v1062
          %v1064 = vpop.f32.mrb[0].mxu0
          %1065 = vmatprep.mubr.f32.mxu0 0.0
          %1066 = vmatmul.mubr.f32.gmra.mrb[0].mxu0 %v934
          %v1067 = vpop.f32.mrb[0].mxu0
          %v1068 = vadd.f32 %v901, %v1067
          %v1069 = vpop.f32.mrb[0].mxu0
          %1070 = vmatprep.mubr.f32.mxu0 0.0
          %1071 = vmatmul.mubr.f32.gmra.mrb[0].mxu0 %v937
          %v1072 = vpop.f32.mrb[0].mxu0
          %v1073 = vadd.f32 %v901, %v1072
          %v1074 = vpop.f32.mrb[0].mxu0
          %1075 = vmatprep.mubr.f32.mxu0 0.0
          %1076 = vmatmul.mubr.f32.gmra.mrb[0].mxu0 %v940
          %v1077 = vpop.f32.mrb[0].mxu0
          %v1078 = vadd.f32 %v901, %v1077
          %v1079 = vpop.f32.mrb[0].mxu0
          %1080 = vmatprep.mubr.f32.mxu0 0.0
          %1081 = vmatmul.mubr.f32.gmra.mrb[0].mxu0 %v943
          %v1082 = vpop.f32.mrb[0].mxu0
          %v1083 = vadd.f32 %v901, %v1082
          %v1084 = vpop.f32.mrb[0].mxu0
          %1085 = vmatprep.mubr.f32.mxu0 0.0
          %1086 = vmatmul.mubr.f32.gmra.mrb[0].mxu0 %v946
          %v1087 = vpop.f32.mrb[0].mxu0
          %v1088 = vadd.f32 %v901, %v1087
          %v1089 = vpop.f32.mrb[0].mxu0
          %1090 = vmatprep.mubr.f32.mxu0 0.0
          %1091 = vmatmul.mubr.f32.gmra.mrb[0].mxu0 %v949
          %v1092 = vpop.f32.mrb[0].mxu0
          %v1093 = vadd.f32 %v901, %v1092
          %v1094 = vpop.f32.mrb[0].mxu0
          %1095 = vdwg.mxu0
          %v1096 = vpack.c.bf16 %v1023, %v1018
          %v1097 = vpack.c.bf16 %v1033, %v1028
          %v1098 = vpack.c.bf16 %v1043, %v1038
          %v1099 = vpack.c.bf16 %v1053, %v1048
          %v1100 = vpack.c.bf16 %v1063, %v1058
          %v1101 = vpack.c.bf16 %v1073, %v1068
          %v1102 = vpack.c.bf16 %v1083, %v1078
          %v1103 = vpack.c.bf16 %v1093, %v1088
          %v1112 = vunpack.c.l.b16 %v1096
          %v1113 = vunpack.c.h.b16 %v1096
          %v1114 = vunpack.c.l.b16 %v1097
          %v1115 = vunpack.c.h.b16 %v1097
          %v1116 = vunpack.c.l.b16 %v1098
          %v1117 = vunpack.c.h.b16 %v1098
          %v1118 = vunpack.c.l.b16 %v1099
          %v1119 = vunpack.c.h.b16 %v1099
          %v1120 = vunpack.c.l.b16 %v1100
          %v1121 = vunpack.c.h.b16 %v1100
          %v1122 = vunpack.c.l.b16 %v1101
          %v1123 = vunpack.c.h.b16 %v1101
          %v1124 = vunpack.c.l.b16 %v1102
          %v1125 = vunpack.c.h.b16 %v1102
          %v1126 = vunpack.c.l.b16 %v1103
          %v1127 = vunpack.c.h.b16 %v1103
          %v1128 = vpack.c.b16 %v1112, %v1112
          %v1129 = vpack.c.b16 %v1113, %v1113
          %v1130 = vpack.c.b16 %v1114, %v1114
          %v1131 = vpack.c.b16 %v1115, %v1115
          %v1132 = vpack.c.b16 %v1116, %v1116
          %v1133 = vpack.c.b16 %v1117, %v1117
          %v1134 = vpack.c.b16 %v1118, %v1118
          %v1135 = vpack.c.b16 %v1119, %v1119
          %v1136 = vpack.c.b16 %v1120, %v1120
          %v1137 = vpack.c.b16 %v1121, %v1121
          %v1138 = vpack.c.b16 %v1122, %v1122
          %v1139 = vpack.c.b16 %v1123, %v1123
          %v1140 = vpack.c.b16 %v1124, %v1124
          %v1141 = vpack.c.b16 %v1125, %v1125
          %v1142 = vpack.c.b16 %v1126, %v1126
          %v1143 = vpack.c.b16 %v1127, %v1127
          %1160 = vst [vmem:[%s365] sm:$0xf] %v1128
          %1161 = vst [vmem:[%s365 + $0x4] sm:$0xf] %v1129
          %1162 = vst [vmem:[%s365 + $0x8] sm:$0xf] %v1130
          %1163 = vst [vmem:[%s365 + $0xc] sm:$0xf] %v1131
          %1164 = vst [vmem:[%s365 + $0x10] sm:$0xf] %v1132
          %1165 = vst [vmem:[%s365 + $0x14] sm:$0xf] %v1133
          %1166 = vst [vmem:[%s365 + $0x18] sm:$0xf] %v1134
          %1167 = vst [vmem:[%s365 + $0x1c] sm:$0xf] %v1135
          %1168 = vst [vmem:[%s365 + $0x20] sm:$0xf] %v1136
          %1169 = vst [vmem:[%s365 + $0x24] sm:$0xf] %v1137
          %1170 = vst [vmem:[%s365 + $0x28] sm:$0xf] %v1138
          %1171 = vst [vmem:[%s365 + $0x2c] sm:$0xf] %v1139
          %1172 = vst [vmem:[%s365 + $0x30] sm:$0xf] %v1140
          %1173 = vst [vmem:[%s365 + $0x34] sm:$0xf] %v1141
          %1174 = vst [vmem:[%s365 + $0x38] sm:$0xf] %v1142
          %1175 = vst [vmem:[%s365 + $0x3c] sm:$0xf] %v1143
        $region89: #{evolve_gnn_forward.4} parent=76 // pred_fallthru
          _
        %s1176 = smul.u32 16, %s20
        %p1177 = scmp.lt.s32.totalorder %s1176, 31
        %s1178 = scalar_select %p1177, %s1176, 31
        %s1179 = smul.addr %s1178, 4
        %s1180 = scalar_lea.vmem %s5, %s1179
        // Predicated region
        $region90: #{evolve_gnn_forward.4} parent=76 // pred_check
          %p1181 = pneg %p163
        $region91: #{evolve_gnn_forward.4} parent=76 // pred_check_branch
          %1183 = sbr.rel (%p1181) target = $region93
        $region92: #{evolve_gnn_forward.4} parent=76 // pred_region
          %s1184 = smul.u32 16, %s20
        $region93: #{evolve_gnn_forward.4} parent=76 // pred_fallthru
          _
      $region77: #{evolve_gnn_forward.4} parent=5 // pred_fallthru
        _
      %p1185 = scmp.le.s32.totalorder 2, %s11
      // Predicated region
      $region94: #{evolve_gnn_forward.4} parent=5 // pred_check
        %p1186 = pneg %p1185
      $region95: #{evolve_gnn_forward.4} parent=5 // pred_check_branch
        %1188 = sbr.rel (%p1186) target = $region97
      $region96: #{evolve_gnn_forward.4} parent=5 // pred_region
        %s1189 = ssub.s32 %s11, 2
        // Predicated region
        $region98: #{evolve_gnn_forward.4} parent=96 // pred_check
          %p1190 = pneg %p169
        $region99: #{evolve_gnn_forward.4} parent=96 // pred_check_branch
          %1192 = sbr.rel (%p1190) target = $region101
        $region100: #{evolve_gnn_forward.4} parent=96 // pred_region
          %s1193 = smul.u32 16, %s22
          %p1194 = scmp.lt.s32.totalorder %s1193, 31
          %s1195 = scalar_select %p1194, %s1193, 31
          %s1196 = smul.addr %s1195, 4
          %s1197 = scalar_lea.vmem %s5, %s1196
        $region101: #{evolve_gnn_forward.4} parent=96 // pred_fallthru
          _
      $region97: #{evolve_gnn_forward.4} parent=5 // pred_fallthru
        _
    $region6: #{evolve_gnn_forward.4} parent=1 // loop_footer
      %s15 = sadd.s32 1, %s11
    $region7: #{evolve_gnn_forward.4} parent=1 // loop_footer_branch
      %10 = sbr.rel target = $region3
    $region8: #{evolve_gnn_forward.4} parent=1 // loop_exit
      _

</llo_original>
